<compile_context>
chip_gen: v6e
topology: v6e:2x2x1
jax: 0.10.0
libtpu: 0.0.40
codegen_flags: <defaults>
</compile_context>

<pallas_src>
import jax
import jax.numpy as jnp
from jax import lax
from jax.experimental import pallas as pl
from jax.experimental.pallas import tpu as pltpu

_LANES = 128  # conv output channels are padded to this -> lane-dense stores


# --------------------------------------------------------------------------
# Pallas kernels: fused 3x3 conv (+bias) -> ReLU -> per-image BN statistics
# --------------------------------------------------------------------------

def _conv_core(xp_ref, col_ref, w_ref, b_ref, y_ref, stats_ref):
    """Shared body once the padded-image scratch has been filled.

    xp_ref   : VMEM (H+2, W+2, C)  zero-padded input image
    col_ref  : VMEM (H, W, 9*C)    im2col scratch
    w_ref    : (9*C, Cp)           fused weights (out channels padded to Cp)
    b_ref    : (1, Cp)
    y_ref    : (H*W, Cp)           relu(conv) output, lane-dense
    stats_ref: (2, Cp)             per-image [sum, sum-of-squares]
    """
    Hp, Wp, C = xp_ref.shape
    H, W = Hp - 2, Wp - 2

    # im2col: one (H, W, C) slab per tap, written at lane offset t*C.
    for t in range(9):
        dy, dx = divmod(t, 3)
        col_ref[:, :, t * C:(t + 1) * C] = xp_ref[dy:dy + H, dx:dx + W, :]

    patches = col_ref[...].reshape(H * W, 9 * C)          # (M, 9C)
    acc = jnp.dot(patches, w_ref[...], preferred_element_type=jnp.float32)
    y = jnp.maximum(acc + b_ref[...], 0.0)                # (M, Cp)
    y_ref[...] = y                                        # lane-dense store
    s = jnp.sum(y, axis=0, keepdims=True)
    ss = jnp.sum(y * y, axis=0, keepdims=True)
    stats_ref[...] = jnp.concatenate([s, ss], axis=0)     # per-image stats


def _conv1_kernel(xu_ref, skip_ref, w_ref, b_ref, y_ref, stats_ref,
                  xp_ref, col_ref):
    # conv1 of UnetConvBlock with the 1x1 up-conv + concat folded into its
    # weights. Scratch channel order: [x_up (in_ch), skip (prev_ch), ones].
    H, W, in_ch = xu_ref.shape
    prev_ch = skip_ref.shape[-1]
    c1 = in_ch + prev_ch
    xp_ref[...] = jnp.zeros_like(xp_ref)                  # halo = zero padding
    xp_ref[1:H + 1, 1:W + 1, 0:in_ch] = xu_ref[...]
    xp_ref[1:H + 1, 1:W + 1, in_ch:c1] = skip_ref[...]
    xp_ref[1:H + 1, 1:W + 1, c1:c1 + 1] = jnp.ones((H, W, 1), jnp.float32)
    _conv_core(xp_ref, col_ref, w_ref, b_ref, y_ref, stats_ref)


def _conv2_kernel(y1_ref, w_ref, b_ref, y_ref, stats_ref, xp_ref, col_ref):
    # conv2 of UnetConvBlock with BatchNorm1 folded into its weights.
    # Scratch channel order: [y1 (out_ch), ones].
    H, W, _ = y1_ref.shape
    C = xp_ref.shape[-1]
    out_ch = C - 1
    xp_ref[...] = jnp.zeros_like(xp_ref)
    xp_ref[1:H + 1, 1:W + 1, 0:out_ch] = y1_ref[:, :, 0:out_ch]
    xp_ref[1:H + 1, 1:W + 1, out_ch:C] = jnp.ones((H, W, 1), jnp.float32)
    _conv_core(xp_ref, col_ref, w_ref, b_ref, y_ref, stats_ref)


# --------------------------------------------------------------------------
# pallas_call wrappers
# --------------------------------------------------------------------------

def _conv1_call(xu, skip, w, b):
    N, H, W, in_ch = xu.shape
    prev_ch = skip.shape[-1]
    C = in_ch + prev_ch + 1
    Cp = w.shape[-1]
    M = H * W
    # NOTE: one grid step = one image (fits VMEM at these sizes); at larger
    # resolutions you would add a second grid axis over row blocks.
    return pl.pallas_call(
        _conv1_kernel,
        out_shape=(jax.ShapeDtypeStruct((N, M, Cp), jnp.float32),
                   jax.ShapeDtypeStruct((N, 2, Cp), jnp.float32)),
        grid=(N,),
        in_specs=[
            pl.BlockSpec((None, H, W, in_ch), lambda n: (n, 0, 0, 0)),
            pl.BlockSpec((None, H, W, prev_ch), lambda n: (n, 0, 0, 0)),
            pl.BlockSpec((9 * C, Cp), lambda n: (0, 0)),
            pl.BlockSpec((1, Cp), lambda n: (0, 0)),
        ],
        out_specs=(
            pl.BlockSpec((None, M, Cp), lambda n: (n, 0, 0)),
            pl.BlockSpec((None, 2, Cp), lambda n: (n, 0, 0)),
        ),
        scratch_shapes=[
            pltpu.VMEM((H + 2, W + 2, C), jnp.float32),   # padded image
            pltpu.VMEM((H, W, 9 * C), jnp.float32),       # im2col matrix
        ],
        compiler_params=pltpu.CompilerParams(
            dimension_semantics=("parallel",)),            # megacore-safe
    )(xu, skip, w, b)


def _conv2_call(y1, w, b, out_ch):
    N, H, W, Cp = y1.shape
    C = out_ch + 1
    M = H * W
    return pl.pallas_call(
        _conv2_kernel,
        out_shape=(jax.ShapeDtypeStruct((N, M, Cp), jnp.float32),
                   jax.ShapeDtypeStruct((N, 2, Cp), jnp.float32)),
        grid=(N,),
        in_specs=[
            pl.BlockSpec((None, H, W, Cp), lambda n: (n, 0, 0, 0)),
            pl.BlockSpec((9 * C, Cp), lambda n: (0, 0)),
            pl.BlockSpec((1, Cp), lambda n: (0, 0)),
        ],
        out_specs=(
            pl.BlockSpec((None, M, Cp), lambda n: (n, 0, 0)),
            pl.BlockSpec((None, 2, Cp), lambda n: (n, 0, 0)),
        ),
        scratch_shapes=[
            pltpu.VMEM((H + 2, W + 2, C), jnp.float32),
            pltpu.VMEM((H, W, 9 * C), jnp.float32),
        ],
        compiler_params=pltpu.CompilerParams(
            dimension_semantics=("parallel",)),
    )(y1, w, b)


# --------------------------------------------------------------------------
# plain-JAX glue: upsample stencil, BN parameters, weight fusion
# --------------------------------------------------------------------------

def _upsample2x_along(v, axis):
    # scale_factor=2, align_corners=False bilinear is a fixed 0.25/0.75
    # stencil with edge clamping: out[2i] = .25*x[i-1]+.75*x[i],
    # out[2i+1] = .75*x[i]+.25*x[i+1].
    n = v.shape[axis]
    first = lax.slice_in_dim(v, 0, 1, axis=axis)
    last = lax.slice_in_dim(v, n - 1, n, axis=axis)
    prev = jnp.concatenate([first, lax.slice_in_dim(v, 0, n - 1, axis=axis)],
                           axis=axis)
    nxt = jnp.concatenate([lax.slice_in_dim(v, 1, n, axis=axis), last],
                          axis=axis)
    even = 0.75 * v + 0.25 * prev
    odd = 0.75 * v + 0.25 * nxt
    out = jnp.stack([even, odd], axis=axis + 1)
    shape = list(v.shape)
    shape[axis] = 2 * n
    return out.reshape(shape)


def bilinear_upsample_x2(x):
    # Shift-based stencil (no gathers), matches nn.Upsample(bilinear, x2).
    # TODO(synk): could be folded into the conv1 kernel's input fill to save
    # one HBM round trip of the upsampled tensor.
    return _upsample2x_along(_upsample2x_along(x, 1), 2)


def _pad_lanes(a, cp):
    return jnp.pad(a, [(0, 0)] * (a.ndim - 1) + [(0, cp - a.shape[-1])])


def _bn_scale_shift(stats, gamma, beta, count, eps=1e-5):
    # Training-mode BatchNorm: batch mean, biased variance (PyTorch forward).
    mean = stats[0] / count
    var = jnp.maximum(stats[1] / count - mean * mean, 0.0)  # guard cancellation
    scale = gamma * lax.rsqrt(var + eps)
    shift = beta - mean * scale
    return scale, shift


def _fuse_conv1_weights(up_w, up_b, c1_w, c1_b, out_ch, cp):
    # Input channel order per tap: [x_up (in_ch), skip (prev_ch), ones].
    w_up_part = c1_w[:, :out_ch, :]                         # (9, out_ch, out_ch)
    w_skip_part = c1_w[:, out_ch:, :]                       # (9, prev_ch, out_ch)
    w_x = jnp.einsum('ic,tco->tio', up_w, w_up_part)        # (9, in_ch, out_ch)
    w_one = jnp.einsum('c,tco->to', up_b, w_up_part)[:, None]  # (9, 1, out_ch)
    w = jnp.concatenate([w_x, w_skip_part, w_one], axis=1)
    w = w.reshape(-1, out_ch)                               # (9*(in+prev+1), out)
    return _pad_lanes(w, cp), _pad_lanes(c1_b[None, :], cp)


def _fuse_conv2_weights(c2_w, c2_b, s1, b1, cp):
    # Input channel order per tap: [y1 (out_ch, scaled by BN1), ones (BN1 shift)].
    out_ch = c2_w.shape[-1]
    w_y = c2_w * s1[None, :, None]                          # (9, out_ch, out_ch)
    w_one = jnp.einsum('c,tco->to', b1, c2_w)[:, None]      # (9, 1, out_ch)
    w = jnp.concatenate([w_y, w_one], axis=1).reshape(-1, out_ch)
    return _pad_lanes(w, cp), _pad_lanes(c2_b[None, :], cp)


def unet_block_up_forward(params, x_nchw, skip_nchw):
    x = jnp.transpose(x_nchw, (0, 2, 3, 1)).astype(jnp.float32)      # NHWC
    skip = jnp.transpose(skip_nchw, (0, 2, 3, 1)).astype(jnp.float32)

    out_ch = params["up_w"].shape[1]
    cp = ((out_ch + _LANES - 1) // _LANES) * _LANES

    # --- bilinear x2 upsample (fixed stencil) ---
    xu = bilinear_upsample_x2(x)
    N, H2, W2, _ = xu.shape
    count = N * H2 * W2

    # --- conv1 (1x1 up-conv + concat + padding folded) -> ReLU + stats ---
    w1, b1 = _fuse_conv1_weights(params["up_w"], params["up_b"],
                                 params["c1_w"], params["c1_b"], out_ch, cp)
    y1, st1 = _conv1_call(xu, skip, w1, b1)
    st1 = st1.sum(axis=0)[:, :out_ch]                       # reduce over batch
    s1, t1 = _bn_scale_shift(st1, params["bn1_g"], params["bn1_b"], count)
    # Dropout(p=0) inside UnetConvBlock is identity.

    # --- conv2 (BatchNorm1 folded into its weights) -> ReLU + stats ---
    w2, b2 = _fuse_conv2_weights(params["c2_w"], params["c2_b"], s1, t1, cp)
    y1_4d = y1.reshape(N, H2, W2, cp)                       # free reshape in HBM
    y2, st2 = _conv2_call(y1_4d, w2, b2, out_ch)
    st2 = st2.sum(axis=0)[:, :out_ch]
    s2, t2 = _bn_scale_shift(st2, params["bn2_g"], params["bn2_b"], count)

    # --- BatchNorm2 fused with channel un-pad + NCHW transpose epilogue ---
    out = y2[:, :, :out_ch].reshape(N, H2, W2, out_ch) * s2 + t2
    # outer dropout is None (UnetBlockUp default) -> identity
    return jnp.transpose(out, (0, 3, 1, 2))                 # NCHW


# --------------------------------------------------------------------------
# deterministic params
# --------------------------------------------------------------------------

def init_params(key, in_ch):
    out_ch = in_ch // 2
    prev_ch = out_ch
    cat_ch = out_ch + prev_ch
    ks = jax.random.split(key, 10)

    def uni(k, shape, fan_in):
        bound = 1.0 / jnp.sqrt(float(fan_in))
        return jax.random.uniform(k, shape, jnp.float32, -bound, bound)

    return {
        # 1x1 up-conv stored as (in_ch, out_ch): up = xu @ up_w + up_b
        "up_w": uni(ks[0], (in_ch, out_ch), in_ch),
        "up_b": uni(ks[1], (out_ch,), in_ch),
        # 3x3 convs stored as (9, cin, cout), taps (dy, dx) row-major; the
        # first out_ch input channels of c1_w act on the up-conv output, the
        # rest on the skip connection (torch.cat([up, skip], dim=1)).
        "c1_w": uni(ks[2], (3, 3, cat_ch, out_ch), 9 * cat_ch).reshape(9, cat_ch, out_ch),
        "c1_b": uni(ks[3], (out_ch,), 9 * cat_ch),
        "c2_w": uni(ks[4], (3, 3, out_ch, out_ch), 9 * out_ch).reshape(9, out_ch, out_ch),
        "c2_b": uni(ks[5], (out_ch,), 9 * out_ch),
        "bn1_g": 1.0 + 0.1 * jax.random.normal(ks[6], (out_ch,), jnp.float32),
        "bn1_b": 0.1 * jax.random.normal(ks[7], (out_ch,), jnp.float32),
        "bn2_g": 1.0 + 0.1 * jax.random.normal(ks[8], (out_ch,), jnp.float32),
        "bn2_b": 0.1 * jax.random.normal(ks[9], (out_ch,), jnp.float32),
    }


if __name__ == "__main__":
    key = jax.random.PRNGKey(0)
    k_p, k_x, k_s = jax.random.split(key, 3)

    N, in_ch, H, W = 2, 8, 8, 8
    out_ch = in_ch // 2
    prev_ch = out_ch               # UnetBlockUp default (prev_ch=None -> out_ch)

    params = init_params(k_p, in_ch)
    x = jax.random.normal(k_x, (N, in_ch, H, W), jnp.float32)
    skip = jax.random.normal(k_s, (N, prev_ch, 2 * H, 2 * W), jnp.float32)

    fwd = jax.jit(unet_block_up_forward)
    out = jax.block_until_ready(fwd(params, x, skip))

    assert out.shape == (N, out_ch, 2 * H, 2 * W), out.shape
    assert bool(jnp.isfinite(out).all())
    print("KERNEL_OK")
</pallas_src>

<mosaic_0001>
module attributes {stable_mosaic.version = 11 : i64} {
  func.func @_conv1_kernel(%arg0: i32, %arg1: memref<1x16x16x8xf32, #tpu.memory_space<vmem>>, %arg2: memref<1x16x16x4xf32, #tpu.memory_space<vmem>>, %arg3: memref<117x128xf32, #tpu.memory_space<vmem>>, %arg4: memref<1x128xf32, #tpu.memory_space<vmem>>, %arg5: memref<1x256x128xf32, #tpu.memory_space<vmem>>, %arg6: memref<1x2x128xf32, #tpu.memory_space<vmem>>, %arg7: memref<18x18x13xf32, #tpu.memory_space<vmem>>, %arg8: memref<16x16x117xf32, #tpu.memory_space<vmem>>) attributes {dimension_semantics = [#tpu.dimension_semantics<parallel>], iteration_bounds = array<i64: 2>, scalar_prefetch = 0 : i64, scratch_operands = 2 : i64, tpu.core_type = #tpu.core_type<tc>, window_params = [{transform_indices = @transform_0, window_bounds = array<i64: 1, 16, 16, 8>}, {transform_indices = @transform_1, window_bounds = array<i64: 1, 16, 16, 4>}, {pipeline_mode = #tpu.pipeline_mode<synchronous>, transform_indices = @transform_2, window_bounds = array<i64: 117, 128>}, {pipeline_mode = #tpu.pipeline_mode<synchronous>, transform_indices = @transform_3, window_bounds = array<i64: 1, 128>}, {transform_indices = @transform_4, window_bounds = array<i64: 1, 256, 128>}, {transform_indices = @transform_5, window_bounds = array<i64: 1, 2, 128>}]} {
    %cst = arith.constant 0.000000e+00 : f32
    %0 = vector.broadcast %cst : f32 to vector<18x18x13xf32>
    %c0 = arith.constant 0 : index
    %c0_0 = arith.constant 0 : index
    %c0_1 = arith.constant 0 : index
    %1 = vector.load %arg7[%c0, %c0_0, %c0_1] : memref<18x18x13xf32, #tpu.memory_space<vmem>>, vector<18x18x13xf32>
    tpu.vector_store %arg7[%c0, %c0_0, %c0_1], %0 {strides = array<i32>} : memref<18x18x13xf32, #tpu.memory_space<vmem>>, vector<18x18x13xf32>,
    %c0_2 = arith.constant 0 : index
    %c0_3 = arith.constant 0 : index
    %c0_4 = arith.constant 0 : index
    %c0_5 = arith.constant 0 : index
    %2 = vector.load %arg1[%c0_2, %c0_3, %c0_4, %c0_5] : memref<1x16x16x8xf32, #tpu.memory_space<vmem>>, vector<1x16x16x8xf32>
    %3 = vector.shape_cast %2 : vector<1x16x16x8xf32> to vector<16x16x8xf32>
    %c1 = arith.constant 1 : index
    %c1_6 = arith.constant 1 : index
    %c0_7 = arith.constant 0 : index
    %4 = vector.load %arg7[%c1, %c1_6, %c0_7] : memref<18x18x13xf32, #tpu.memory_space<vmem>>, vector<16x16x8xf32>
    tpu.vector_store %arg7[%c1, %c1_6, %c0_7], %3 {strides = array<i32>} : memref<18x18x13xf32, #tpu.memory_space<vmem>>, vector<16x16x8xf32>,
    %c0_8 = arith.constant 0 : index
    %c0_9 = arith.constant 0 : index
    %c0_10 = arith.constant 0 : index
    %c0_11 = arith.constant 0 : index
    %5 = vector.load %arg2[%c0_8, %c0_9, %c0_10, %c0_11] : memref<1x16x16x4xf32, #tpu.memory_space<vmem>>, vector<1x16x16x4xf32>
    %6 = vector.shape_cast %5 : vector<1x16x16x4xf32> to vector<16x16x4xf32>
    %c1_12 = arith.constant 1 : index
    %c1_13 = arith.constant 1 : index
    %c8 = arith.constant 8 : index
    %7 = vector.load %arg7[%c1_12, %c1_13, %c8] : memref<18x18x13xf32, #tpu.memory_space<vmem>>, vector<16x16x4xf32>
    tpu.vector_store %arg7[%c1_12, %c1_13, %c8], %6 {strides = array<i32>} : memref<18x18x13xf32, #tpu.memory_space<vmem>>, vector<16x16x4xf32>,
    %cst_14 = arith.constant 1.000000e+00 : f32
    %8 = vector.broadcast %cst_14 : f32 to vector<16x16x1xf32>
    %c1_15 = arith.constant 1 : index
    %c1_16 = arith.constant 1 : index
    %c12 = arith.constant 12 : index
    %9 = vector.load %arg7[%c1_15, %c1_16, %c12] : memref<18x18x13xf32, #tpu.memory_space<vmem>>, vector<16x16x1xf32>
    tpu.vector_store %arg7[%c1_15, %c1_16, %c12], %8 {strides = array<i32>} : memref<18x18x13xf32, #tpu.memory_space<vmem>>, vector<16x16x1xf32>,
    %c0_17 = arith.constant 0 : index
    %c0_18 = arith.constant 0 : index
    %c0_19 = arith.constant 0 : index
    %10 = vector.load %arg7[%c0_17, %c0_18, %c0_19] : memref<18x18x13xf32, #tpu.memory_space<vmem>>, vector<16x16x13xf32>
    %c0_20 = arith.constant 0 : index
    %c0_21 = arith.constant 0 : index
    %c0_22 = arith.constant 0 : index
    %11 = vector.load %arg8[%c0_20, %c0_21, %c0_22] : memref<16x16x117xf32, #tpu.memory_space<vmem>>, vector<16x16x13xf32>
    tpu.vector_store %arg8[%c0_20, %c0_21, %c0_22], %10 {strides = array<i32>} : memref<16x16x117xf32, #tpu.memory_space<vmem>>, vector<16x16x13xf32>,
    %c0_23 = arith.constant 0 : index
    %c1_24 = arith.constant 1 : index
    %c0_25 = arith.constant 0 : index
    %12 = vector.load %arg7[%c0_23, %c1_24, %c0_25] : memref<18x18x13xf32, #tpu.memory_space<vmem>>, vector<16x16x13xf32>
    %c0_26 = arith.constant 0 : index
    %c0_27 = arith.constant 0 : index
    %c13 = arith.constant 13 : index
    %13 = vector.load %arg8[%c0_26, %c0_27, %c13] : memref<16x16x117xf32, #tpu.memory_space<vmem>>, vector<16x16x13xf32>
    tpu.vector_store %arg8[%c0_26, %c0_27, %c13], %12 {strides = array<i32>} : memref<16x16x117xf32, #tpu.memory_space<vmem>>, vector<16x16x13xf32>,
    %c0_28 = arith.constant 0 : index
    %c2 = arith.constant 2 : index
    %c0_29 = arith.constant 0 : index
    %14 = vector.load %arg7[%c0_28, %c2, %c0_29] : memref<18x18x13xf32, #tpu.memory_space<vmem>>, vector<16x16x13xf32>
    %c0_30 = arith.constant 0 : index
    %c0_31 = arith.constant 0 : index
    %c26 = arith.constant 26 : index
    %15 = vector.load %arg8[%c0_30, %c0_31, %c26] : memref<16x16x117xf32, #tpu.memory_space<vmem>>, vector<16x16x13xf32>
    tpu.vector_store %arg8[%c0_30, %c0_31, %c26], %14 {strides = array<i32>} : memref<16x16x117xf32, #tpu.memory_space<vmem>>, vector<16x16x13xf32>,
    %c1_32 = arith.constant 1 : index
    %c0_33 = arith.constant 0 : index
    %c0_34 = arith.constant 0 : index
    %16 = vector.load %arg7[%c1_32, %c0_33, %c0_34] : memref<18x18x13xf32, #tpu.memory_space<vmem>>, vector<16x16x13xf32>
    %c0_35 = arith.constant 0 : index
    %c0_36 = arith.constant 0 : index
    %c39 = arith.constant 39 : index
    %17 = vector.load %arg8[%c0_35, %c0_36, %c39] : memref<16x16x117xf32, #tpu.memory_space<vmem>>, vector<16x16x13xf32>
    tpu.vector_store %arg8[%c0_35, %c0_36, %c39], %16 {strides = array<i32>} : memref<16x16x117xf32, #tpu.memory_space<vmem>>, vector<16x16x13xf32>,
    %c1_37 = arith.constant 1 : index
    %c1_38 = arith.constant 1 : index
    %c0_39 = arith.constant 0 : index
    %18 = vector.load %arg7[%c1_37, %c1_38, %c0_39] : memref<18x18x13xf32, #tpu.memory_space<vmem>>, vector<16x16x13xf32>
    %c0_40 = arith.constant 0 : index
    %c0_41 = arith.constant 0 : index
    %c52 = arith.constant 52 : index
    %19 = vector.load %arg8[%c0_40, %c0_41, %c52] : memref<16x16x117xf32, #tpu.memory_space<vmem>>, vector<16x16x13xf32>
    tpu.vector_store %arg8[%c0_40, %c0_41, %c52], %18 {strides = array<i32>} : memref<16x16x117xf32, #tpu.memory_space<vmem>>, vector<16x16x13xf32>,
    %c1_42 = arith.constant 1 : index
    %c2_43 = arith.constant 2 : index
    %c0_44 = arith.constant 0 : index
    %20 = vector.load %arg7[%c1_42, %c2_43, %c0_44] : memref<18x18x13xf32, #tpu.memory_space<vmem>>, vector<16x16x13xf32>
    %c0_45 = arith.constant 0 : index
    %c0_46 = arith.constant 0 : index
    %c65 = arith.constant 65 : index
    %21 = vector.load %arg8[%c0_45, %c0_46, %c65] : memref<16x16x117xf32, #tpu.memory_space<vmem>>, vector<16x16x13xf32>
    tpu.vector_store %arg8[%c0_45, %c0_46, %c65], %20 {strides = array<i32>} : memref<16x16x117xf32, #tpu.memory_space<vmem>>, vector<16x16x13xf32>,
    %c2_47 = arith.constant 2 : index
    %c0_48 = arith.constant 0 : index
    %c0_49 = arith.constant 0 : index
    %22 = vector.load %arg7[%c2_47, %c0_48, %c0_49] : memref<18x18x13xf32, #tpu.memory_space<vmem>>, vector<16x16x13xf32>
    %c0_50 = arith.constant 0 : index
    %c0_51 = arith.constant 0 : index
    %c78 = arith.constant 78 : index
    %23 = vector.load %arg8[%c0_50, %c0_51, %c78] : memref<16x16x117xf32, #tpu.memory_space<vmem>>, vector<16x16x13xf32>
    tpu.vector_store %arg8[%c0_50, %c0_51, %c78], %22 {strides = array<i32>} : memref<16x16x117xf32, #tpu.memory_space<vmem>>, vector<16x16x13xf32>,
    %c2_52 = arith.constant 2 : index
    %c1_53 = arith.constant 1 : index
    %c0_54 = arith.constant 0 : index
    %24 = vector.load %arg7[%c2_52, %c1_53, %c0_54] : memref<18x18x13xf32, #tpu.memory_space<vmem>>, vector<16x16x13xf32>
    %c0_55 = arith.constant 0 : index
    %c0_56 = arith.constant 0 : index
    %c91 = arith.constant 91 : index
    %25 = vector.load %arg8[%c0_55, %c0_56, %c91] : memref<16x16x117xf32, #tpu.memory_space<vmem>>, vector<16x16x13xf32>
    tpu.vector_store %arg8[%c0_55, %c0_56, %c91], %24 {strides = array<i32>} : memref<16x16x117xf32, #tpu.memory_space<vmem>>, vector<16x16x13xf32>,
    %c2_57 = arith.constant 2 : index
    %c2_58 = arith.constant 2 : index
    %c0_59 = arith.constant 0 : index
    %26 = vector.load %arg7[%c2_57, %c2_58, %c0_59] : memref<18x18x13xf32, #tpu.memory_space<vmem>>, vector<16x16x13xf32>
    %c0_60 = arith.constant 0 : index
    %c0_61 = arith.constant 0 : index
    %c104 = arith.constant 104 : index
    %27 = vector.load %arg8[%c0_60, %c0_61, %c104] : memref<16x16x117xf32, #tpu.memory_space<vmem>>, vector<16x16x13xf32>
    tpu.vector_store %arg8[%c0_60, %c0_61, %c104], %26 {strides = array<i32>} : memref<16x16x117xf32, #tpu.memory_space<vmem>>, vector<16x16x13xf32>,
    %c0_62 = arith.constant 0 : index
    %c0_63 = arith.constant 0 : index
    %c0_64 = arith.constant 0 : index
    %28 = vector.load %arg8[%c0_62, %c0_63, %c0_64] : memref<16x16x117xf32, #tpu.memory_space<vmem>>, vector<16x16x117xf32>
    %29 = vector.shape_cast %28 : vector<16x16x117xf32> to vector<256x117xf32>
    %c0_65 = arith.constant 0 : index
    %c0_66 = arith.constant 0 : index
    %30 = vector.load %arg3[%c0_65, %c0_66] : memref<117x128xf32, #tpu.memory_space<vmem>>, vector<117x128xf32>
    %cst_67 = arith.constant dense<0.000000e+00> : vector<256x128xf32>
    %31 = tpu.matmul %29, %30, %cst_67 {dimension_numbers = #tpu.dot_dimension_numbers<[1], [0], [0], [1], [0, 0, 1, 1], [], []>} : vector<256x117xf32>, vector<117x128xf32>, vector<256x128xf32> -> vector<256x128xf32>
    %c0_68 = arith.constant 0 : index
    %c0_69 = arith.constant 0 : index
    %32 = vector.load %arg4[%c0_68, %c0_69] : memref<1x128xf32, #tpu.memory_space<vmem>>, vector<1x128xf32>
    %33 = vector.broadcast %32 : vector<1x128xf32> to vector<256x128xf32>
    %34 = arith.addf %31, %33 : vector<256x128xf32>
    %cst_70 = arith.constant 0.000000e+00 : f32
    %35 = vector.broadcast %cst_70 : f32 to vector<256x128xf32>
    %36 = arith.maximumf %34, %35 : vector<256x128xf32>
    %c0_71 = arith.constant 0 : index
    %c0_72 = arith.constant 0 : index
    %c0_73 = arith.constant 0 : index
    %37 = vector.load %arg5[%c0_71, %c0_72, %c0_73] : memref<1x256x128xf32, #tpu.memory_space<vmem>>, vector<1x256x128xf32>
    %38 = vector.shape_cast %37 : vector<1x256x128xf32> to vector<256x128xf32>
    %39 = vector.shape_cast %36 : vector<256x128xf32> to vector<1x256x128xf32>
    tpu.vector_store %arg5[%c0_71, %c0_72, %c0_73], %39 {strides = array<i32>} : memref<1x256x128xf32, #tpu.memory_space<vmem>>, vector<1x256x128xf32>,
    %cst_74 = arith.constant dense<0.000000e+00> : vector<128xf32>
    %40 = vector.multi_reduction <add>, %36, %cst_74 [0] : vector<256x128xf32> to vector<128xf32>
    %41 = vector.shape_cast %40 : vector<128xf32> to vector<1x128xf32>
    %42 = arith.mulf %36, %36 : vector<256x128xf32>
    %cst_75 = arith.constant dense<0.000000e+00> : vector<128xf32>
    %43 = vector.multi_reduction <add>, %42, %cst_75 [0] : vector<256x128xf32> to vector<128xf32>
    %44 = vector.shape_cast %43 : vector<128xf32> to vector<1x128xf32>
    %45 = tpu.concatenate %41, %44 in 0 : vector<1x128xf32>, vector<1x128xf32> -> vector<2x128xf32>
    %c0_76 = arith.constant 0 : index
    %c0_77 = arith.constant 0 : index
    %c0_78 = arith.constant 0 : index
    %46 = vector.load %arg6[%c0_76, %c0_77, %c0_78] : memref<1x2x128xf32, #tpu.memory_space<vmem>>, vector<1x2x128xf32>
    %47 = vector.shape_cast %46 : vector<1x2x128xf32> to vector<2x128xf32>
    %48 = vector.shape_cast %45 : vector<2x128xf32> to vector<1x2x128xf32>
    tpu.vector_store %arg6[%c0_76, %c0_77, %c0_78], %48 {strides = array<i32>} : memref<1x2x128xf32, #tpu.memory_space<vmem>>, vector<1x2x128xf32>,
    return
  }
  func.func @transform_0(%arg0: i32) -> (i32, i32, i32, i32) {
    %c0_i32 = arith.constant 0 : i32
    %c0_i32_0 = arith.constant 0 : i32
    %c0_i32_1 = arith.constant 0 : i32
    %c0_i32_2 = arith.constant 0 : i32
    return %arg0, %c0_i32, %c0_i32_0, %c0_i32_1 : i32, i32, i32, i32
  }
  func.func @transform_1(%arg0: i32) -> (i32, i32, i32, i32) {
    %c0_i32 = arith.constant 0 : i32
    %c0_i32_0 = arith.constant 0 : i32
    %c0_i32_1 = arith.constant 0 : i32
    %c0_i32_2 = arith.constant 0 : i32
    return %arg0, %c0_i32, %c0_i32_0, %c0_i32_1 : i32, i32, i32, i32
  }
  func.func @transform_2(%arg0: i32) -> (i32, i32) {
    %c0_i32 = arith.constant 0 : i32
    %c0_i32_0 = arith.constant 0 : i32
    %c0_i32_1 = arith.constant 0 : i32
    return %c0_i32, %c0_i32_0 : i32, i32
  }
  func.func @transform_3(%arg0: i32) -> (i32, i32) {
    %c0_i32 = arith.constant 0 : i32
    %c0_i32_0 = arith.constant 0 : i32
    %c0_i32_1 = arith.constant 0 : i32
    return %c0_i32, %c0_i32_0 : i32, i32
  }
  func.func @transform_4(%arg0: i32) -> (i32, i32, i32) {
    %c0_i32 = arith.constant 0 : i32
    %c0_i32_0 = arith.constant 0 : i32
    %c0_i32_1 = arith.constant 0 : i32
    return %arg0, %c0_i32, %c0_i32_0 : i32, i32, i32
  }
  func.func @transform_5(%arg0: i32) -> (i32, i32, i32) {
    %c0_i32 = arith.constant 0 : i32
    %c0_i32_0 = arith.constant 0 : i32
    %c0_i32_1 = arith.constant 0 : i32
    return %arg0, %c0_i32, %c0_i32_0 : i32, i32, i32
  }
}

module attributes {stable_mosaic.version = 11 : i64} {
  func.func @_conv2_kernel(%arg0: i32, %arg1: memref<1x16x16x128xf32, #tpu.memory_space<vmem>>, %arg2: memref<45x128xf32, #tpu.memory_space<vmem>>, %arg3: memref<1x128xf32, #tpu.memory_space<vmem>>, %arg4: memref<1x256x128xf32, #tpu.memory_space<vmem>>, %arg5: memref<1x2x128xf32, #tpu.memory_space<vmem>>, %arg6: memref<18x18x5xf32, #tpu.memory_space<vmem>>, %arg7: memref<16x16x45xf32, #tpu.memory_space<vmem>>) attributes {dimension_semantics = [#tpu.dimension_semantics<parallel>], iteration_bounds = array<i64: 2>, scalar_prefetch = 0 : i64, scratch_operands = 2 : i64, tpu.core_type = #tpu.core_type<tc>, window_params = [{transform_indices = @transform_0, window_bounds = array<i64: 1, 16, 16, 128>}, {pipeline_mode = #tpu.pipeline_mode<synchronous>, transform_indices = @transform_1, window_bounds = array<i64: 45, 128>}, {pipeline_mode = #tpu.pipeline_mode<synchronous>, transform_indices = @transform_2, window_bounds = array<i64: 1, 128>}, {transform_indices = @transform_3, window_bounds = array<i64: 1, 256, 128>}, {transform_indices = @transform_4, window_bounds = array<i64: 1, 2, 128>}]} {
    %cst = arith.constant 0.000000e+00 : f32
    %0 = vector.broadcast %cst : f32 to vector<18x18x5xf32>
    %c0 = arith.constant 0 : index
    %c0_0 = arith.constant 0 : index
    %c0_1 = arith.constant 0 : index
    %1 = vector.load %arg6[%c0, %c0_0, %c0_1] : memref<18x18x5xf32, #tpu.memory_space<vmem>>, vector<18x18x5xf32>
    tpu.vector_store %arg6[%c0, %c0_0, %c0_1], %0 {strides = array<i32>} : memref<18x18x5xf32, #tpu.memory_space<vmem>>, vector<18x18x5xf32>,
    %c0_2 = arith.constant 0 : index
    %c0_3 = arith.constant 0 : index
    %c0_4 = arith.constant 0 : index
    %c0_5 = arith.constant 0 : index
    %2 = vector.load %arg1[%c0_2, %c0_3, %c0_4, %c0_5] : memref<1x16x16x128xf32, #tpu.memory_space<vmem>>, vector<1x16x16x4xf32>
    %3 = vector.shape_cast %2 : vector<1x16x16x4xf32> to vector<16x16x4xf32>
    %c1 = arith.constant 1 : index
    %c1_6 = arith.constant 1 : index
    %c0_7 = arith.constant 0 : index
    %4 = vector.load %arg6[%c1, %c1_6, %c0_7] : memref<18x18x5xf32, #tpu.memory_space<vmem>>, vector<16x16x4xf32>
    tpu.vector_store %arg6[%c1, %c1_6, %c0_7], %3 {strides = array<i32>} : memref<18x18x5xf32, #tpu.memory_space<vmem>>, vector<16x16x4xf32>,
    %cst_8 = arith.constant 1.000000e+00 : f32
    %5 = vector.broadcast %cst_8 : f32 to vector<16x16x1xf32>
    %c1_9 = arith.constant 1 : index
    %c1_10 = arith.constant 1 : index
    %c4 = arith.constant 4 : index
    %6 = vector.load %arg6[%c1_9, %c1_10, %c4] : memref<18x18x5xf32, #tpu.memory_space<vmem>>, vector<16x16x1xf32>
    tpu.vector_store %arg6[%c1_9, %c1_10, %c4], %5 {strides = array<i32>} : memref<18x18x5xf32, #tpu.memory_space<vmem>>, vector<16x16x1xf32>,
    %c0_11 = arith.constant 0 : index
    %c0_12 = arith.constant 0 : index
    %c0_13 = arith.constant 0 : index
    %7 = vector.load %arg6[%c0_11, %c0_12, %c0_13] : memref<18x18x5xf32, #tpu.memory_space<vmem>>, vector<16x16x5xf32>
    %c0_14 = arith.constant 0 : index
    %c0_15 = arith.constant 0 : index
    %c0_16 = arith.constant 0 : index
    %8 = vector.load %arg7[%c0_14, %c0_15, %c0_16] : memref<16x16x45xf32, #tpu.memory_space<vmem>>, vector<16x16x5xf32>
    tpu.vector_store %arg7[%c0_14, %c0_15, %c0_16], %7 {strides = array<i32>} : memref<16x16x45xf32, #tpu.memory_space<vmem>>, vector<16x16x5xf32>,
    %c0_17 = arith.constant 0 : index
    %c1_18 = arith.constant 1 : index
    %c0_19 = arith.constant 0 : index
    %9 = vector.load %arg6[%c0_17, %c1_18, %c0_19] : memref<18x18x5xf32, #tpu.memory_space<vmem>>, vector<16x16x5xf32>
    %c0_20 = arith.constant 0 : index
    %c0_21 = arith.constant 0 : index
    %c5 = arith.constant 5 : index
    %10 = vector.load %arg7[%c0_20, %c0_21, %c5] : memref<16x16x45xf32, #tpu.memory_space<vmem>>, vector<16x16x5xf32>
    tpu.vector_store %arg7[%c0_20, %c0_21, %c5], %9 {strides = array<i32>} : memref<16x16x45xf32, #tpu.memory_space<vmem>>, vector<16x16x5xf32>,
    %c0_22 = arith.constant 0 : index
    %c2 = arith.constant 2 : index
    %c0_23 = arith.constant 0 : index
    %11 = vector.load %arg6[%c0_22, %c2, %c0_23] : memref<18x18x5xf32, #tpu.memory_space<vmem>>, vector<16x16x5xf32>
    %c0_24 = arith.constant 0 : index
    %c0_25 = arith.constant 0 : index
    %c10 = arith.constant 10 : index
    %12 = vector.load %arg7[%c0_24, %c0_25, %c10] : memref<16x16x45xf32, #tpu.memory_space<vmem>>, vector<16x16x5xf32>
    tpu.vector_store %arg7[%c0_24, %c0_25, %c10], %11 {strides = array<i32>} : memref<16x16x45xf32, #tpu.memory_space<vmem>>, vector<16x16x5xf32>,
    %c1_26 = arith.constant 1 : index
    %c0_27 = arith.constant 0 : index
    %c0_28 = arith.constant 0 : index
    %13 = vector.load %arg6[%c1_26, %c0_27, %c0_28] : memref<18x18x5xf32, #tpu.memory_space<vmem>>, vector<16x16x5xf32>
    %c0_29 = arith.constant 0 : index
    %c0_30 = arith.constant 0 : index
    %c15 = arith.constant 15 : index
    %14 = vector.load %arg7[%c0_29, %c0_30, %c15] : memref<16x16x45xf32, #tpu.memory_space<vmem>>, vector<16x16x5xf32>
    tpu.vector_store %arg7[%c0_29, %c0_30, %c15], %13 {strides = array<i32>} : memref<16x16x45xf32, #tpu.memory_space<vmem>>, vector<16x16x5xf32>,
    %c1_31 = arith.constant 1 : index
    %c1_32 = arith.constant 1 : index
    %c0_33 = arith.constant 0 : index
    %15 = vector.load %arg6[%c1_31, %c1_32, %c0_33] : memref<18x18x5xf32, #tpu.memory_space<vmem>>, vector<16x16x5xf32>
    %c0_34 = arith.constant 0 : index
    %c0_35 = arith.constant 0 : index
    %c20 = arith.constant 20 : index
    %16 = vector.load %arg7[%c0_34, %c0_35, %c20] : memref<16x16x45xf32, #tpu.memory_space<vmem>>, vector<16x16x5xf32>
    tpu.vector_store %arg7[%c0_34, %c0_35, %c20], %15 {strides = array<i32>} : memref<16x16x45xf32, #tpu.memory_space<vmem>>, vector<16x16x5xf32>,
    %c1_36 = arith.constant 1 : index
    %c2_37 = arith.constant 2 : index
    %c0_38 = arith.constant 0 : index
    %17 = vector.load %arg6[%c1_36, %c2_37, %c0_38] : memref<18x18x5xf32, #tpu.memory_space<vmem>>, vector<16x16x5xf32>
    %c0_39 = arith.constant 0 : index
    %c0_40 = arith.constant 0 : index
    %c25 = arith.constant 25 : index
    %18 = vector.load %arg7[%c0_39, %c0_40, %c25] : memref<16x16x45xf32, #tpu.memory_space<vmem>>, vector<16x16x5xf32>
    tpu.vector_store %arg7[%c0_39, %c0_40, %c25], %17 {strides = array<i32>} : memref<16x16x45xf32, #tpu.memory_space<vmem>>, vector<16x16x5xf32>,
    %c2_41 = arith.constant 2 : index
    %c0_42 = arith.constant 0 : index
    %c0_43 = arith.constant 0 : index
    %19 = vector.load %arg6[%c2_41, %c0_42, %c0_43] : memref<18x18x5xf32, #tpu.memory_space<vmem>>, vector<16x16x5xf32>
    %c0_44 = arith.constant 0 : index
    %c0_45 = arith.constant 0 : index
    %c30 = arith.constant 30 : index
    %20 = vector.load %arg7[%c0_44, %c0_45, %c30] : memref<16x16x45xf32, #tpu.memory_space<vmem>>, vector<16x16x5xf32>
    tpu.vector_store %arg7[%c0_44, %c0_45, %c30], %19 {strides = array<i32>} : memref<16x16x45xf32, #tpu.memory_space<vmem>>, vector<16x16x5xf32>,
    %c2_46 = arith.constant 2 : index
    %c1_47 = arith.constant 1 : index
    %c0_48 = arith.constant 0 : index
    %21 = vector.load %arg6[%c2_46, %c1_47, %c0_48] : memref<18x18x5xf32, #tpu.memory_space<vmem>>, vector<16x16x5xf32>
    %c0_49 = arith.constant 0 : index
    %c0_50 = arith.constant 0 : index
    %c35 = arith.constant 35 : index
    %22 = vector.load %arg7[%c0_49, %c0_50, %c35] : memref<16x16x45xf32, #tpu.memory_space<vmem>>, vector<16x16x5xf32>
    tpu.vector_store %arg7[%c0_49, %c0_50, %c35], %21 {strides = array<i32>} : memref<16x16x45xf32, #tpu.memory_space<vmem>>, vector<16x16x5xf32>,
    %c2_51 = arith.constant 2 : index
    %c2_52 = arith.constant 2 : index
    %c0_53 = arith.constant 0 : index
    %23 = vector.load %arg6[%c2_51, %c2_52, %c0_53] : memref<18x18x5xf32, #tpu.memory_space<vmem>>, vector<16x16x5xf32>
    %c0_54 = arith.constant 0 : index
    %c0_55 = arith.constant 0 : index
    %c40 = arith.constant 40 : index
    %24 = vector.load %arg7[%c0_54, %c0_55, %c40] : memref<16x16x45xf32, #tpu.memory_space<vmem>>, vector<16x16x5xf32>
    tpu.vector_store %arg7[%c0_54, %c0_55, %c40], %23 {strides = array<i32>} : memref<16x16x45xf32, #tpu.memory_space<vmem>>, vector<16x16x5xf32>,
    %c0_56 = arith.constant 0 : index
    %c0_57 = arith.constant 0 : index
    %c0_58 = arith.constant 0 : index
    %25 = vector.load %arg7[%c0_56, %c0_57, %c0_58] : memref<16x16x45xf32, #tpu.memory_space<vmem>>, vector<16x16x45xf32>
    %26 = vector.shape_cast %25 : vector<16x16x45xf32> to vector<256x45xf32>
    %c0_59 = arith.constant 0 : index
    %c0_60 = arith.constant 0 : index
    %27 = vector.load %arg2[%c0_59, %c0_60] : memref<45x128xf32, #tpu.memory_space<vmem>>, vector<45x128xf32>
    %cst_61 = arith.constant dense<0.000000e+00> : vector<256x128xf32>
    %28 = tpu.matmul %26, %27, %cst_61 {dimension_numbers = #tpu.dot_dimension_numbers<[1], [0], [0], [1], [0, 0, 1, 1], [], []>} : vector<256x45xf32>, vector<45x128xf32>, vector<256x128xf32> -> vector<256x128xf32>
    %c0_62 = arith.constant 0 : index
    %c0_63 = arith.constant 0 : index
    %29 = vector.load %arg3[%c0_62, %c0_63] : memref<1x128xf32, #tpu.memory_space<vmem>>, vector<1x128xf32>
    %30 = vector.broadcast %29 : vector<1x128xf32> to vector<256x128xf32>
    %31 = arith.addf %28, %30 : vector<256x128xf32>
    %cst_64 = arith.constant 0.000000e+00 : f32
    %32 = vector.broadcast %cst_64 : f32 to vector<256x128xf32>
    %33 = arith.maximumf %31, %32 : vector<256x128xf32>
    %c0_65 = arith.constant 0 : index
    %c0_66 = arith.constant 0 : index
    %c0_67 = arith.constant 0 : index
    %34 = vector.load %arg4[%c0_65, %c0_66, %c0_67] : memref<1x256x128xf32, #tpu.memory_space<vmem>>, vector<1x256x128xf32>
    %35 = vector.shape_cast %34 : vector<1x256x128xf32> to vector<256x128xf32>
    %36 = vector.shape_cast %33 : vector<256x128xf32> to vector<1x256x128xf32>
    tpu.vector_store %arg4[%c0_65, %c0_66, %c0_67], %36 {strides = array<i32>} : memref<1x256x128xf32, #tpu.memory_space<vmem>>, vector<1x256x128xf32>,
    %cst_68 = arith.constant dense<0.000000e+00> : vector<128xf32>
    %37 = vector.multi_reduction <add>, %33, %cst_68 [0] : vector<256x128xf32> to vector<128xf32>
    %38 = vector.shape_cast %37 : vector<128xf32> to vector<1x128xf32>
    %39 = arith.mulf %33, %33 : vector<256x128xf32>
    %cst_69 = arith.constant dense<0.000000e+00> : vector<128xf32>
    %40 = vector.multi_reduction <add>, %39, %cst_69 [0] : vector<256x128xf32> to vector<128xf32>
    %41 = vector.shape_cast %40 : vector<128xf32> to vector<1x128xf32>
    %42 = tpu.concatenate %38, %41 in 0 : vector<1x128xf32>, vector<1x128xf32> -> vector<2x128xf32>
    %c0_70 = arith.constant 0 : index
    %c0_71 = arith.constant 0 : index
    %c0_72 = arith.constant 0 : index
    %43 = vector.load %arg5[%c0_70, %c0_71, %c0_72] : memref<1x2x128xf32, #tpu.memory_space<vmem>>, vector<1x2x128xf32>
    %44 = vector.shape_cast %43 : vector<1x2x128xf32> to vector<2x128xf32>
    %45 = vector.shape_cast %42 : vector<2x128xf32> to vector<1x2x128xf32>
    tpu.vector_store %arg5[%c0_70, %c0_71, %c0_72], %45 {strides = array<i32>} : memref<1x2x128xf32, #tpu.memory_space<vmem>>, vector<1x2x128xf32>,
    return
  }
  func.func @transform_0(%arg0: i32) -> (i32, i32, i32, i32) {
    %c0_i32 = arith.constant 0 : i32
    %c0_i32_0 = arith.constant 0 : i32
    %c0_i32_1 = arith.constant 0 : i32
    %c0_i32_2 = arith.constant 0 : i32
    return %arg0, %c0_i32, %c0_i32_0, %c0_i32_1 : i32, i32, i32, i32
  }
  func.func @transform_1(%arg0: i32) -> (i32, i32) {
    %c0_i32 = arith.constant 0 : i32
    %c0_i32_0 = arith.constant 0 : i32
    %c0_i32_1 = arith.constant 0 : i32
    return %c0_i32, %c0_i32_0 : i32, i32
  }
  func.func @transform_2(%arg0: i32) -> (i32, i32) {
    %c0_i32 = arith.constant 0 : i32
    %c0_i32_0 = arith.constant 0 : i32
    %c0_i32_1 = arith.constant 0 : i32
    return %c0_i32, %c0_i32_0 : i32, i32
  }
  func.func @transform_3(%arg0: i32) -> (i32, i32, i32) {
    %c0_i32 = arith.constant 0 : i32
    %c0_i32_0 = arith.constant 0 : i32
    %c0_i32_1 = arith.constant 0 : i32
    return %arg0, %c0_i32, %c0_i32_0 : i32, i32, i32
  }
  func.func @transform_4(%arg0: i32) -> (i32, i32, i32) {
    %c0_i32 = arith.constant 0 : i32
    %c0_i32_0 = arith.constant 0 : i32
    %c0_i32_1 = arith.constant 0 : i32
    return %arg0, %c0_i32, %c0_i32_0 : i32, i32, i32
  }
}

</mosaic_0001>

<llo_original>
// kernel: unet_block_up_forward.2
$region0: #{unet_block_up_forward.2}
  #allocation0 [shape = 'u32[]', space=smem, size = 0x4, offset = 0x4, fixed_abs, tag = 'smem constant byte address 0x4 - core index']
  #allocation1 [shape = 'u32[144,128]{1,0:T(1,128)}', space=vmem, size = 0x12000, scoped, tag = 'internal scratch']
  #allocation2 [shape = 'f32[18,18,13]{2,1,0:T(8,128)}', space=vmem, size = 0x36000, scoped, tag = 'scratch operand']
  #allocation3 [shape = 'f32[16,16,117]{2,1,0:T(8,128)}', space=vmem, size = 0x20000, scoped, tag = 'scratch operand']
  %s0 = inlined_call_operand.vmem [shape: f32[2,16,16,8], index: 0, kind: input, shape index: {}]
  %s1 = inlined_call_operand.vmem [shape: f32[2,16,16,4], index: 1, kind: input, shape index: {}]
  %s2 = inlined_call_operand.vmem [shape: f32[117,128], index: 2, kind: input, shape index: {}]
  %s3 = inlined_call_operand.vmem [shape: f32[1,128], index: 3, kind: input, shape index: {}]
  %s4 = inlined_call_operand.vmem [shape: f32[2,256,128], index: 4, kind: output, shape index: {0}]
  %s5 = inlined_call_operand.vmem [shape: f32[2,2,128], index: 5, kind: output, shape index: {1}]
  %6 = xla_tuple %s4, %s5
  %s7 = sld [smem:[#allocation0]]
  $region57: #{unet_block_up_forward.2} parent=0
    _
  %s9 = ssub.s32 1, %s7
  %s10 = scalar_select 0, %s9, %s7
  loop: start=0, step=1, limit=4
  $region2: #{unet_block_up_forward.2} parent=0 // loop_pre_header
    _
  $region3: #{unet_block_up_forward.2} parent=0 // loop_header
    %s12 = sphi 0, %s16
    %p13 = scmp.ge.s32.totalorder %s12, 4
    %s22 = sphi 0, %s24
    %s25 = sphi 0, %s22
    %s26 = sphi 0, %s25
    %s42 = sphi 0, %s26
    %s48 = sphi 0, %s50
    %s51 = sphi 0, %s48
    %s52 = sphi 0, %s51
    %s68 = sphi 0, %s52
    %s72 = sphi 0, %s72
    %s74 = sphi 0, %s72
    %s75 = sphi 0, %s74
    %s89 = sphi 0, %s75
    %s93 = sphi 0, %s93
    %s95 = sphi 0, %s93
    %s96 = sphi 0, %s95
    %s110 = sphi 0, %s96
    %s116 = sphi 0, %s118
    %s119 = sphi 0, %s116
    %s120 = sphi 0, %s119
    %s136 = sphi 0, %s120
    %s142 = sphi 0, %s144
    %s145 = sphi 0, %s142
    %s146 = sphi 0, %s145
    %s162 = sphi 0, %s146
  $region4: #{unet_block_up_forward.2} parent=0 // loop_header_branch
    %15 = sbr.rel (%p13) target = $region8
  $region5: #{unet_block_up_forward.2} parent=0 // loop_body
    %s17 = ssub.s32 %s12, 1
    %s18 = ssub.s32 %s12, 2
    %s19 = sadd.s32 %s12, 1
    %s20 = ssub.s32 %s12, %s19
    %p21 = scmp.eq.s32.totalorder %s20, 0
    %s23 = sadd.s32 %s22, 1
    %s24 = scalar_select %p21, %s22, %s23
    %p27 = pneg %p21
    %p28 = scmp.eq.s32.totalorder %s12, 1
    %p29 = por %p27, %p28
    %p30 = scmp.ne.s32.totalorder %s22, %s25
    %p31 = scmp.eq.s32.totalorder %s12, 0
    %p32 = por %p30, %p31
    %p33 = scmp.ne.s32.totalorder %s22, %s25
    %p34 = scmp.eq.s32.totalorder %s17, 1
    %p35 = por %p33, %p34
    %p36 = scmp.ne.s32.totalorder %s25, %s26
    %p37 = scmp.eq.s32.totalorder %s17, 0
    %p38 = por %p36, %p37
    %p39 = scmp.ne.s32.totalorder %s25, %s26
    %p40 = scmp.eq.s32.totalorder %s18, 1
    %p41 = por %p39, %p40
    %p43 = scmp.ne.s32.totalorder %s26, %s42
    %p44 = scmp.eq.s32.totalorder %s18, 0
    %p45 = por %p43, %p44
    %s46 = ssub.s32 %s12, %s19
    %p47 = scmp.eq.s32.totalorder %s46, 0
    %s49 = sadd.s32 %s48, 1
    %s50 = scalar_select %p47, %s48, %s49
    %p53 = pneg %p47
    %p54 = scmp.eq.s32.totalorder %s12, 1
    %p55 = por %p53, %p54
    %p56 = scmp.ne.s32.totalorder %s48, %s51
    %p57 = scmp.eq.s32.totalorder %s12, 0
    %p58 = por %p56, %p57
    %p59 = scmp.ne.s32.totalorder %s48, %s51
    %p60 = scmp.eq.s32.totalorder %s17, 1
    %p61 = por %p59, %p60
    %p62 = scmp.ne.s32.totalorder %s51, %s52
    %p63 = scmp.eq.s32.totalorder %s17, 0
    %p64 = por %p62, %p63
    %p65 = scmp.ne.s32.totalorder %s51, %s52
    %p66 = scmp.eq.s32.totalorder %s18, 1
    %p67 = por %p65, %p66
    %p69 = scmp.ne.s32.totalorder %s52, %s68
    %p70 = scmp.eq.s32.totalorder %s18, 0
    %p71 = por %p69, %p70
    %s73 = sadd.s32 %s72, 1
    %p76 = scmp.eq.s32.totalorder %s12, 1
    %p77 = scmp.ne.s32.totalorder %s72, %s74
    %p78 = scmp.eq.s32.totalorder %s12, 0
    %p79 = por %p77, %p78
    %p80 = scmp.ne.s32.totalorder %s72, %s74
    %p81 = scmp.eq.s32.totalorder %s17, 1
    %p82 = por %p80, %p81
    %p83 = scmp.ne.s32.totalorder %s74, %s75
    %p84 = scmp.eq.s32.totalorder %s17, 0
    %p85 = por %p83, %p84
    %p86 = scmp.ne.s32.totalorder %s74, %s75
    %p87 = scmp.eq.s32.totalorder %s18, 1
    %p88 = por %p86, %p87
    %p90 = scmp.ne.s32.totalorder %s75, %s89
    %p91 = scmp.eq.s32.totalorder %s18, 0
    %p92 = por %p90, %p91
    %s94 = sadd.s32 %s93, 1
    %p97 = scmp.eq.s32.totalorder %s12, 1
    %p98 = scmp.ne.s32.totalorder %s93, %s95
    %p99 = scmp.eq.s32.totalorder %s12, 0
    %p100 = por %p98, %p99
    %p101 = scmp.ne.s32.totalorder %s93, %s95
    %p102 = scmp.eq.s32.totalorder %s17, 1
    %p103 = por %p101, %p102
    %p104 = scmp.ne.s32.totalorder %s95, %s96
    %p105 = scmp.eq.s32.totalorder %s17, 0
    %p106 = por %p104, %p105
    %p107 = scmp.ne.s32.totalorder %s95, %s96
    %p108 = scmp.eq.s32.totalorder %s18, 1
    %p109 = por %p107, %p108
    %p111 = scmp.ne.s32.totalorder %s96, %s110
    %p112 = scmp.eq.s32.totalorder %s18, 0
    %p113 = por %p111, %p112
    %s114 = ssub.s32 %s12, %s19
    %p115 = scmp.eq.s32.totalorder %s114, 0
    %s117 = sadd.s32 %s116, 1
    %s118 = scalar_select %p115, %s116, %s117
    %p121 = pneg %p115
    %p122 = scmp.eq.s32.totalorder %s12, 1
    %p123 = por %p121, %p122
    %p124 = scmp.ne.s32.totalorder %s116, %s119
    %p125 = scmp.eq.s32.totalorder %s12, 0
    %p126 = por %p124, %p125
    %p127 = scmp.ne.s32.totalorder %s116, %s119
    %p128 = scmp.eq.s32.totalorder %s17, 1
    %p129 = por %p127, %p128
    %p130 = scmp.ne.s32.totalorder %s119, %s120
    %p131 = scmp.eq.s32.totalorder %s17, 0
    %p132 = por %p130, %p131
    %p133 = scmp.ne.s32.totalorder %s119, %s120
    %p134 = scmp.eq.s32.totalorder %s18, 1
    %p135 = por %p133, %p134
    %p137 = scmp.ne.s32.totalorder %s120, %s136
    %p138 = scmp.eq.s32.totalorder %s18, 0
    %p139 = por %p137, %p138
    %s140 = ssub.s32 %s12, %s19
    %p141 = scmp.eq.s32.totalorder %s140, 0
    %s143 = sadd.s32 %s142, 1
    %s144 = scalar_select %p141, %s142, %s143
    %p147 = pneg %p141
    %p148 = scmp.eq.s32.totalorder %s12, 1
    %p149 = por %p147, %p148
    %p150 = scmp.ne.s32.totalorder %s142, %s145
    %p151 = scmp.eq.s32.totalorder %s12, 0
    %p152 = por %p150, %p151
    %p153 = scmp.ne.s32.totalorder %s142, %s145
    %p154 = scmp.eq.s32.totalorder %s17, 1
    %p155 = por %p153, %p154
    %p156 = scmp.ne.s32.totalorder %s145, %s146
    %p157 = scmp.eq.s32.totalorder %s17, 0
    %p158 = por %p156, %p157
    %p159 = scmp.ne.s32.totalorder %s145, %s146
    %p160 = scmp.eq.s32.totalorder %s18, 1
    %p161 = por %p159, %p160
    %p163 = scmp.ne.s32.totalorder %s146, %s162
    %p164 = scmp.eq.s32.totalorder %s18, 0
    %p165 = por %p163, %p164
    %p166 = scmp.le.s32.totalorder 1, %s12
    %p167 = scmp.lt.s32.totalorder %s12, 3
    %p168 = pnand %p166, %p167
    %p169 = pneg %p168
    // Predicated region
    $region9: #{unet_block_up_forward.2} parent=5 // pred_check
      _
    $region10: #{unet_block_up_forward.2} parent=5 // pred_check_branch
      %171 = sbr.rel (%p168) target = $region12
    $region11: #{unet_block_up_forward.2} parent=5 // pred_region
      %s172 = ssub.s32 %s12, 1
      // Predicated region
      $region13: #{unet_block_up_forward.2} parent=11 // pred_check
        %p173 = pneg %p85
      $region14: #{unet_block_up_forward.2} parent=11 // pred_check_branch
        %175 = sbr.rel (%p173) target = $region16
      $region15: #{unet_block_up_forward.2} parent=11 // pred_region
        _
      $region16: #{unet_block_up_forward.2} parent=11 // pred_fallthru
        _
      // Predicated region
      $region17: #{unet_block_up_forward.2} parent=11 // pred_check
        %p176 = pneg %p106
      $region18: #{unet_block_up_forward.2} parent=11 // pred_check_branch
        %178 = sbr.rel (%p176) target = $region20
      $region19: #{unet_block_up_forward.2} parent=11 // pred_region
        _
      $region20: #{unet_block_up_forward.2} parent=11 // pred_fallthru
        _
    $region12: #{unet_block_up_forward.2} parent=5 // pred_fallthru
      _
    %p179 = scmp.lt.s32.totalorder %s12, 2
    // Predicated region
    $region21: #{unet_block_up_forward.2} parent=5 // pred_check
      %p180 = pneg %p179
    $region22: #{unet_block_up_forward.2} parent=5 // pred_check_branch
      %182 = sbr.rel (%p180) target = $region24
    $region23: #{unet_block_up_forward.2} parent=5 // pred_region
      // Predicated region
      $region25: #{unet_block_up_forward.2} parent=23 // pred_check
        %p183 = pneg %p32
      $region26: #{unet_block_up_forward.2} parent=23 // pred_check_branch
        %185 = sbr.rel (%p183) target = $region28
      $region27: #{unet_block_up_forward.2} parent=23 // pred_region
        %p186 = scmp.lt.s32.totalorder %s12, 1
        %s187 = scalar_select %p186, %s12, 1
        %s188 = smul.addr %s187, 32
        %s189 = smul.addr %s188, 8
        %s190 = scalar_lea.vmem %s0, %s189
      $region28: #{unet_block_up_forward.2} parent=23 // pred_fallthru
        _
      // Predicated region
      $region29: #{unet_block_up_forward.2} parent=23 // pred_check
        %p191 = pneg %p58
      $region30: #{unet_block_up_forward.2} parent=23 // pred_check_branch
        %193 = sbr.rel (%p191) target = $region32
      $region31: #{unet_block_up_forward.2} parent=23 // pred_region
        %p194 = scmp.lt.s32.totalorder %s12, 1
        %s195 = scalar_select %p194, %s12, 1
        %s196 = smul.addr %s195, 32
        %s197 = smul.addr %s196, 8
        %s198 = scalar_lea.vmem %s1, %s197
      $region32: #{unet_block_up_forward.2} parent=23 // pred_fallthru
        _
    $region24: #{unet_block_up_forward.2} parent=5 // pred_fallthru
      _
    %p199 = scmp.le.s32.totalorder 1, %s12
    %p200 = scmp.lt.s32.totalorder %s12, 3
    %p201 = pnand %p199, %p200
    %p202 = pneg %p201
    // Predicated region
    $region33: #{unet_block_up_forward.2} parent=5 // pred_check
      _
    $region34: #{unet_block_up_forward.2} parent=5 // pred_check_branch
      %204 = sbr.rel (%p201) target = $region36
    $region35: #{unet_block_up_forward.2} parent=5 // pred_region
      %s205 = ssub.s32 %s12, 1
      %p206 = scmp.lt.s32.totalorder %s17, 1
      %s207 = scalar_select %p206, %s17, 1
      %s208 = smul.addr %s207, 32
      %s209 = smul.addr %s208, 8
      %s210 = scalar_lea.vmem %s0, %s209
      %p211 = pneg %p38
      %p212 = pneg %p35
      %p213 = scmp.lt.s32.totalorder %s17, 1
      %s214 = scalar_select %p213, %s17, 1
      %s215 = smul.addr %s214, 32
      %s216 = smul.addr %s215, 8
      %s217 = scalar_lea.vmem %s1, %s216
      %p218 = pneg %p64
      %p219 = pneg %p61
      %p220 = pneg %p85
      %p221 = pneg %p82
      %p222 = pneg %p106
      %p223 = pneg %p103
      %p224 = pneg %p132
      %p225 = pneg %p129
      %p226 = scmp.lt.s32.totalorder %s17, 1
      %s227 = scalar_select %p226, %s17, 1
      %s228 = smul.addr %s227, 32
      %s229 = smul.addr %s228, 8
      %s230 = scalar_lea.vmem %s4, %s229
      %p231 = pneg %p158
      %p232 = pneg %p155
      %p233 = scmp.lt.s32.totalorder %s17, 1
      %s234 = scalar_select %p233, %s17, 1
      %s235 = smul.addr %s234, 2
      %s236 = scalar_lea.vmem %s5, %s235
      %p237 = scmp.lt.s32.totalorder %s17, 1
      %s238 = scalar_select %p237, %s17, 1
      %s239 = smul.addr %s238, 32
      %s240 = smul.addr %s239, 8
      %s241 = scalar_lea.vmem %s0, %s240
      %p242 = scmp.lt.s32.totalorder %s17, 1
      %s243 = scalar_select %p242, %s17, 1
      %s244 = smul.addr %s243, 32
      %s245 = smul.addr %s244, 8
      %s246 = scalar_lea.vmem %s1, %s245
      %p247 = scmp.lt.s32.totalorder %s17, 1
      %s248 = scalar_select %p247, %s17, 1
      %s249 = smul.addr %s248, 32
      %s250 = smul.addr %s249, 8
      %s251 = scalar_lea.vmem %s4, %s250
      %p252 = scmp.lt.s32.totalorder %s17, 1
      %s253 = scalar_select %p252, %s17, 1
      %s254 = smul.addr %s253, 2
      %s255 = scalar_lea.vmem %s5, %s254
      %vm256 = vcmask 105472
      %257 = vst.msk [vmem:[#allocation2] sm:$0xff] %vm256, 0.0
      %258 = vst.msk [vmem:[#allocation2 + $0x8] sm:$0xff] %vm256, 0.0
      %vm259 = vcmask 99328
      %260 = vst.msk [vmem:[#allocation2 + $0x10] sm:$0x3] %vm259, 0.0
      %261 = vst.msk [vmem:[#allocation2 + $0x18] sm:$0xff] %vm256, 0.0
      %262 = vst.msk [vmem:[#allocation2 + $0x20] sm:$0xff] %vm256, 0.0
      %263 = vst.msk [vmem:[#allocation2 + $0x28] sm:$0x3] %vm259, 0.0
      %264 = vst.msk [vmem:[#allocation2 + $0x30] sm:$0xff] %vm256, 0.0
      %265 = vst.msk [vmem:[#allocation2 + $0x38] sm:$0xff] %vm256, 0.0
      %266 = vst.msk [vmem:[#allocation2 + $0x40] sm:$0x3] %vm259, 0.0
      %267 = vst.msk [vmem:[#allocation2 + $0x48] sm:$0xff] %vm256, 0.0
      %268 = vst.msk [vmem:[#allocation2 + $0x50] sm:$0xff] %vm256, 0.0
      %269 = vst.msk [vmem:[#allocation2 + $0x58] sm:$0x3] %vm259, 0.0
      %270 = vst.msk [vmem:[#allocation2 + $0x60] sm:$0xff] %vm256, 0.0
      %271 = vst.msk [vmem:[#allocation2 + $0x68] sm:$0xff] %vm256, 0.0
      %272 = vst.msk [vmem:[#allocation2 + $0x70] sm:$0x3] %vm259, 0.0
      %273 = vst.msk [vmem:[#allocation2 + $0x78] sm:$0xff] %vm256, 0.0
      %274 = vst.msk [vmem:[#allocation2 + $0x80] sm:$0xff] %vm256, 0.0
      %275 = vst.msk [vmem:[#allocation2 + $0x88] sm:$0x3] %vm259, 0.0
      %276 = vst.msk [vmem:[#allocation2 + $0x90] sm:$0xff] %vm256, 0.0
      %277 = vst.msk [vmem:[#allocation2 + $0x98] sm:$0xff] %vm256, 0.0
      %278 = vst.msk [vmem:[#allocation2 + $0xa0] sm:$0x3] %vm259, 0.0
      %279 = vst.msk [vmem:[#allocation2 + $0xa8] sm:$0xff] %vm256, 0.0
      %280 = vst.msk [vmem:[#allocation2 + $0xb0] sm:$0xff] %vm256, 0.0
      %281 = vst.msk [vmem:[#allocation2 + $0xb8] sm:$0x3] %vm259, 0.0
      %282 = vst.msk [vmem:[#allocation2 + $0xc0] sm:$0xff] %vm256, 0.0
      %283 = vst.msk [vmem:[#allocation2 + $0xc8] sm:$0xff] %vm256, 0.0
      %284 = vst.msk [vmem:[#allocation2 + $0xd0] sm:$0x3] %vm259, 0.0
      %285 = vst.msk [vmem:[#allocation2 + $0xd8] sm:$0xff] %vm256, 0.0
      %286 = vst.msk [vmem:[#allocation2 + $0xe0] sm:$0xff] %vm256, 0.0
      %287 = vst.msk [vmem:[#allocation2 + $0xe8] sm:$0x3] %vm259, 0.0
      %288 = vst.msk [vmem:[#allocation2 + $0xf0] sm:$0xff] %vm256, 0.0
      %289 = vst.msk [vmem:[#allocation2 + $0xf8] sm:$0xff] %vm256, 0.0
      %290 = vst.msk [vmem:[#allocation2 + $0x100] sm:$0x3] %vm259, 0.0
      %291 = vst.msk [vmem:[#allocation2 + $0x108] sm:$0xff] %vm256, 0.0
      %292 = vst.msk [vmem:[#allocation2 + $0x110] sm:$0xff] %vm256, 0.0
      %293 = vst.msk [vmem:[#allocation2 + $0x118] sm:$0x3] %vm259, 0.0
      %294 = vst.msk [vmem:[#allocation2 + $0x120] sm:$0xff] %vm256, 0.0
      %295 = vst.msk [vmem:[#allocation2 + $0x128] sm:$0xff] %vm256, 0.0
      %296 = vst.msk [vmem:[#allocation2 + $0x130] sm:$0x3] %vm259, 0.0
      %297 = vst.msk [vmem:[#allocation2 + $0x138] sm:$0xff] %vm256, 0.0
      %298 = vst.msk [vmem:[#allocation2 + $0x140] sm:$0xff] %vm256, 0.0
      %299 = vst.msk [vmem:[#allocation2 + $0x148] sm:$0x3] %vm259, 0.0
      %300 = vst.msk [vmem:[#allocation2 + $0x150] sm:$0xff] %vm256, 0.0
      %301 = vst.msk [vmem:[#allocation2 + $0x158] sm:$0xff] %vm256, 0.0
      %302 = vst.msk [vmem:[#allocation2 + $0x160] sm:$0x3] %vm259, 0.0
      %303 = vst.msk [vmem:[#allocation2 + $0x168] sm:$0xff] %vm256, 0.0
      %304 = vst.msk [vmem:[#allocation2 + $0x170] sm:$0xff] %vm256, 0.0
      %305 = vst.msk [vmem:[#allocation2 + $0x178] sm:$0x3] %vm259, 0.0
      %306 = vst.msk [vmem:[#allocation2 + $0x180] sm:$0xff] %vm256, 0.0
      %307 = vst.msk [vmem:[#allocation2 + $0x188] sm:$0xff] %vm256, 0.0
      %308 = vst.msk [vmem:[#allocation2 + $0x190] sm:$0x3] %vm259, 0.0
      %309 = vst.msk [vmem:[#allocation2 + $0x198] sm:$0xff] %vm256, 0.0
      %310 = vst.msk [vmem:[#allocation2 + $0x1a0] sm:$0xff] %vm256, 0.0
      %311 = vst.msk [vmem:[#allocation2 + $0x1a8] sm:$0x3] %vm259, 0.0
      %v312 = vld [vmem:[%s241] sm:$0xff]
      %v313 = vld [vmem:[%s241 + $0x8] sm:$0xff]
      %v314 = vld [vmem:[%s241 + $0x10] sm:$0xff]
      %v315 = vld [vmem:[%s241 + $0x18] sm:$0xff]
      %v316 = vld [vmem:[%s241 + $0x20] sm:$0xff]
      %v317 = vld [vmem:[%s241 + $0x28] sm:$0xff]
      %v318 = vld [vmem:[%s241 + $0x30] sm:$0xff]
      %v319 = vld [vmem:[%s241 + $0x38] sm:$0xff]
      %v320 = vld [vmem:[%s241 + $0x40] sm:$0xff]
      %v321 = vld [vmem:[%s241 + $0x48] sm:$0xff]
      %v322 = vld [vmem:[%s241 + $0x50] sm:$0xff]
      %v323 = vld [vmem:[%s241 + $0x58] sm:$0xff]
      %v324 = vld [vmem:[%s241 + $0x60] sm:$0xff]
      %v325 = vld [vmem:[%s241 + $0x68] sm:$0xff]
      %v326 = vld [vmem:[%s241 + $0x70] sm:$0xff]
      %v327 = vld [vmem:[%s241 + $0x78] sm:$0xff]
      %v328 = vld [vmem:[%s241 + $0x80] sm:$0xff]
      %v329 = vld [vmem:[%s241 + $0x88] sm:$0xff]
      %v330 = vld [vmem:[%s241 + $0x90] sm:$0xff]
      %v331 = vld [vmem:[%s241 + $0x98] sm:$0xff]
      %v332 = vld [vmem:[%s241 + $0xa0] sm:$0xff]
      %v333 = vld [vmem:[%s241 + $0xa8] sm:$0xff]
      %v334 = vld [vmem:[%s241 + $0xb0] sm:$0xff]
      %v335 = vld [vmem:[%s241 + $0xb8] sm:$0xff]
      %v336 = vld [vmem:[%s241 + $0xc0] sm:$0xff]
      %v337 = vld [vmem:[%s241 + $0xc8] sm:$0xff]
      %v338 = vld [vmem:[%s241 + $0xd0] sm:$0xff]
      %v339 = vld [vmem:[%s241 + $0xd8] sm:$0xff]
      %v340 = vld [vmem:[%s241 + $0xe0] sm:$0xff]
      %v341 = vld [vmem:[%s241 + $0xe8] sm:$0xff]
      %v342 = vld [vmem:[%s241 + $0xf0] sm:$0xff]
      %v343 = vld [vmem:[%s241 + $0xf8] sm:$0xff]
      %s344 = scalar_lea.vmem [#allocation2], 24
      %vm345 = vcmask 64512
      %346 = vst.msk [vmem:[%s344 + $0x1] sm:$0xff] %vm345, %v312
      %347 = vst.msk [vmem:[%s344 + $0x9] sm:$0xff] %vm345, %v313
      %348 = vst.msk [vmem:[%s344 + $0x19] sm:$0xff] %vm345, %v314
      %349 = vst.msk [vmem:[%s344 + $0x21] sm:$0xff] %vm345, %v315
      %350 = vst.msk [vmem:[%s344 + $0x31] sm:$0xff] %vm345, %v316
      %351 = vst.msk [vmem:[%s344 + $0x39] sm:$0xff] %vm345, %v317
      %352 = vst.msk [vmem:[%s344 + $0x49] sm:$0xff] %vm345, %v318
      %353 = vst.msk [vmem:[%s344 + $0x51] sm:$0xff] %vm345, %v319
      %354 = vst.msk [vmem:[%s344 + $0x61] sm:$0xff] %vm345, %v320
      %355 = vst.msk [vmem:[%s344 + $0x69] sm:$0xff] %vm345, %v321
      %356 = vst.msk [vmem:[%s344 + $0x79] sm:$0xff] %vm345, %v322
      %357 = vst.msk [vmem:[%s344 + $0x81] sm:$0xff] %vm345, %v323
      %358 = vst.msk [vmem:[%s344 + $0x91] sm:$0xff] %vm345, %v324
      %359 = vst.msk [vmem:[%s344 + $0x99] sm:$0xff] %vm345, %v325
      %360 = vst.msk [vmem:[%s344 + $0xa9] sm:$0xff] %vm345, %v326
      %361 = vst.msk [vmem:[%s344 + $0xb1] sm:$0xff] %vm345, %v327
      %362 = vst.msk [vmem:[%s344 + $0xc1] sm:$0xff] %vm345, %v328
      %363 = vst.msk [vmem:[%s344 + $0xc9] sm:$0xff] %vm345, %v329
      %364 = vst.msk [vmem:[%s344 + $0xd9] sm:$0xff] %vm345, %v330
      %365 = vst.msk [vmem:[%s344 + $0xe1] sm:$0xff] %vm345, %v331
      %366 = vst.msk [vmem:[%s344 + $0xf1] sm:$0xff] %vm345, %v332
      %367 = vst.msk [vmem:[%s344 + $0xf9] sm:$0xff] %vm345, %v333
      %368 = vst.msk [vmem:[%s344 + $0x109] sm:$0xff] %vm345, %v334
      %369 = vst.msk [vmem:[%s344 + $0x111] sm:$0xff] %vm345, %v335
      %370 = vst.msk [vmem:[%s344 + $0x121] sm:$0xff] %vm345, %v336
      %371 = vst.msk [vmem:[%s344 + $0x129] sm:$0xff] %vm345, %v337
      %372 = vst.msk [vmem:[%s344 + $0x139] sm:$0xff] %vm345, %v338
      %373 = vst.msk [vmem:[%s344 + $0x141] sm:$0xff] %vm345, %v339
      %374 = vst.msk [vmem:[%s344 + $0x151] sm:$0xff] %vm345, %v340
      %375 = vst.msk [vmem:[%s344 + $0x159] sm:$0xff] %vm345, %v341
      %376 = vst.msk [vmem:[%s344 + $0x169] sm:$0xff] %vm345, %v342
      %377 = vst.msk [vmem:[%s344 + $0x171] sm:$0xff] %vm345, %v343
      %v378 = vld [vmem:[%s246] sm:$0xff]
      %v379 = vld [vmem:[%s246 + $0x8] sm:$0xff]
      %v380 = vld [vmem:[%s246 + $0x10] sm:$0xff]
      %v381 = vld [vmem:[%s246 + $0x18] sm:$0xff]
      %v382 = vld [vmem:[%s246 + $0x20] sm:$0xff]
      %v383 = vld [vmem:[%s246 + $0x28] sm:$0xff]
      %v384 = vld [vmem:[%s246 + $0x30] sm:$0xff]
      %v385 = vld [vmem:[%s246 + $0x38] sm:$0xff]
      %v386 = vld [vmem:[%s246 + $0x40] sm:$0xff]
      %v387 = vld [vmem:[%s246 + $0x48] sm:$0xff]
      %v388 = vld [vmem:[%s246 + $0x50] sm:$0xff]
      %v389 = vld [vmem:[%s246 + $0x58] sm:$0xff]
      %v390 = vld [vmem:[%s246 + $0x60] sm:$0xff]
      %v391 = vld [vmem:[%s246 + $0x68] sm:$0xff]
      %v392 = vld [vmem:[%s246 + $0x70] sm:$0xff]
      %v393 = vld [vmem:[%s246 + $0x78] sm:$0xff]
      %v394 = vld [vmem:[%s246 + $0x80] sm:$0xff]
      %v395 = vld [vmem:[%s246 + $0x88] sm:$0xff]
      %v396 = vld [vmem:[%s246 + $0x90] sm:$0xff]
      %v397 = vld [vmem:[%s246 + $0x98] sm:$0xff]
      %v398 = vld [vmem:[%s246 + $0xa0] sm:$0xff]
      %v399 = vld [vmem:[%s246 + $0xa8] sm:$0xff]
      %v400 = vld [vmem:[%s246 + $0xb0] sm:$0xff]
      %v401 = vld [vmem:[%s246 + $0xb8] sm:$0xff]
      %v402 = vld [vmem:[%s246 + $0xc0] sm:$0xff]
      %v403 = vld [vmem:[%s246 + $0xc8] sm:$0xff]
      %v404 = vld [vmem:[%s246 + $0xd0] sm:$0xff]
      %v405 = vld [vmem:[%s246 + $0xd8] sm:$0xff]
      %v406 = vld [vmem:[%s246 + $0xe0] sm:$0xff]
      %v407 = vld [vmem:[%s246 + $0xe8] sm:$0xff]
      %v408 = vld [vmem:[%s246 + $0xf0] sm:$0xff]
      %v409 = vld [vmem:[%s246 + $0xf8] sm:$0xff]
      %442 = vrot.lane.b32.xlu0 %v378, 8
      %v443 = vpop.permute.xlu0 %442
      %444 = vrot.lane.b32.xlu0 %v379, 8
      %v445 = vpop.permute.xlu0 %444
      %446 = vrot.lane.b32.xlu0 %v380, 8
      %v447 = vpop.permute.xlu0 %446
      %448 = vrot.lane.b32.xlu0 %v381, 8
      %v449 = vpop.permute.xlu0 %448
      %450 = vrot.lane.b32.xlu0 %v382, 8
      %v451 = vpop.permute.xlu0 %450
      %452 = vrot.lane.b32.xlu0 %v383, 8
      %v453 = vpop.permute.xlu0 %452
      %454 = vrot.lane.b32.xlu0 %v384, 8
      %v455 = vpop.permute.xlu0 %454
      %456 = vrot.lane.b32.xlu0 %v385, 8
      %v457 = vpop.permute.xlu0 %456
      %458 = vrot.lane.b32.xlu0 %v386, 8
      %v459 = vpop.permute.xlu0 %458
      %460 = vrot.lane.b32.xlu0 %v387, 8
      %v461 = vpop.permute.xlu0 %460
      %462 = vrot.lane.b32.xlu0 %v388, 8
      %v463 = vpop.permute.xlu0 %462
      %464 = vrot.lane.b32.xlu0 %v389, 8
      %v465 = vpop.permute.xlu0 %464
      %466 = vrot.lane.b32.xlu0 %v390, 8
      %v467 = vpop.permute.xlu0 %466
      %468 = vrot.lane.b32.xlu0 %v391, 8
      %v469 = vpop.permute.xlu0 %468
      %470 = vrot.lane.b32.xlu0 %v392, 8
      %v471 = vpop.permute.xlu0 %470
      %472 = vrot.lane.b32.xlu0 %v393, 8
      %v473 = vpop.permute.xlu0 %472
      %474 = vrot.lane.b32.xlu0 %v394, 8
      %v475 = vpop.permute.xlu0 %474
      %476 = vrot.lane.b32.xlu0 %v395, 8
      %v477 = vpop.permute.xlu0 %476
      %478 = vrot.lane.b32.xlu0 %v396, 8
      %v479 = vpop.permute.xlu0 %478
      %480 = vrot.lane.b32.xlu0 %v397, 8
      %v481 = vpop.permute.xlu0 %480
      %482 = vrot.lane.b32.xlu0 %v398, 8
      %v483 = vpop.permute.xlu0 %482
      %484 = vrot.lane.b32.xlu0 %v399, 8
      %v485 = vpop.permute.xlu0 %484
      %486 = vrot.lane.b32.xlu0 %v400, 8
      %v487 = vpop.permute.xlu0 %486
      %488 = vrot.lane.b32.xlu0 %v401, 8
      %v489 = vpop.permute.xlu0 %488
      %490 = vrot.lane.b32.xlu0 %v402, 8
      %v491 = vpop.permute.xlu0 %490
      %492 = vrot.lane.b32.xlu0 %v403, 8
      %v493 = vpop.permute.xlu0 %492
      %494 = vrot.lane.b32.xlu0 %v404, 8
      %v495 = vpop.permute.xlu0 %494
      %496 = vrot.lane.b32.xlu0 %v405, 8
      %v497 = vpop.permute.xlu0 %496
      %498 = vrot.lane.b32.xlu0 %v406, 8
      %v499 = vpop.permute.xlu0 %498
      %500 = vrot.lane.b32.xlu0 %v407, 8
      %v501 = vpop.permute.xlu0 %500
      %502 = vrot.lane.b32.xlu0 %v408, 8
      %v503 = vpop.permute.xlu0 %502
      %504 = vrot.lane.b32.xlu0 %v409, 8
      %v505 = vpop.permute.xlu0 %504
      %vm538 = vcmask 97344
      %539 = vst.msk [vmem:[%s344 + $0x1] sm:$0xff] %vm538, %v443
      %540 = vst.msk [vmem:[%s344 + $0x9] sm:$0xff] %vm538, %v445
      %541 = vst.msk [vmem:[%s344 + $0x19] sm:$0xff] %vm538, %v447
      %542 = vst.msk [vmem:[%s344 + $0x21] sm:$0xff] %vm538, %v449
      %543 = vst.msk [vmem:[%s344 + $0x31] sm:$0xff] %vm538, %v451
      %544 = vst.msk [vmem:[%s344 + $0x39] sm:$0xff] %vm538, %v453
      %545 = vst.msk [vmem:[%s344 + $0x49] sm:$0xff] %vm538, %v455
      %546 = vst.msk [vmem:[%s344 + $0x51] sm:$0xff] %vm538, %v457
      %547 = vst.msk [vmem:[%s344 + $0x61] sm:$0xff] %vm538, %v459
      %548 = vst.msk [vmem:[%s344 + $0x69] sm:$0xff] %vm538, %v461
      %549 = vst.msk [vmem:[%s344 + $0x79] sm:$0xff] %vm538, %v463
      %550 = vst.msk [vmem:[%s344 + $0x81] sm:$0xff] %vm538, %v465
      %551 = vst.msk [vmem:[%s344 + $0x91] sm:$0xff] %vm538, %v467
      %552 = vst.msk [vmem:[%s344 + $0x99] sm:$0xff] %vm538, %v469
      %553 = vst.msk [vmem:[%s344 + $0xa9] sm:$0xff] %vm538, %v471
      %554 = vst.msk [vmem:[%s344 + $0xb1] sm:$0xff] %vm538, %v473
      %555 = vst.msk [vmem:[%s344 + $0xc1] sm:$0xff] %vm538, %v475
      %556 = vst.msk [vmem:[%s344 + $0xc9] sm:$0xff] %vm538, %v477
      %557 = vst.msk [vmem:[%s344 + $0xd9] sm:$0xff] %vm538, %v479
      %558 = vst.msk [vmem:[%s344 + $0xe1] sm:$0xff] %vm538, %v481
      %559 = vst.msk [vmem:[%s344 + $0xf1] sm:$0xff] %vm538, %v483
      %560 = vst.msk [vmem:[%s344 + $0xf9] sm:$0xff] %vm538, %v485
      %561 = vst.msk [vmem:[%s344 + $0x109] sm:$0xff] %vm538, %v487
      %562 = vst.msk [vmem:[%s344 + $0x111] sm:$0xff] %vm538, %v489
      %563 = vst.msk [vmem:[%s344 + $0x121] sm:$0xff] %vm538, %v491
      %564 = vst.msk [vmem:[%s344 + $0x129] sm:$0xff] %vm538, %v493
      %565 = vst.msk [vmem:[%s344 + $0x139] sm:$0xff] %vm538, %v495
      %566 = vst.msk [vmem:[%s344 + $0x141] sm:$0xff] %vm538, %v497
      %567 = vst.msk [vmem:[%s344 + $0x151] sm:$0xff] %vm538, %v499
      %568 = vst.msk [vmem:[%s344 + $0x159] sm:$0xff] %vm538, %v501
      %569 = vst.msk [vmem:[%s344 + $0x169] sm:$0xff] %vm538, %v503
      %570 = vst.msk [vmem:[%s344 + $0x171] sm:$0xff] %vm538, %v505
      %vm571 = vcmask 105568
      %572 = vst.msk [vmem:[%s344 + $0x1] sm:$0xff] %vm571, 1.0
      %573 = vst.msk [vmem:[%s344 + $0x9] sm:$0xff] %vm571, 1.0
      %574 = vst.msk [vmem:[%s344 + $0x19] sm:$0xff] %vm571, 1.0
      %575 = vst.msk [vmem:[%s344 + $0x21] sm:$0xff] %vm571, 1.0
      %576 = vst.msk [vmem:[%s344 + $0x31] sm:$0xff] %vm571, 1.0
      %577 = vst.msk [vmem:[%s344 + $0x39] sm:$0xff] %vm571, 1.0
      %578 = vst.msk [vmem:[%s344 + $0x49] sm:$0xff] %vm571, 1.0
      %579 = vst.msk [vmem:[%s344 + $0x51] sm:$0xff] %vm571, 1.0
      %580 = vst.msk [vmem:[%s344 + $0x61] sm:$0xff] %vm571, 1.0
      %581 = vst.msk [vmem:[%s344 + $0x69] sm:$0xff] %vm571, 1.0
      %582 = vst.msk [vmem:[%s344 + $0x79] sm:$0xff] %vm571, 1.0
      %583 = vst.msk [vmem:[%s344 + $0x81] sm:$0xff] %vm571, 1.0
      %584 = vst.msk [vmem:[%s344 + $0x91] sm:$0xff] %vm571, 1.0
      %585 = vst.msk [vmem:[%s344 + $0x99] sm:$0xff] %vm571, 1.0
      %586 = vst.msk [vmem:[%s344 + $0xa9] sm:$0xff] %vm571, 1.0
      %587 = vst.msk [vmem:[%s344 + $0xb1] sm:$0xff] %vm571, 1.0
      %588 = vst.msk [vmem:[%s344 + $0xc1] sm:$0xff] %vm571, 1.0
      %589 = vst.msk [vmem:[%s344 + $0xc9] sm:$0xff] %vm571, 1.0
      %590 = vst.msk [vmem:[%s344 + $0xd9] sm:$0xff] %vm571, 1.0
      %591 = vst.msk [vmem:[%s344 + $0xe1] sm:$0xff] %vm571, 1.0
      %592 = vst.msk [vmem:[%s344 + $0xf1] sm:$0xff] %vm571, 1.0
      %593 = vst.msk [vmem:[%s344 + $0xf9] sm:$0xff] %vm571, 1.0
      %594 = vst.msk [vmem:[%s344 + $0x109] sm:$0xff] %vm571, 1.0
      %595 = vst.msk [vmem:[%s344 + $0x111] sm:$0xff] %vm571, 1.0
      %596 = vst.msk [vmem:[%s344 + $0x121] sm:$0xff] %vm571, 1.0
      %597 = vst.msk [vmem:[%s344 + $0x129] sm:$0xff] %vm571, 1.0
      %598 = vst.msk [vmem:[%s344 + $0x139] sm:$0xff] %vm571, 1.0
      %599 = vst.msk [vmem:[%s344 + $0x141] sm:$0xff] %vm571, 1.0
      %600 = vst.msk [vmem:[%s344 + $0x151] sm:$0xff] %vm571, 1.0
      %601 = vst.msk [vmem:[%s344 + $0x159] sm:$0xff] %vm571, 1.0
      %602 = vst.msk [vmem:[%s344 + $0x169] sm:$0xff] %vm571, 1.0
      %603 = vst.msk [vmem:[%s344 + $0x171] sm:$0xff] %vm571, 1.0
      %v604 = vld [vmem:[#allocation2] sm:$0xff]
      %v605 = vld [vmem:[#allocation2 + $0x8] sm:$0xff]
      %v606 = vld [vmem:[#allocation2 + $0x18] sm:$0xff]
      %v607 = vld [vmem:[#allocation2 + $0x20] sm:$0xff]
      %v608 = vld [vmem:[#allocation2 + $0x30] sm:$0xff]
      %v609 = vld [vmem:[#allocation2 + $0x38] sm:$0xff]
      %v610 = vld [vmem:[#allocation2 + $0x48] sm:$0xff]
      %v611 = vld [vmem:[#allocation2 + $0x50] sm:$0xff]
      %v612 = vld [vmem:[#allocation2 + $0x60] sm:$0xff]
      %v613 = vld [vmem:[#allocation2 + $0x68] sm:$0xff]
      %v614 = vld [vmem:[#allocation2 + $0x78] sm:$0xff]
      %v615 = vld [vmem:[#allocation2 + $0x80] sm:$0xff]
      %v616 = vld [vmem:[#allocation2 + $0x90] sm:$0xff]
      %v617 = vld [vmem:[#allocation2 + $0x98] sm:$0xff]
      %v618 = vld [vmem:[#allocation2 + $0xa8] sm:$0xff]
      %v619 = vld [vmem:[#allocation2 + $0xb0] sm:$0xff]
      %v620 = vld [vmem:[#allocation2 + $0xc0] sm:$0xff]
      %v621 = vld [vmem:[#allocation2 + $0xc8] sm:$0xff]
      %v622 = vld [vmem:[#allocation2 + $0xd8] sm:$0xff]
      %v623 = vld [vmem:[#allocation2 + $0xe0] sm:$0xff]
      %v624 = vld [vmem:[#allocation2 + $0xf0] sm:$0xff]
      %v625 = vld [vmem:[#allocation2 + $0xf8] sm:$0xff]
      %v626 = vld [vmem:[#allocation2 + $0x108] sm:$0xff]
      %v627 = vld [vmem:[#allocation2 + $0x110] sm:$0xff]
      %v628 = vld [vmem:[#allocation2 + $0x120] sm:$0xff]
      %v629 = vld [vmem:[#allocation2 + $0x128] sm:$0xff]
      %v630 = vld [vmem:[#allocation2 + $0x138] sm:$0xff]
      %v631 = vld [vmem:[#allocation2 + $0x140] sm:$0xff]
      %v632 = vld [vmem:[#allocation2 + $0x150] sm:$0xff]
      %v633 = vld [vmem:[#allocation2 + $0x158] sm:$0xff]
      %v634 = vld [vmem:[#allocation2 + $0x168] sm:$0xff]
      %v635 = vld [vmem:[#allocation2 + $0x170] sm:$0xff]
      %636 = vst.msk [vmem:[#allocation3] sm:$0xff] %vm256, %v604
      %637 = vst.msk [vmem:[#allocation3 + $0x8] sm:$0xff] %vm256, %v605
      %638 = vst.msk [vmem:[#allocation3 + $0x10] sm:$0xff] %vm256, %v606
      %639 = vst.msk [vmem:[#allocation3 + $0x18] sm:$0xff] %vm256, %v607
      %640 = vst.msk [vmem:[#allocation3 + $0x20] sm:$0xff] %vm256, %v608
      %641 = vst.msk [vmem:[#allocation3 + $0x28] sm:$0xff] %vm256, %v609
      %642 = vst.msk [vmem:[#allocation3 + $0x30] sm:$0xff] %vm256, %v610
      %643 = vst.msk [vmem:[#allocation3 + $0x38] sm:$0xff] %vm256, %v611
      %644 = vst.msk [vmem:[#allocation3 + $0x40] sm:$0xff] %vm256, %v612
      %645 = vst.msk [vmem:[#allocation3 + $0x48] sm:$0xff] %vm256, %v613
      %646 = vst.msk [vmem:[#allocation3 + $0x50] sm:$0xff] %vm256, %v614
      %647 = vst.msk [vmem:[#allocation3 + $0x58] sm:$0xff] %vm256, %v615
      %648 = vst.msk [vmem:[#allocation3 + $0x60] sm:$0xff] %vm256, %v616
      %649 = vst.msk [vmem:[#allocation3 + $0x68] sm:$0xff] %vm256, %v617
      %650 = vst.msk [vmem:[#allocation3 + $0x70] sm:$0xff] %vm256, %v618
      %651 = vst.msk [vmem:[#allocation3 + $0x78] sm:$0xff] %vm256, %v619
      %652 = vst.msk [vmem:[#allocation3 + $0x80] sm:$0xff] %vm256, %v620
      %653 = vst.msk [vmem:[#allocation3 + $0x88] sm:$0xff] %vm256, %v621
      %654 = vst.msk [vmem:[#allocation3 + $0x90] sm:$0xff] %vm256, %v622
      %655 = vst.msk [vmem:[#allocation3 + $0x98] sm:$0xff] %vm256, %v623
      %656 = vst.msk [vmem:[#allocation3 + $0xa0] sm:$0xff] %vm256, %v624
      %657 = vst.msk [vmem:[#allocation3 + $0xa8] sm:$0xff] %vm256, %v625
      %658 = vst.msk [vmem:[#allocation3 + $0xb0] sm:$0xff] %vm256, %v626
      %659 = vst.msk [vmem:[#allocation3 + $0xb8] sm:$0xff] %vm256, %v627
      %660 = vst.msk [vmem:[#allocation3 + $0xc0] sm:$0xff] %vm256, %v628
      %661 = vst.msk [vmem:[#allocation3 + $0xc8] sm:$0xff] %vm256, %v629
      %662 = vst.msk [vmem:[#allocation3 + $0xd0] sm:$0xff] %vm256, %v630
      %663 = vst.msk [vmem:[#allocation3 + $0xd8] sm:$0xff] %vm256, %v631
      %664 = vst.msk [vmem:[#allocation3 + $0xe0] sm:$0xff] %vm256, %v632
      %665 = vst.msk [vmem:[#allocation3 + $0xe8] sm:$0xff] %vm256, %v633
      %666 = vst.msk [vmem:[#allocation3 + $0xf0] sm:$0xff] %vm256, %v634
      %667 = vst.msk [vmem:[#allocation3 + $0xf8] sm:$0xff] %vm256, %v635
      %v668 = vld [vmem:[#allocation2 + $0x1] sm:$0xff]
      %v669 = vld [vmem:[#allocation2 + $0x9] sm:$0xff]
      %v670 = vld [vmem:[#allocation2 + $0x19] sm:$0xff]
      %v671 = vld [vmem:[#allocation2 + $0x21] sm:$0xff]
      %v672 = vld [vmem:[#allocation2 + $0x31] sm:$0xff]
      %v673 = vld [vmem:[#allocation2 + $0x39] sm:$0xff]
      %v674 = vld [vmem:[#allocation2 + $0x49] sm:$0xff]
      %v675 = vld [vmem:[#allocation2 + $0x51] sm:$0xff]
      %v676 = vld [vmem:[#allocation2 + $0x61] sm:$0xff]
      %v677 = vld [vmem:[#allocation2 + $0x69] sm:$0xff]
      %v678 = vld [vmem:[#allocation2 + $0x79] sm:$0xff]
      %v679 = vld [vmem:[#allocation2 + $0x81] sm:$0xff]
      %v680 = vld [vmem:[#allocation2 + $0x91] sm:$0xff]
      %v681 = vld [vmem:[#allocation2 + $0x99] sm:$0xff]
      %v682 = vld [vmem:[#allocation2 + $0xa9] sm:$0xff]
      %v683 = vld [vmem:[#allocation2 + $0xb1] sm:$0xff]
      %v684 = vld [vmem:[#allocation2 + $0xc1] sm:$0xff]
      %v685 = vld [vmem:[#allocation2 + $0xc9] sm:$0xff]
      %v686 = vld [vmem:[#allocation2 + $0xd9] sm:$0xff]
      %v687 = vld [vmem:[#allocation2 + $0xe1] sm:$0xff]
      %v688 = vld [vmem:[#allocation2 + $0xf1] sm:$0xff]
      %v689 = vld [vmem:[#allocation2 + $0xf9] sm:$0xff]
      %v690 = vld [vmem:[#allocation2 + $0x109] sm:$0xff]
      %v691 = vld [vmem:[#allocation2 + $0x111] sm:$0xff]
      %v692 = vld [vmem:[#allocation2 + $0x121] sm:$0xff]
      %v693 = vld [vmem:[#allocation2 + $0x129] sm:$0xff]
      %v694 = vld [vmem:[#allocation2 + $0x139] sm:$0xff]
      %v695 = vld [vmem:[#allocation2 + $0x141] sm:$0xff]
      %v696 = vld [vmem:[#allocation2 + $0x151] sm:$0xff]
      %v697 = vld [vmem:[#allocation2 + $0x159] sm:$0xff]
      %v698 = vld [vmem:[#allocation2 + $0x169] sm:$0xff]
      %v699 = vld [vmem:[#allocation2 + $0x171] sm:$0xff]
      %732 = vrot.lane.b32.xlu0 %v668, 13
      %v733 = vpop.permute.xlu0 %732
      %734 = vrot.lane.b32.xlu0 %v669, 13
      %v735 = vpop.permute.xlu0 %734
      %736 = vrot.lane.b32.xlu0 %v670, 13
      %v737 = vpop.permute.xlu0 %736
      %738 = vrot.lane.b32.xlu0 %v671, 13
      %v739 = vpop.permute.xlu0 %738
      %740 = vrot.lane.b32.xlu0 %v672, 13
      %v741 = vpop.permute.xlu0 %740
      %742 = vrot.lane.b32.xlu0 %v673, 13
      %v743 = vpop.permute.xlu0 %742
      %744 = vrot.lane.b32.xlu0 %v674, 13
      %v745 = vpop.permute.xlu0 %744
      %746 = vrot.lane.b32.xlu0 %v675, 13
      %v747 = vpop.permute.xlu0 %746
      %748 = vrot.lane.b32.xlu0 %v676, 13
      %v749 = vpop.permute.xlu0 %748
      %750 = vrot.lane.b32.xlu0 %v677, 13
      %v751 = vpop.permute.xlu0 %750
      %752 = vrot.lane.b32.xlu0 %v678, 13
      %v753 = vpop.permute.xlu0 %752
      %754 = vrot.lane.b32.xlu0 %v679, 13
      %v755 = vpop.permute.xlu0 %754
      %756 = vrot.lane.b32.xlu0 %v680, 13
      %v757 = vpop.permute.xlu0 %756
      %758 = vrot.lane.b32.xlu0 %v681, 13
      %v759 = vpop.permute.xlu0 %758
      %760 = vrot.lane.b32.xlu0 %v682, 13
      %v761 = vpop.permute.xlu0 %760
      %762 = vrot.lane.b32.xlu0 %v683, 13
      %v763 = vpop.permute.xlu0 %762
      %764 = vrot.lane.b32.xlu0 %v684, 13
      %v765 = vpop.permute.xlu0 %764
      %766 = vrot.lane.b32.xlu0 %v685, 13
      %v767 = vpop.permute.xlu0 %766
      %768 = vrot.lane.b32.xlu0 %v686, 13
      %v769 = vpop.permute.xlu0 %768
      %770 = vrot.lane.b32.xlu0 %v687, 13
      %v771 = vpop.permute.xlu0 %770
      %772 = vrot.lane.b32.xlu0 %v688, 13
      %v773 = vpop.permute.xlu0 %772
      %774 = vrot.lane.b32.xlu0 %v689, 13
      %v775 = vpop.permute.xlu0 %774
      %776 = vrot.lane.b32.xlu0 %v690, 13
      %v777 = vpop.permute.xlu0 %776
      %778 = vrot.lane.b32.xlu0 %v691, 13
      %v779 = vpop.permute.xlu0 %778
      %780 = vrot.lane.b32.xlu0 %v692, 13
      %v781 = vpop.permute.xlu0 %780
      %782 = vrot.lane.b32.xlu0 %v693, 13
      %v783 = vpop.permute.xlu0 %782
      %784 = vrot.lane.b32.xlu0 %v694, 13
      %v785 = vpop.permute.xlu0 %784
      %786 = vrot.lane.b32.xlu0 %v695, 13
      %v787 = vpop.permute.xlu0 %786
      %788 = vrot.lane.b32.xlu0 %v696, 13
      %v789 = vpop.permute.xlu0 %788
      %790 = vrot.lane.b32.xlu0 %v697, 13
      %v791 = vpop.permute.xlu0 %790
      %792 = vrot.lane.b32.xlu0 %v698, 13
      %v793 = vpop.permute.xlu0 %792
      %794 = vrot.lane.b32.xlu0 %v699, 13
      %v795 = vpop.permute.xlu0 %794
      %vm828 = vcmask 212072
      %829 = vst.msk [vmem:[#allocation3] sm:$0xff] %vm828, %v733
      %830 = vst.msk [vmem:[#allocation3 + $0x8] sm:$0xff] %vm828, %v735
      %831 = vst.msk [vmem:[#allocation3 + $0x10] sm:$0xff] %vm828, %v737
      %832 = vst.msk [vmem:[#allocation3 + $0x18] sm:$0xff] %vm828, %v739
      %833 = vst.msk [vmem:[#allocation3 + $0x20] sm:$0xff] %vm828, %v741
      %834 = vst.msk [vmem:[#allocation3 + $0x28] sm:$0xff] %vm828, %v743
      %835 = vst.msk [vmem:[#allocation3 + $0x30] sm:$0xff] %vm828, %v745
      %836 = vst.msk [vmem:[#allocation3 + $0x38] sm:$0xff] %vm828, %v747
      %837 = vst.msk [vmem:[#allocation3 + $0x40] sm:$0xff] %vm828, %v749
      %838 = vst.msk [vmem:[#allocation3 + $0x48] sm:$0xff] %vm828, %v751
      %839 = vst.msk [vmem:[#allocation3 + $0x50] sm:$0xff] %vm828, %v753
      %840 = vst.msk [vmem:[#allocation3 + $0x58] sm:$0xff] %vm828, %v755
      %841 = vst.msk [vmem:[#allocation3 + $0x60] sm:$0xff] %vm828, %v757
      %842 = vst.msk [vmem:[#allocation3 + $0x68] sm:$0xff] %vm828, %v759
      %843 = vst.msk [vmem:[#allocation3 + $0x70] sm:$0xff] %vm828, %v761
      %844 = vst.msk [vmem:[#allocation3 + $0x78] sm:$0xff] %vm828, %v763
      %845 = vst.msk [vmem:[#allocation3 + $0x80] sm:$0xff] %vm828, %v765
      %846 = vst.msk [vmem:[#allocation3 + $0x88] sm:$0xff] %vm828, %v767
      %847 = vst.msk [vmem:[#allocation3 + $0x90] sm:$0xff] %vm828, %v769
      %848 = vst.msk [vmem:[#allocation3 + $0x98] sm:$0xff] %vm828, %v771
      %849 = vst.msk [vmem:[#allocation3 + $0xa0] sm:$0xff] %vm828, %v773
      %850 = vst.msk [vmem:[#allocation3 + $0xa8] sm:$0xff] %vm828, %v775
      %851 = vst.msk [vmem:[#allocation3 + $0xb0] sm:$0xff] %vm828, %v777
      %852 = vst.msk [vmem:[#allocation3 + $0xb8] sm:$0xff] %vm828, %v779
      %853 = vst.msk [vmem:[#allocation3 + $0xc0] sm:$0xff] %vm828, %v781
      %854 = vst.msk [vmem:[#allocation3 + $0xc8] sm:$0xff] %vm828, %v783
      %855 = vst.msk [vmem:[#allocation3 + $0xd0] sm:$0xff] %vm828, %v785
      %856 = vst.msk [vmem:[#allocation3 + $0xd8] sm:$0xff] %vm828, %v787
      %857 = vst.msk [vmem:[#allocation3 + $0xe0] sm:$0xff] %vm828, %v789
      %858 = vst.msk [vmem:[#allocation3 + $0xe8] sm:$0xff] %vm828, %v791
      %859 = vst.msk [vmem:[#allocation3 + $0xf0] sm:$0xff] %vm828, %v793
      %860 = vst.msk [vmem:[#allocation3 + $0xf8] sm:$0xff] %vm828, %v795
      %v861 = vld [vmem:[#allocation2 + $0x2] sm:$0xff]
      %v862 = vld [vmem:[#allocation2 + $0xa] sm:$0xff]
      %v863 = vld [vmem:[#allocation2 + $0x1a] sm:$0xff]
      %v864 = vld [vmem:[#allocation2 + $0x22] sm:$0xff]
      %v865 = vld [vmem:[#allocation2 + $0x32] sm:$0xff]
      %v866 = vld [vmem:[#allocation2 + $0x3a] sm:$0xff]
      %v867 = vld [vmem:[#allocation2 + $0x4a] sm:$0xff]
      %v868 = vld [vmem:[#allocation2 + $0x52] sm:$0xff]
      %v869 = vld [vmem:[#allocation2 + $0x62] sm:$0xff]
      %v870 = vld [vmem:[#allocation2 + $0x6a] sm:$0xff]
      %v871 = vld [vmem:[#allocation2 + $0x7a] sm:$0xff]
      %v872 = vld [vmem:[#allocation2 + $0x82] sm:$0xff]
      %v873 = vld [vmem:[#allocation2 + $0x92] sm:$0xff]
      %v874 = vld [vmem:[#allocation2 + $0x9a] sm:$0xff]
      %v875 = vld [vmem:[#allocation2 + $0xaa] sm:$0xff]
      %v876 = vld [vmem:[#allocation2 + $0xb2] sm:$0xff]
      %v877 = vld [vmem:[#allocation2 + $0xc2] sm:$0xff]
      %v878 = vld [vmem:[#allocation2 + $0xca] sm:$0xff]
      %v879 = vld [vmem:[#allocation2 + $0xda] sm:$0xff]
      %v880 = vld [vmem:[#allocation2 + $0xe2] sm:$0xff]
      %v881 = vld [vmem:[#allocation2 + $0xf2] sm:$0xff]
      %v882 = vld [vmem:[#allocation2 + $0xfa] sm:$0xff]
      %v883 = vld [vmem:[#allocation2 + $0x10a] sm:$0xff]
      %v884 = vld [vmem:[#allocation2 + $0x112] sm:$0xff]
      %v885 = vld [vmem:[#allocation2 + $0x122] sm:$0xff]
      %v886 = vld [vmem:[#allocation2 + $0x12a] sm:$0xff]
      %v887 = vld [vmem:[#allocation2 + $0x13a] sm:$0xff]
      %v888 = vld [vmem:[#allocation2 + $0x142] sm:$0xff]
      %v889 = vld [vmem:[#allocation2 + $0x152] sm:$0xff]
      %v890 = vld [vmem:[#allocation2 + $0x15a] sm:$0xff]
      %v891 = vld [vmem:[#allocation2 + $0x16a] sm:$0xff]
      %v892 = vld [vmem:[#allocation2 + $0x172] sm:$0xff]
      %925 = vrot.lane.b32.xlu0 %v861, 26
      %v926 = vpop.permute.xlu0 %925
      %927 = vrot.lane.b32.xlu0 %v862, 26
      %v928 = vpop.permute.xlu0 %927
      %929 = vrot.lane.b32.xlu0 %v863, 26
      %v930 = vpop.permute.xlu0 %929
      %931 = vrot.lane.b32.xlu0 %v864, 26
      %v932 = vpop.permute.xlu0 %931
      %933 = vrot.lane.b32.xlu0 %v865, 26
      %v934 = vpop.permute.xlu0 %933
      %935 = vrot.lane.b32.xlu0 %v866, 26
      %v936 = vpop.permute.xlu0 %935
      %937 = vrot.lane.b32.xlu0 %v867, 26
      %v938 = vpop.permute.xlu0 %937
      %939 = vrot.lane.b32.xlu0 %v868, 26
      %v940 = vpop.permute.xlu0 %939
      %941 = vrot.lane.b32.xlu0 %v869, 26
      %v942 = vpop.permute.xlu0 %941
      %943 = vrot.lane.b32.xlu0 %v870, 26
      %v944 = vpop.permute.xlu0 %943
      %945 = vrot.lane.b32.xlu0 %v871, 26
      %v946 = vpop.permute.xlu0 %945
      %947 = vrot.lane.b32.xlu0 %v872, 26
      %v948 = vpop.permute.xlu0 %947
      %949 = vrot.lane.b32.xlu0 %v873, 26
      %v950 = vpop.permute.xlu0 %949
      %951 = vrot.lane.b32.xlu0 %v874, 26
      %v952 = vpop.permute.xlu0 %951
      %953 = vrot.lane.b32.xlu0 %v875, 26
      %v954 = vpop.permute.xlu0 %953
      %955 = vrot.lane.b32.xlu0 %v876, 26
      %v956 = vpop.permute.xlu0 %955
      %957 = vrot.lane.b32.xlu0 %v877, 26
      %v958 = vpop.permute.xlu0 %957
      %959 = vrot.lane.b32.xlu0 %v878, 26
      %v960 = vpop.permute.xlu0 %959
      %961 = vrot.lane.b32.xlu0 %v879, 26
      %v962 = vpop.permute.xlu0 %961
      %963 = vrot.lane.b32.xlu0 %v880, 26
      %v964 = vpop.permute.xlu0 %963
      %965 = vrot.lane.b32.xlu0 %v881, 26
      %v966 = vpop.permute.xlu0 %965
      %967 = vrot.lane.b32.xlu0 %v882, 26
      %v968 = vpop.permute.xlu0 %967
      %969 = vrot.lane.b32.xlu0 %v883, 26
      %v970 = vpop.permute.xlu0 %969
      %971 = vrot.lane.b32.xlu0 %v884, 26
      %v972 = vpop.permute.xlu0 %971
      %973 = vrot.lane.b32.xlu0 %v885, 26
      %v974 = vpop.permute.xlu0 %973
      %975 = vrot.lane.b32.xlu0 %v886, 26
      %v976 = vpop.permute.xlu0 %975
      %977 = vrot.lane.b32.xlu0 %v887, 26
      %v978 = vpop.permute.xlu0 %977
      %979 = vrot.lane.b32.xlu0 %v888, 26
      %v980 = vpop.permute.xlu0 %979
      %981 = vrot.lane.b32.xlu0 %v889, 26
      %v982 = vpop.permute.xlu0 %981
      %983 = vrot.lane.b32.xlu0 %v890, 26
      %v984 = vpop.permute.xlu0 %983
      %985 = vrot.lane.b32.xlu0 %v891, 26
      %v986 = vpop.permute.xlu0 %985
      %987 = vrot.lane.b32.xlu0 %v892, 26
      %v988 = vpop.permute.xlu0 %987
      %vm1021 = vcmask 318672
      %1022 = vst.msk [vmem:[#allocation3] sm:$0xff] %vm1021, %v926
      %1023 = vst.msk [vmem:[#allocation3 + $0x8] sm:$0xff] %vm1021, %v928
      %1024 = vst.msk [vmem:[#allocation3 + $0x10] sm:$0xff] %vm1021, %v930
      %1025 = vst.msk [vmem:[#allocation3 + $0x18] sm:$0xff] %vm1021, %v932
      %1026 = vst.msk [vmem:[#allocation3 + $0x20] sm:$0xff] %vm1021, %v934
      %1027 = vst.msk [vmem:[#allocation3 + $0x28] sm:$0xff] %vm1021, %v936
      %1028 = vst.msk [vmem:[#allocation3 + $0x30] sm:$0xff] %vm1021, %v938
      %1029 = vst.msk [vmem:[#allocation3 + $0x38] sm:$0xff] %vm1021, %v940
      %1030 = vst.msk [vmem:[#allocation3 + $0x40] sm:$0xff] %vm1021, %v942
      %1031 = vst.msk [vmem:[#allocation3 + $0x48] sm:$0xff] %vm1021, %v944
      %1032 = vst.msk [vmem:[#allocation3 + $0x50] sm:$0xff] %vm1021, %v946
      %1033 = vst.msk [vmem:[#allocation3 + $0x58] sm:$0xff] %vm1021, %v948
      %1034 = vst.msk [vmem:[#allocation3 + $0x60] sm:$0xff] %vm1021, %v950
      %1035 = vst.msk [vmem:[#allocation3 + $0x68] sm:$0xff] %vm1021, %v952
      %1036 = vst.msk [vmem:[#allocation3 + $0x70] sm:$0xff] %vm1021, %v954
      %1037 = vst.msk [vmem:[#allocation3 + $0x78] sm:$0xff] %vm1021, %v956
      %1038 = vst.msk [vmem:[#allocation3 + $0x80] sm:$0xff] %vm1021, %v958
      %1039 = vst.msk [vmem:[#allocation3 + $0x88] sm:$0xff] %vm1021, %v960
      %1040 = vst.msk [vmem:[#allocation3 + $0x90] sm:$0xff] %vm1021, %v962
      %1041 = vst.msk [vmem:[#allocation3 + $0x98] sm:$0xff] %vm1021, %v964
      %1042 = vst.msk [vmem:[#allocation3 + $0xa0] sm:$0xff] %vm1021, %v966
      %1043 = vst.msk [vmem:[#allocation3 + $0xa8] sm:$0xff] %vm1021, %v968
      %1044 = vst.msk [vmem:[#allocation3 + $0xb0] sm:$0xff] %vm1021, %v970
      %1045 = vst.msk [vmem:[#allocation3 + $0xb8] sm:$0xff] %vm1021, %v972
      %1046 = vst.msk [vmem:[#allocation3 + $0xc0] sm:$0xff] %vm1021, %v974
      %1047 = vst.msk [vmem:[#allocation3 + $0xc8] sm:$0xff] %vm1021, %v976
      %1048 = vst.msk [vmem:[#allocation3 + $0xd0] sm:$0xff] %vm1021, %v978
      %1049 = vst.msk [vmem:[#allocation3 + $0xd8] sm:$0xff] %vm1021, %v980
      %1050 = vst.msk [vmem:[#allocation3 + $0xe0] sm:$0xff] %vm1021, %v982
      %1051 = vst.msk [vmem:[#allocation3 + $0xe8] sm:$0xff] %vm1021, %v984
      %1052 = vst.msk [vmem:[#allocation3 + $0xf0] sm:$0xff] %vm1021, %v986
      %1053 = vst.msk [vmem:[#allocation3 + $0xf8] sm:$0xff] %vm1021, %v988
      %v1054 = vld [vmem:[%s344] sm:$0xff]
      %v1055 = vld [vmem:[%s344 + $0x8] sm:$0xff]
      %v1056 = vld [vmem:[%s344 + $0x18] sm:$0xff]
      %v1057 = vld [vmem:[%s344 + $0x20] sm:$0xff]
      %v1058 = vld [vmem:[%s344 + $0x30] sm:$0xff]
      %v1059 = vld [vmem:[%s344 + $0x38] sm:$0xff]
      %v1060 = vld [vmem:[%s344 + $0x48] sm:$0xff]
      %v1061 = vld [vmem:[%s344 + $0x50] sm:$0xff]
      %v1062 = vld [vmem:[%s344 + $0x60] sm:$0xff]
      %v1063 = vld [vmem:[%s344 + $0x68] sm:$0xff]
      %v1064 = vld [vmem:[%s344 + $0x78] sm:$0xff]
      %v1065 = vld [vmem:[%s344 + $0x80] sm:$0xff]
      %v1066 = vld [vmem:[%s344 + $0x90] sm:$0xff]
      %v1067 = vld [vmem:[%s344 + $0x98] sm:$0xff]
      %v1068 = vld [vmem:[%s344 + $0xa8] sm:$0xff]
      %v1069 = vld [vmem:[%s344 + $0xb0] sm:$0xff]
      %v1070 = vld [vmem:[%s344 + $0xc0] sm:$0xff]
      %v1071 = vld [vmem:[%s344 + $0xc8] sm:$0xff]
      %v1072 = vld [vmem:[%s344 + $0xd8] sm:$0xff]
      %v1073 = vld [vmem:[%s344 + $0xe0] sm:$0xff]
      %v1074 = vld [vmem:[%s344 + $0xf0] sm:$0xff]
      %v1075 = vld [vmem:[%s344 + $0xf8] sm:$0xff]
      %v1076 = vld [vmem:[%s344 + $0x108] sm:$0xff]
      %v1077 = vld [vmem:[%s344 + $0x110] sm:$0xff]
      %v1078 = vld [vmem:[%s344 + $0x120] sm:$0xff]
      %v1079 = vld [vmem:[%s344 + $0x128] sm:$0xff]
      %v1080 = vld [vmem:[%s344 + $0x138] sm:$0xff]
      %v1081 = vld [vmem:[%s344 + $0x140] sm:$0xff]
      %v1082 = vld [vmem:[%s344 + $0x150] sm:$0xff]
      %v1083 = vld [vmem:[%s344 + $0x158] sm:$0xff]
      %v1084 = vld [vmem:[%s344 + $0x168] sm:$0xff]
      %v1085 = vld [vmem:[%s344 + $0x170] sm:$0xff]
      %1118 = vrot.lane.b32.xlu0 %v1054, 39
      %v1119 = vpop.permute.xlu0 %1118
      %1120 = vrot.lane.b32.xlu0 %v1055, 39
      %v1121 = vpop.permute.xlu0 %1120
      %1122 = vrot.lane.b32.xlu0 %v1056, 39
      %v1123 = vpop.permute.xlu0 %1122
      %1124 = vrot.lane.b32.xlu0 %v1057, 39
      %v1125 = vpop.permute.xlu0 %1124
      %1126 = vrot.lane.b32.xlu0 %v1058, 39
      %v1127 = vpop.permute.xlu0 %1126
      %1128 = vrot.lane.b32.xlu0 %v1059, 39
      %v1129 = vpop.permute.xlu0 %1128
      %1130 = vrot.lane.b32.xlu0 %v1060, 39
      %v1131 = vpop.permute.xlu0 %1130
      %1132 = vrot.lane.b32.xlu0 %v1061, 39
      %v1133 = vpop.permute.xlu0 %1132
      %1134 = vrot.lane.b32.xlu0 %v1062, 39
      %v1135 = vpop.permute.xlu0 %1134
      %1136 = vrot.lane.b32.xlu0 %v1063, 39
      %v1137 = vpop.permute.xlu0 %1136
      %1138 = vrot.lane.b32.xlu0 %v1064, 39
      %v1139 = vpop.permute.xlu0 %1138
      %1140 = vrot.lane.b32.xlu0 %v1065, 39
      %v1141 = vpop.permute.xlu0 %1140
      %1142 = vrot.lane.b32.xlu0 %v1066, 39
      %v1143 = vpop.permute.xlu0 %1142
      %1144 = vrot.lane.b32.xlu0 %v1067, 39
      %v1145 = vpop.permute.xlu0 %1144
      %1146 = vrot.lane.b32.xlu0 %v1068, 39
      %v1147 = vpop.permute.xlu0 %1146
      %1148 = vrot.lane.b32.xlu0 %v1069, 39
      %v1149 = vpop.permute.xlu0 %1148
      %1150 = vrot.lane.b32.xlu0 %v1070, 39
      %v1151 = vpop.permute.xlu0 %1150
      %1152 = vrot.lane.b32.xlu0 %v1071, 39
      %v1153 = vpop.permute.xlu0 %1152
      %1154 = vrot.lane.b32.xlu0 %v1072, 39
      %v1155 = vpop.permute.xlu0 %1154
      %1156 = vrot.lane.b32.xlu0 %v1073, 39
      %v1157 = vpop.permute.xlu0 %1156
      %1158 = vrot.lane.b32.xlu0 %v1074, 39
      %v1159 = vpop.permute.xlu0 %1158
      %1160 = vrot.lane.b32.xlu0 %v1075, 39
      %v1161 = vpop.permute.xlu0 %1160
      %1162 = vrot.lane.b32.xlu0 %v1076, 39
      %v1163 = vpop.permute.xlu0 %1162
      %1164 = vrot.lane.b32.xlu0 %v1077, 39
      %v1165 = vpop.permute.xlu0 %1164
      %1166 = vrot.lane.b32.xlu0 %v1078, 39
      %v1167 = vpop.permute.xlu0 %1166
      %1168 = vrot.lane.b32.xlu0 %v1079, 39
      %v1169 = vpop.permute.xlu0 %1168
      %1170 = vrot.lane.b32.xlu0 %v1080, 39
      %v1171 = vpop.permute.xlu0 %1170
      %1172 = vrot.lane.b32.xlu0 %v1081, 39
      %v1173 = vpop.permute.xlu0 %1172
      %1174 = vrot.lane.b32.xlu0 %v1082, 39
      %v1175 = vpop.permute.xlu0 %1174
      %1176 = vrot.lane.b32.xlu0 %v1083, 39
      %v1177 = vpop.permute.xlu0 %1176
      %1178 = vrot.lane.b32.xlu0 %v1084, 39
      %v1179 = vpop.permute.xlu0 %1178
      %1180 = vrot.lane.b32.xlu0 %v1085, 39
      %v1181 = vpop.permute.xlu0 %1180
      %vm1214 = vcmask 425272
      %1215 = vst.msk [vmem:[#allocation3] sm:$0xff] %vm1214, %v1119
      %1216 = vst.msk [vmem:[#allocation3 + $0x8] sm:$0xff] %vm1214, %v1121
      %1217 = vst.msk [vmem:[#allocation3 + $0x10] sm:$0xff] %vm1214, %v1123
      %1218 = vst.msk [vmem:[#allocation3 + $0x18] sm:$0xff] %vm1214, %v1125
      %1219 = vst.msk [vmem:[#allocation3 + $0x20] sm:$0xff] %vm1214, %v1127
      %1220 = vst.msk [vmem:[#allocation3 + $0x28] sm:$0xff] %vm1214, %v1129
      %1221 = vst.msk [vmem:[#allocation3 + $0x30] sm:$0xff] %vm1214, %v1131
      %1222 = vst.msk [vmem:[#allocation3 + $0x38] sm:$0xff] %vm1214, %v1133
      %1223 = vst.msk [vmem:[#allocation3 + $0x40] sm:$0xff] %vm1214, %v1135
      %1224 = vst.msk [vmem:[#allocation3 + $0x48] sm:$0xff] %vm1214, %v1137
      %1225 = vst.msk [vmem:[#allocation3 + $0x50] sm:$0xff] %vm1214, %v1139
      %1226 = vst.msk [vmem:[#allocation3 + $0x58] sm:$0xff] %vm1214, %v1141
      %1227 = vst.msk [vmem:[#allocation3 + $0x60] sm:$0xff] %vm1214, %v1143
      %1228 = vst.msk [vmem:[#allocation3 + $0x68] sm:$0xff] %vm1214, %v1145
      %1229 = vst.msk [vmem:[#allocation3 + $0x70] sm:$0xff] %vm1214, %v1147
      %1230 = vst.msk [vmem:[#allocation3 + $0x78] sm:$0xff] %vm1214, %v1149
      %1231 = vst.msk [vmem:[#allocation3 + $0x80] sm:$0xff] %vm1214, %v1151
      %1232 = vst.msk [vmem:[#allocation3 + $0x88] sm:$0xff] %vm1214, %v1153
      %1233 = vst.msk [vmem:[#allocation3 + $0x90] sm:$0xff] %vm1214, %v1155
      %1234 = vst.msk [vmem:[#allocation3 + $0x98] sm:$0xff] %vm1214, %v1157
      %1235 = vst.msk [vmem:[#allocation3 + $0xa0] sm:$0xff] %vm1214, %v1159
      %1236 = vst.msk [vmem:[#allocation3 + $0xa8] sm:$0xff] %vm1214, %v1161
      %1237 = vst.msk [vmem:[#allocation3 + $0xb0] sm:$0xff] %vm1214, %v1163
      %1238 = vst.msk [vmem:[#allocation3 + $0xb8] sm:$0xff] %vm1214, %v1165
      %1239 = vst.msk [vmem:[#allocation3 + $0xc0] sm:$0xff] %vm1214, %v1167
      %1240 = vst.msk [vmem:[#allocation3 + $0xc8] sm:$0xff] %vm1214, %v1169
      %1241 = vst.msk [vmem:[#allocation3 + $0xd0] sm:$0xff] %vm1214, %v1171
      %1242 = vst.msk [vmem:[#allocation3 + $0xd8] sm:$0xff] %vm1214, %v1173
      %1243 = vst.msk [vmem:[#allocation3 + $0xe0] sm:$0xff] %vm1214, %v1175
      %1244 = vst.msk [vmem:[#allocation3 + $0xe8] sm:$0xff] %vm1214, %v1177
      %1245 = vst.msk [vmem:[#allocation3 + $0xf0] sm:$0xff] %vm1214, %v1179
      %1246 = vst.msk [vmem:[#allocation3 + $0xf8] sm:$0xff] %vm1214, %v1181
      %v1247 = vld [vmem:[%s344 + $0x1] sm:$0xff]
      %v1248 = vld [vmem:[%s344 + $0x9] sm:$0xff]
      %v1249 = vld [vmem:[%s344 + $0x19] sm:$0xff]
      %v1250 = vld [vmem:[%s344 + $0x21] sm:$0xff]
      %v1251 = vld [vmem:[%s344 + $0x31] sm:$0xff]
      %v1252 = vld [vmem:[%s344 + $0x39] sm:$0xff]
      %v1253 = vld [vmem:[%s344 + $0x49] sm:$0xff]
      %v1254 = vld [vmem:[%s344 + $0x51] sm:$0xff]
      %v1255 = vld [vmem:[%s344 + $0x61] sm:$0xff]
      %v1256 = vld [vmem:[%s344 + $0x69] sm:$0xff]
      %v1257 = vld [vmem:[%s344 + $0x79] sm:$0xff]
      %v1258 = vld [vmem:[%s344 + $0x81] sm:$0xff]
      %v1259 = vld [vmem:[%s344 + $0x91] sm:$0xff]
      %v1260 = vld [vmem:[%s344 + $0x99] sm:$0xff]
      %v1261 = vld [vmem:[%s344 + $0xa9] sm:$0xff]
      %v1262 = vld [vmem:[%s344 + $0xb1] sm:$0xff]
      %v1263 = vld [vmem:[%s344 + $0xc1] sm:$0xff]
      %v1264 = vld [vmem:[%s344 + $0xc9] sm:$0xff]
      %v1265 = vld [vmem:[%s344 + $0xd9] sm:$0xff]
      %v1266 = vld [vmem:[%s344 + $0xe1] sm:$0xff]
      %v1267 = vld [vmem:[%s344 + $0xf1] sm:$0xff]
      %v1268 = vld [vmem:[%s344 + $0xf9] sm:$0xff]
      %v1269 = vld [vmem:[%s344 + $0x109] sm:$0xff]
      %v1270 = vld [vmem:[%s344 + $0x111] sm:$0xff]
      %v1271 = vld [vmem:[%s344 + $0x121] sm:$0xff]
      %v1272 = vld [vmem:[%s344 + $0x129] sm:$0xff]
      %v1273 = vld [vmem:[%s344 + $0x139] sm:$0xff]
      %v1274 = vld [vmem:[%s344 + $0x141] sm:$0xff]
      %v1275 = vld [vmem:[%s344 + $0x151] sm:$0xff]
      %v1276 = vld [vmem:[%s344 + $0x159] sm:$0xff]
      %v1277 = vld [vmem:[%s344 + $0x169] sm:$0xff]
      %v1278 = vld [vmem:[%s344 + $0x171] sm:$0xff]
      %1311 = vrot.lane.b32.xlu0 %v1247, 52
      %v1312 = vpop.permute.xlu0 %1311
      %1313 = vrot.lane.b32.xlu0 %v1248, 52
      %v1314 = vpop.permute.xlu0 %1313
      %1315 = vrot.lane.b32.xlu0 %v1249, 52
      %v1316 = vpop.permute.xlu0 %1315
      %1317 = vrot.lane.b32.xlu0 %v1250, 52
      %v1318 = vpop.permute.xlu0 %1317
      %1319 = vrot.lane.b32.xlu0 %v1251, 52
      %v1320 = vpop.permute.xlu0 %1319
      %1321 = vrot.lane.b32.xlu0 %v1252, 52
      %v1322 = vpop.permute.xlu0 %1321
      %1323 = vrot.lane.b32.xlu0 %v1253, 52
      %v1324 = vpop.permute.xlu0 %1323
      %1325 = vrot.lane.b32.xlu0 %v1254, 52
      %v1326 = vpop.permute.xlu0 %1325
      %1327 = vrot.lane.b32.xlu0 %v1255, 52
      %v1328 = vpop.permute.xlu0 %1327
      %1329 = vrot.lane.b32.xlu0 %v1256, 52
      %v1330 = vpop.permute.xlu0 %1329
      %1331 = vrot.lane.b32.xlu0 %v1257, 52
      %v1332 = vpop.permute.xlu0 %1331
      %1333 = vrot.lane.b32.xlu0 %v1258, 52
      %v1334 = vpop.permute.xlu0 %1333
      %1335 = vrot.lane.b32.xlu0 %v1259, 52
      %v1336 = vpop.permute.xlu0 %1335
      %1337 = vrot.lane.b32.xlu0 %v1260, 52
      %v1338 = vpop.permute.xlu0 %1337
      %1339 = vrot.lane.b32.xlu0 %v1261, 52
      %v1340 = vpop.permute.xlu0 %1339
      %1341 = vrot.lane.b32.xlu0 %v1262, 52
      %v1342 = vpop.permute.xlu0 %1341
      %1343 = vrot.lane.b32.xlu0 %v1263, 52
      %v1344 = vpop.permute.xlu0 %1343
      %1345 = vrot.lane.b32.xlu0 %v1264, 52
      %v1346 = vpop.permute.xlu0 %1345
      %1347 = vrot.lane.b32.xlu0 %v1265, 52
      %v1348 = vpop.permute.xlu0 %1347
      %1349 = vrot.lane.b32.xlu0 %v1266, 52
      %v1350 = vpop.permute.xlu0 %1349
      %1351 = vrot.lane.b32.xlu0 %v1267, 52
      %v1352 = vpop.permute.xlu0 %1351
      %1353 = vrot.lane.b32.xlu0 %v1268, 52
      %v1354 = vpop.permute.xlu0 %1353
      %1355 = vrot.lane.b32.xlu0 %v1269, 52
      %v1356 = vpop.permute.xlu0 %1355
      %1357 = vrot.lane.b32.xlu0 %v1270, 52
      %v1358 = vpop.permute.xlu0 %1357
      %1359 = vrot.lane.b32.xlu0 %v1271, 52
      %v1360 = vpop.permute.xlu0 %1359
      %1361 = vrot.lane.b32.xlu0 %v1272, 52
      %v1362 = vpop.permute.xlu0 %1361
      %1363 = vrot.lane.b32.xlu0 %v1273, 52
      %v1364 = vpop.permute.xlu0 %1363
      %1365 = vrot.lane.b32.xlu0 %v1274, 52
      %v1366 = vpop.permute.xlu0 %1365
      %1367 = vrot.lane.b32.xlu0 %v1275, 52
      %v1368 = vpop.permute.xlu0 %1367
      %1369 = vrot.lane.b32.xlu0 %v1276, 52
      %v1370 = vpop.permute.xlu0 %1369
      %1371 = vrot.lane.b32.xlu0 %v1277, 52
      %v1372 = vpop.permute.xlu0 %1371
      %1373 = vrot.lane.b32.xlu0 %v1278, 52
      %v1374 = vpop.permute.xlu0 %1373
      %vm1407 = vcmask 531872
      %1408 = vst.msk [vmem:[#allocation3] sm:$0xff] %vm1407, %v1312
      %1409 = vst.msk [vmem:[#allocation3 + $0x8] sm:$0xff] %vm1407, %v1314
      %1410 = vst.msk [vmem:[#allocation3 + $0x10] sm:$0xff] %vm1407, %v1316
      %1411 = vst.msk [vmem:[#allocation3 + $0x18] sm:$0xff] %vm1407, %v1318
      %1412 = vst.msk [vmem:[#allocation3 + $0x20] sm:$0xff] %vm1407, %v1320
      %1413 = vst.msk [vmem:[#allocation3 + $0x28] sm:$0xff] %vm1407, %v1322
      %1414 = vst.msk [vmem:[#allocation3 + $0x30] sm:$0xff] %vm1407, %v1324
      %1415 = vst.msk [vmem:[#allocation3 + $0x38] sm:$0xff] %vm1407, %v1326
      %1416 = vst.msk [vmem:[#allocation3 + $0x40] sm:$0xff] %vm1407, %v1328
      %1417 = vst.msk [vmem:[#allocation3 + $0x48] sm:$0xff] %vm1407, %v1330
      %1418 = vst.msk [vmem:[#allocation3 + $0x50] sm:$0xff] %vm1407, %v1332
      %1419 = vst.msk [vmem:[#allocation3 + $0x58] sm:$0xff] %vm1407, %v1334
      %1420 = vst.msk [vmem:[#allocation3 + $0x60] sm:$0xff] %vm1407, %v1336
      %1421 = vst.msk [vmem:[#allocation3 + $0x68] sm:$0xff] %vm1407, %v1338
      %1422 = vst.msk [vmem:[#allocation3 + $0x70] sm:$0xff] %vm1407, %v1340
      %1423 = vst.msk [vmem:[#allocation3 + $0x78] sm:$0xff] %vm1407, %v1342
      %1424 = vst.msk [vmem:[#allocation3 + $0x80] sm:$0xff] %vm1407, %v1344
      %1425 = vst.msk [vmem:[#allocation3 + $0x88] sm:$0xff] %vm1407, %v1346
      %1426 = vst.msk [vmem:[#allocation3 + $0x90] sm:$0xff] %vm1407, %v1348
      %1427 = vst.msk [vmem:[#allocation3 + $0x98] sm:$0xff] %vm1407, %v1350
      %1428 = vst.msk [vmem:[#allocation3 + $0xa0] sm:$0xff] %vm1407, %v1352
      %1429 = vst.msk [vmem:[#allocation3 + $0xa8] sm:$0xff] %vm1407, %v1354
      %1430 = vst.msk [vmem:[#allocation3 + $0xb0] sm:$0xff] %vm1407, %v1356
      %1431 = vst.msk [vmem:[#allocation3 + $0xb8] sm:$0xff] %vm1407, %v1358
      %1432 = vst.msk [vmem:[#allocation3 + $0xc0] sm:$0xff] %vm1407, %v1360
      %1433 = vst.msk [vmem:[#allocation3 + $0xc8] sm:$0xff] %vm1407, %v1362
      %1434 = vst.msk [vmem:[#allocation3 + $0xd0] sm:$0xff] %vm1407, %v1364
      %1435 = vst.msk [vmem:[#allocation3 + $0xd8] sm:$0xff] %vm1407, %v1366
      %1436 = vst.msk [vmem:[#allocation3 + $0xe0] sm:$0xff] %vm1407, %v1368
      %1437 = vst.msk [vmem:[#allocation3 + $0xe8] sm:$0xff] %vm1407, %v1370
      %1438 = vst.msk [vmem:[#allocation3 + $0xf0] sm:$0xff] %vm1407, %v1372
      %1439 = vst.msk [vmem:[#allocation3 + $0xf8] sm:$0xff] %vm1407, %v1374
      %v1440 = vld [vmem:[%s344 + $0x2] sm:$0xff]
      %v1441 = vld [vmem:[%s344 + $0xa] sm:$0xff]
      %v1442 = vld [vmem:[%s344 + $0x1a] sm:$0xff]
      %v1443 = vld [vmem:[%s344 + $0x22] sm:$0xff]
      %v1444 = vld [vmem:[%s344 + $0x32] sm:$0xff]
      %v1445 = vld [vmem:[%s344 + $0x3a] sm:$0xff]
      %v1446 = vld [vmem:[%s344 + $0x4a] sm:$0xff]
      %v1447 = vld [vmem:[%s344 + $0x52] sm:$0xff]
      %v1448 = vld [vmem:[%s344 + $0x62] sm:$0xff]
      %v1449 = vld [vmem:[%s344 + $0x6a] sm:$0xff]
      %v1450 = vld [vmem:[%s344 + $0x7a] sm:$0xff]
      %v1451 = vld [vmem:[%s344 + $0x82] sm:$0xff]
      %v1452 = vld [vmem:[%s344 + $0x92] sm:$0xff]
      %v1453 = vld [vmem:[%s344 + $0x9a] sm:$0xff]
      %v1454 = vld [vmem:[%s344 + $0xaa] sm:$0xff]
      %v1455 = vld [vmem:[%s344 + $0xb2] sm:$0xff]
      %v1456 = vld [vmem:[%s344 + $0xc2] sm:$0xff]
      %v1457 = vld [vmem:[%s344 + $0xca] sm:$0xff]
      %v1458 = vld [vmem:[%s344 + $0xda] sm:$0xff]
      %v1459 = vld [vmem:[%s344 + $0xe2] sm:$0xff]
      %v1460 = vld [vmem:[%s344 + $0xf2] sm:$0xff]
      %v1461 = vld [vmem:[%s344 + $0xfa] sm:$0xff]
      %v1462 = vld [vmem:[%s344 + $0x10a] sm:$0xff]
      %v1463 = vld [vmem:[%s344 + $0x112] sm:$0xff]
      %v1464 = vld [vmem:[%s344 + $0x122] sm:$0xff]
      %v1465 = vld [vmem:[%s344 + $0x12a] sm:$0xff]
      %v1466 = vld [vmem:[%s344 + $0x13a] sm:$0xff]
      %v1467 = vld [vmem:[%s344 + $0x142] sm:$0xff]
      %v1468 = vld [vmem:[%s344 + $0x152] sm:$0xff]
      %v1469 = vld [vmem:[%s344 + $0x15a] sm:$0xff]
      %v1470 = vld [vmem:[%s344 + $0x16a] sm:$0xff]
      %v1471 = vld [vmem:[%s344 + $0x172] sm:$0xff]
      %1504 = vrot.lane.b32.xlu0 %v1440, 65
      %v1505 = vpop.permute.xlu0 %1504
      %1506 = vrot.lane.b32.xlu0 %v1441, 65
      %v1507 = vpop.permute.xlu0 %1506
      %1508 = vrot.lane.b32.xlu0 %v1442, 65
      %v1509 = vpop.permute.xlu0 %1508
      %1510 = vrot.lane.b32.xlu0 %v1443, 65
      %v1511 = vpop.permute.xlu0 %1510
      %1512 = vrot.lane.b32.xlu0 %v1444, 65
      %v1513 = vpop.permute.xlu0 %1512
      %1514 = vrot.lane.b32.xlu0 %v1445, 65
      %v1515 = vpop.permute.xlu0 %1514
      %1516 = vrot.lane.b32.xlu0 %v1446, 65
      %v1517 = vpop.permute.xlu0 %1516
      %1518 = vrot.lane.b32.xlu0 %v1447, 65
      %v1519 = vpop.permute.xlu0 %1518
      %1520 = vrot.lane.b32.xlu0 %v1448, 65
      %v1521 = vpop.permute.xlu0 %1520
      %1522 = vrot.lane.b32.xlu0 %v1449, 65
      %v1523 = vpop.permute.xlu0 %1522
      %1524 = vrot.lane.b32.xlu0 %v1450, 65
      %v1525 = vpop.permute.xlu0 %1524
      %1526 = vrot.lane.b32.xlu0 %v1451, 65
      %v1527 = vpop.permute.xlu0 %1526
      %1528 = vrot.lane.b32.xlu0 %v1452, 65
      %v1529 = vpop.permute.xlu0 %1528
      %1530 = vrot.lane.b32.xlu0 %v1453, 65
      %v1531 = vpop.permute.xlu0 %1530
      %1532 = vrot.lane.b32.xlu0 %v1454, 65
      %v1533 = vpop.permute.xlu0 %1532
      %1534 = vrot.lane.b32.xlu0 %v1455, 65
      %v1535 = vpop.permute.xlu0 %1534
      %1536 = vrot.lane.b32.xlu0 %v1456, 65
      %v1537 = vpop.permute.xlu0 %1536
      %1538 = vrot.lane.b32.xlu0 %v1457, 65
      %v1539 = vpop.permute.xlu0 %1538
      %1540 = vrot.lane.b32.xlu0 %v1458, 65
      %v1541 = vpop.permute.xlu0 %1540
      %1542 = vrot.lane.b32.xlu0 %v1459, 65
      %v1543 = vpop.permute.xlu0 %1542
      %1544 = vrot.lane.b32.xlu0 %v1460, 65
      %v1545 = vpop.permute.xlu0 %1544
      %1546 = vrot.lane.b32.xlu0 %v1461, 65
      %v1547 = vpop.permute.xlu0 %1546
      %1548 = vrot.lane.b32.xlu0 %v1462, 65
      %v1549 = vpop.permute.xlu0 %1548
      %1550 = vrot.lane.b32.xlu0 %v1463, 65
      %v1551 = vpop.permute.xlu0 %1550
      %1552 = vrot.lane.b32.xlu0 %v1464, 65
      %v1553 = vpop.permute.xlu0 %1552
      %1554 = vrot.lane.b32.xlu0 %v1465, 65
      %v1555 = vpop.permute.xlu0 %1554
      %1556 = vrot.lane.b32.xlu0 %v1466, 65
      %v1557 = vpop.permute.xlu0 %1556
      %1558 = vrot.lane.b32.xlu0 %v1467, 65
      %v1559 = vpop.permute.xlu0 %1558
      %1560 = vrot.lane.b32.xlu0 %v1468, 65
      %v1561 = vpop.permute.xlu0 %1560
      %1562 = vrot.lane.b32.xlu0 %v1469, 65
      %v1563 = vpop.permute.xlu0 %1562
      %1564 = vrot.lane.b32.xlu0 %v1470, 65
      %v1565 = vpop.permute.xlu0 %1564
      %1566 = vrot.lane.b32.xlu0 %v1471, 65
      %v1567 = vpop.permute.xlu0 %1566
      %vm1600 = vcmask 638472
      %1601 = vst.msk [vmem:[#allocation3] sm:$0xff] %vm1600, %v1505
      %1602 = vst.msk [vmem:[#allocation3 + $0x8] sm:$0xff] %vm1600, %v1507
      %1603 = vst.msk [vmem:[#allocation3 + $0x10] sm:$0xff] %vm1600, %v1509
      %1604 = vst.msk [vmem:[#allocation3 + $0x18] sm:$0xff] %vm1600, %v1511
      %1605 = vst.msk [vmem:[#allocation3 + $0x20] sm:$0xff] %vm1600, %v1513
      %1606 = vst.msk [vmem:[#allocation3 + $0x28] sm:$0xff] %vm1600, %v1515
      %1607 = vst.msk [vmem:[#allocation3 + $0x30] sm:$0xff] %vm1600, %v1517
      %1608 = vst.msk [vmem:[#allocation3 + $0x38] sm:$0xff] %vm1600, %v1519
      %1609 = vst.msk [vmem:[#allocation3 + $0x40] sm:$0xff] %vm1600, %v1521
      %1610 = vst.msk [vmem:[#allocation3 + $0x48] sm:$0xff] %vm1600, %v1523
      %1611 = vst.msk [vmem:[#allocation3 + $0x50] sm:$0xff] %vm1600, %v1525
      %1612 = vst.msk [vmem:[#allocation3 + $0x58] sm:$0xff] %vm1600, %v1527
      %1613 = vst.msk [vmem:[#allocation3 + $0x60] sm:$0xff] %vm1600, %v1529
      %1614 = vst.msk [vmem:[#allocation3 + $0x68] sm:$0xff] %vm1600, %v1531
      %1615 = vst.msk [vmem:[#allocation3 + $0x70] sm:$0xff] %vm1600, %v1533
      %1616 = vst.msk [vmem:[#allocation3 + $0x78] sm:$0xff] %vm1600, %v1535
      %1617 = vst.msk [vmem:[#allocation3 + $0x80] sm:$0xff] %vm1600, %v1537
      %1618 = vst.msk [vmem:[#allocation3 + $0x88] sm:$0xff] %vm1600, %v1539
      %1619 = vst.msk [vmem:[#allocation3 + $0x90] sm:$0xff] %vm1600, %v1541
      %1620 = vst.msk [vmem:[#allocation3 + $0x98] sm:$0xff] %vm1600, %v1543
      %1621 = vst.msk [vmem:[#allocation3 + $0xa0] sm:$0xff] %vm1600, %v1545
      %1622 = vst.msk [vmem:[#allocation3 + $0xa8] sm:$0xff] %vm1600, %v1547
      %1623 = vst.msk [vmem:[#allocation3 + $0xb0] sm:$0xff] %vm1600, %v1549
      %1624 = vst.msk [vmem:[#allocation3 + $0xb8] sm:$0xff] %vm1600, %v1551
      %1625 = vst.msk [vmem:[#allocation3 + $0xc0] sm:$0xff] %vm1600, %v1553
      %1626 = vst.msk [vmem:[#allocation3 + $0xc8] sm:$0xff] %vm1600, %v1555
      %1627 = vst.msk [vmem:[#allocation3 + $0xd0] sm:$0xff] %vm1600, %v1557
      %1628 = vst.msk [vmem:[#allocation3 + $0xd8] sm:$0xff] %vm1600, %v1559
      %1629 = vst.msk [vmem:[#allocation3 + $0xe0] sm:$0xff] %vm1600, %v1561
      %1630 = vst.msk [vmem:[#allocation3 + $0xe8] sm:$0xff] %vm1600, %v1563
      %1631 = vst.msk [vmem:[#allocation3 + $0xf0] sm:$0xff] %vm1600, %v1565
      %1632 = vst.msk [vmem:[#allocation3 + $0xf8] sm:$0xff] %vm1600, %v1567
      %s1633 = scalar_lea.vmem [#allocation2], 48
      %v1634 = vld [vmem:[%s1633] sm:$0xff]
      %v1635 = vld [vmem:[%s1633 + $0x8] sm:$0xff]
      %v1636 = vld [vmem:[%s1633 + $0x18] sm:$0xff]
      %v1637 = vld [vmem:[%s1633 + $0x20] sm:$0xff]
      %v1638 = vld [vmem:[%s1633 + $0x30] sm:$0xff]
      %v1639 = vld [vmem:[%s1633 + $0x38] sm:$0xff]
      %v1640 = vld [vmem:[%s1633 + $0x48] sm:$0xff]
      %v1641 = vld [vmem:[%s1633 + $0x50] sm:$0xff]
      %v1642 = vld [vmem:[%s1633 + $0x60] sm:$0xff]
      %v1643 = vld [vmem:[%s1633 + $0x68] sm:$0xff]
      %v1644 = vld [vmem:[%s1633 + $0x78] sm:$0xff]
      %v1645 = vld [vmem:[%s1633 + $0x80] sm:$0xff]
      %v1646 = vld [vmem:[%s1633 + $0x90] sm:$0xff]
      %v1647 = vld [vmem:[%s1633 + $0x98] sm:$0xff]
      %v1648 = vld [vmem:[%s1633 + $0xa8] sm:$0xff]
      %v1649 = vld [vmem:[%s1633 + $0xb0] sm:$0xff]
      %v1650 = vld [vmem:[%s1633 + $0xc0] sm:$0xff]
      %v1651 = vld [vmem:[%s1633 + $0xc8] sm:$0xff]
      %v1652 = vld [vmem:[%s1633 + $0xd8] sm:$0xff]
      %v1653 = vld [vmem:[%s1633 + $0xe0] sm:$0xff]
      %v1654 = vld [vmem:[%s1633 + $0xf0] sm:$0xff]
      %v1655 = vld [vmem:[%s1633 + $0xf8] sm:$0xff]
      %v1656 = vld [vmem:[%s1633 + $0x108] sm:$0xff]
      %v1657 = vld [vmem:[%s1633 + $0x110] sm:$0xff]
      %v1658 = vld [vmem:[%s1633 + $0x120] sm:$0xff]
      %v1659 = vld [vmem:[%s1633 + $0x128] sm:$0xff]
      %v1660 = vld [vmem:[%s1633 + $0x138] sm:$0xff]
      %v1661 = vld [vmem:[%s1633 + $0x140] sm:$0xff]
      %v1662 = vld [vmem:[%s1633 + $0x150] sm:$0xff]
      %v1663 = vld [vmem:[%s1633 + $0x158] sm:$0xff]
      %v1664 = vld [vmem:[%s1633 + $0x168] sm:$0xff]
      %v1665 = vld [vmem:[%s1633 + $0x170] sm:$0xff]
      %1698 = vrot.lane.b32.xlu0 %v1634, 78
      %v1699 = vpop.permute.xlu0 %1698
      %1700 = vrot.lane.b32.xlu0 %v1635, 78
      %v1701 = vpop.permute.xlu0 %1700
      %1702 = vrot.lane.b32.xlu0 %v1636, 78
      %v1703 = vpop.permute.xlu0 %1702
      %1704 = vrot.lane.b32.xlu0 %v1637, 78
      %v1705 = vpop.permute.xlu0 %1704
      %1706 = vrot.lane.b32.xlu0 %v1638, 78
      %v1707 = vpop.permute.xlu0 %1706
      %1708 = vrot.lane.b32.xlu0 %v1639, 78
      %v1709 = vpop.permute.xlu0 %1708
      %1710 = vrot.lane.b32.xlu0 %v1640, 78
      %v1711 = vpop.permute.xlu0 %1710
      %1712 = vrot.lane.b32.xlu0 %v1641, 78
      %v1713 = vpop.permute.xlu0 %1712
      %1714 = vrot.lane.b32.xlu0 %v1642, 78
      %v1715 = vpop.permute.xlu0 %1714
      %1716 = vrot.lane.b32.xlu0 %v1643, 78
      %v1717 = vpop.permute.xlu0 %1716
      %1718 = vrot.lane.b32.xlu0 %v1644, 78
      %v1719 = vpop.permute.xlu0 %1718
      %1720 = vrot.lane.b32.xlu0 %v1645, 78
      %v1721 = vpop.permute.xlu0 %1720
      %1722 = vrot.lane.b32.xlu0 %v1646, 78
      %v1723 = vpop.permute.xlu0 %1722
      %1724 = vrot.lane.b32.xlu0 %v1647, 78
      %v1725 = vpop.permute.xlu0 %1724
      %1726 = vrot.lane.b32.xlu0 %v1648, 78
      %v1727 = vpop.permute.xlu0 %1726
      %1728 = vrot.lane.b32.xlu0 %v1649, 78
      %v1729 = vpop.permute.xlu0 %1728
      %1730 = vrot.lane.b32.xlu0 %v1650, 78
      %v1731 = vpop.permute.xlu0 %1730
      %1732 = vrot.lane.b32.xlu0 %v1651, 78
      %v1733 = vpop.permute.xlu0 %1732
      %1734 = vrot.lane.b32.xlu0 %v1652, 78
      %v1735 = vpop.permute.xlu0 %1734
      %1736 = vrot.lane.b32.xlu0 %v1653, 78
      %v1737 = vpop.permute.xlu0 %1736
      %1738 = vrot.lane.b32.xlu0 %v1654, 78
      %v1739 = vpop.permute.xlu0 %1738
      %1740 = vrot.lane.b32.xlu0 %v1655, 78
      %v1741 = vpop.permute.xlu0 %1740
      %1742 = vrot.lane.b32.xlu0 %v1656, 78
      %v1743 = vpop.permute.xlu0 %1742
      %1744 = vrot.lane.b32.xlu0 %v1657, 78
      %v1745 = vpop.permute.xlu0 %1744
      %1746 = vrot.lane.b32.xlu0 %v1658, 78
      %v1747 = vpop.permute.xlu0 %1746
      %1748 = vrot.lane.b32.xlu0 %v1659, 78
      %v1749 = vpop.permute.xlu0 %1748
      %1750 = vrot.lane.b32.xlu0 %v1660, 78
      %v1751 = vpop.permute.xlu0 %1750
      %1752 = vrot.lane.b32.xlu0 %v1661, 78
      %v1753 = vpop.permute.xlu0 %1752
      %1754 = vrot.lane.b32.xlu0 %v1662, 78
      %v1755 = vpop.permute.xlu0 %1754
      %1756 = vrot.lane.b32.xlu0 %v1663, 78
      %v1757 = vpop.permute.xlu0 %1756
      %1758 = vrot.lane.b32.xlu0 %v1664, 78
      %v1759 = vpop.permute.xlu0 %1758
      %1760 = vrot.lane.b32.xlu0 %v1665, 78
      %v1761 = vpop.permute.xlu0 %1760
      %vm1794 = vcmask 745072
      %1795 = vst.msk [vmem:[#allocation3] sm:$0xff] %vm1794, %v1699
      %1796 = vst.msk [vmem:[#allocation3 + $0x8] sm:$0xff] %vm1794, %v1701
      %1797 = vst.msk [vmem:[#allocation3 + $0x10] sm:$0xff] %vm1794, %v1703
      %1798 = vst.msk [vmem:[#allocation3 + $0x18] sm:$0xff] %vm1794, %v1705
      %1799 = vst.msk [vmem:[#allocation3 + $0x20] sm:$0xff] %vm1794, %v1707
      %1800 = vst.msk [vmem:[#allocation3 + $0x28] sm:$0xff] %vm1794, %v1709
      %1801 = vst.msk [vmem:[#allocation3 + $0x30] sm:$0xff] %vm1794, %v1711
      %1802 = vst.msk [vmem:[#allocation3 + $0x38] sm:$0xff] %vm1794, %v1713
      %1803 = vst.msk [vmem:[#allocation3 + $0x40] sm:$0xff] %vm1794, %v1715
      %1804 = vst.msk [vmem:[#allocation3 + $0x48] sm:$0xff] %vm1794, %v1717
      %1805 = vst.msk [vmem:[#allocation3 + $0x50] sm:$0xff] %vm1794, %v1719
      %1806 = vst.msk [vmem:[#allocation3 + $0x58] sm:$0xff] %vm1794, %v1721
      %1807 = vst.msk [vmem:[#allocation3 + $0x60] sm:$0xff] %vm1794, %v1723
      %1808 = vst.msk [vmem:[#allocation3 + $0x68] sm:$0xff] %vm1794, %v1725
      %1809 = vst.msk [vmem:[#allocation3 + $0x70] sm:$0xff] %vm1794, %v1727
      %1810 = vst.msk [vmem:[#allocation3 + $0x78] sm:$0xff] %vm1794, %v1729
      %1811 = vst.msk [vmem:[#allocation3 + $0x80] sm:$0xff] %vm1794, %v1731
      %1812 = vst.msk [vmem:[#allocation3 + $0x88] sm:$0xff] %vm1794, %v1733
      %1813 = vst.msk [vmem:[#allocation3 + $0x90] sm:$0xff] %vm1794, %v1735
      %1814 = vst.msk [vmem:[#allocation3 + $0x98] sm:$0xff] %vm1794, %v1737
      %1815 = vst.msk [vmem:[#allocation3 + $0xa0] sm:$0xff] %vm1794, %v1739
      %1816 = vst.msk [vmem:[#allocation3 + $0xa8] sm:$0xff] %vm1794, %v1741
      %1817 = vst.msk [vmem:[#allocation3 + $0xb0] sm:$0xff] %vm1794, %v1743
      %1818 = vst.msk [vmem:[#allocation3 + $0xb8] sm:$0xff] %vm1794, %v1745
      %1819 = vst.msk [vmem:[#allocation3 + $0xc0] sm:$0xff] %vm1794, %v1747
      %1820 = vst.msk [vmem:[#allocation3 + $0xc8] sm:$0xff] %vm1794, %v1749
      %1821 = vst.msk [vmem:[#allocation3 + $0xd0] sm:$0xff] %vm1794, %v1751
      %1822 = vst.msk [vmem:[#allocation3 + $0xd8] sm:$0xff] %vm1794, %v1753
      %1823 = vst.msk [vmem:[#allocation3 + $0xe0] sm:$0xff] %vm1794, %v1755
      %1824 = vst.msk [vmem:[#allocation3 + $0xe8] sm:$0xff] %vm1794, %v1757
      %1825 = vst.msk [vmem:[#allocation3 + $0xf0] sm:$0xff] %vm1794, %v1759
      %1826 = vst.msk [vmem:[#allocation3 + $0xf8] sm:$0xff] %vm1794, %v1761
      %v1827 = vld [vmem:[%s1633 + $0x1] sm:$0xff]
      %v1828 = vld [vmem:[%s1633 + $0x9] sm:$0xff]
      %v1829 = vld [vmem:[%s1633 + $0x19] sm:$0xff]
      %v1830 = vld [vmem:[%s1633 + $0x21] sm:$0xff]
      %v1831 = vld [vmem:[%s1633 + $0x31] sm:$0xff]
      %v1832 = vld [vmem:[%s1633 + $0x39] sm:$0xff]
      %v1833 = vld [vmem:[%s1633 + $0x49] sm:$0xff]
      %v1834 = vld [vmem:[%s1633 + $0x51] sm:$0xff]
      %v1835 = vld [vmem:[%s1633 + $0x61] sm:$0xff]
      %v1836 = vld [vmem:[%s1633 + $0x69] sm:$0xff]
      %v1837 = vld [vmem:[%s1633 + $0x79] sm:$0xff]
      %v1838 = vld [vmem:[%s1633 + $0x81] sm:$0xff]
      %v1839 = vld [vmem:[%s1633 + $0x91] sm:$0xff]
      %v1840 = vld [vmem:[%s1633 + $0x99] sm:$0xff]
      %v1841 = vld [vmem:[%s1633 + $0xa9] sm:$0xff]
      %v1842 = vld [vmem:[%s1633 + $0xb1] sm:$0xff]
      %v1843 = vld [vmem:[%s1633 + $0xc1] sm:$0xff]
      %v1844 = vld [vmem:[%s1633 + $0xc9] sm:$0xff]
      %v1845 = vld [vmem:[%s1633 + $0xd9] sm:$0xff]
      %v1846 = vld [vmem:[%s1633 + $0xe1] sm:$0xff]
      %v1847 = vld [vmem:[%s1633 + $0xf1] sm:$0xff]
      %v1848 = vld [vmem:[%s1633 + $0xf9] sm:$0xff]
      %v1849 = vld [vmem:[%s1633 + $0x109] sm:$0xff]
      %v1850 = vld [vmem:[%s1633 + $0x111] sm:$0xff]
      %v1851 = vld [vmem:[%s1633 + $0x121] sm:$0xff]
      %v1852 = vld [vmem:[%s1633 + $0x129] sm:$0xff]
      %v1853 = vld [vmem:[%s1633 + $0x139] sm:$0xff]
      %v1854 = vld [vmem:[%s1633 + $0x141] sm:$0xff]
      %v1855 = vld [vmem:[%s1633 + $0x151] sm:$0xff]
      %v1856 = vld [vmem:[%s1633 + $0x159] sm:$0xff]
      %v1857 = vld [vmem:[%s1633 + $0x169] sm:$0xff]
      %v1858 = vld [vmem:[%s1633 + $0x171] sm:$0xff]
      %1891 = vrot.lane.b32.xlu0 %v1827, 91
      %v1892 = vpop.permute.xlu0 %1891
      %1893 = vrot.lane.b32.xlu0 %v1828, 91
      %v1894 = vpop.permute.xlu0 %1893
      %1895 = vrot.lane.b32.xlu0 %v1829, 91
      %v1896 = vpop.permute.xlu0 %1895
      %1897 = vrot.lane.b32.xlu0 %v1830, 91
      %v1898 = vpop.permute.xlu0 %1897
      %1899 = vrot.lane.b32.xlu0 %v1831, 91
      %v1900 = vpop.permute.xlu0 %1899
      %1901 = vrot.lane.b32.xlu0 %v1832, 91
      %v1902 = vpop.permute.xlu0 %1901
      %1903 = vrot.lane.b32.xlu0 %v1833, 91
      %v1904 = vpop.permute.xlu0 %1903
      %1905 = vrot.lane.b32.xlu0 %v1834, 91
      %v1906 = vpop.permute.xlu0 %1905
      %1907 = vrot.lane.b32.xlu0 %v1835, 91
      %v1908 = vpop.permute.xlu0 %1907
      %1909 = vrot.lane.b32.xlu0 %v1836, 91
      %v1910 = vpop.permute.xlu0 %1909
      %1911 = vrot.lane.b32.xlu0 %v1837, 91
      %v1912 = vpop.permute.xlu0 %1911
      %1913 = vrot.lane.b32.xlu0 %v1838, 91
      %v1914 = vpop.permute.xlu0 %1913
      %1915 = vrot.lane.b32.xlu0 %v1839, 91
      %v1916 = vpop.permute.xlu0 %1915
      %1917 = vrot.lane.b32.xlu0 %v1840, 91
      %v1918 = vpop.permute.xlu0 %1917
      %1919 = vrot.lane.b32.xlu0 %v1841, 91
      %v1920 = vpop.permute.xlu0 %1919
      %1921 = vrot.lane.b32.xlu0 %v1842, 91
      %v1922 = vpop.permute.xlu0 %1921
      %1923 = vrot.lane.b32.xlu0 %v1843, 91
      %v1924 = vpop.permute.xlu0 %1923
      %1925 = vrot.lane.b32.xlu0 %v1844, 91
      %v1926 = vpop.permute.xlu0 %1925
      %1927 = vrot.lane.b32.xlu0 %v1845, 91
      %v1928 = vpop.permute.xlu0 %1927
      %1929 = vrot.lane.b32.xlu0 %v1846, 91
      %v1930 = vpop.permute.xlu0 %1929
      %1931 = vrot.lane.b32.xlu0 %v1847, 91
      %v1932 = vpop.permute.xlu0 %1931
      %1933 = vrot.lane.b32.xlu0 %v1848, 91
      %v1934 = vpop.permute.xlu0 %1933
      %1935 = vrot.lane.b32.xlu0 %v1849, 91
      %v1936 = vpop.permute.xlu0 %1935
      %1937 = vrot.lane.b32.xlu0 %v1850, 91
      %v1938 = vpop.permute.xlu0 %1937
      %1939 = vrot.lane.b32.xlu0 %v1851, 91
      %v1940 = vpop.permute.xlu0 %1939
      %1941 = vrot.lane.b32.xlu0 %v1852, 91
      %v1942 = vpop.permute.xlu0 %1941
      %1943 = vrot.lane.b32.xlu0 %v1853, 91
      %v1944 = vpop.permute.xlu0 %1943
      %1945 = vrot.lane.b32.xlu0 %v1854, 91
      %v1946 = vpop.permute.xlu0 %1945
      %1947 = vrot.lane.b32.xlu0 %v1855, 91
      %v1948 = vpop.permute.xlu0 %1947
      %1949 = vrot.lane.b32.xlu0 %v1856, 91
      %v1950 = vpop.permute.xlu0 %1949
      %1951 = vrot.lane.b32.xlu0 %v1857, 91
      %v1952 = vpop.permute.xlu0 %1951
      %1953 = vrot.lane.b32.xlu0 %v1858, 91
      %v1954 = vpop.permute.xlu0 %1953
      %vm1987 = vcmask 851672
      %1988 = vst.msk [vmem:[#allocation3] sm:$0xff] %vm1987, %v1892
      %1989 = vst.msk [vmem:[#allocation3 + $0x8] sm:$0xff] %vm1987, %v1894
      %1990 = vst.msk [vmem:[#allocation3 + $0x10] sm:$0xff] %vm1987, %v1896
      %1991 = vst.msk [vmem:[#allocation3 + $0x18] sm:$0xff] %vm1987, %v1898
      %1992 = vst.msk [vmem:[#allocation3 + $0x20] sm:$0xff] %vm1987, %v1900
      %1993 = vst.msk [vmem:[#allocation3 + $0x28] sm:$0xff] %vm1987, %v1902
      %1994 = vst.msk [vmem:[#allocation3 + $0x30] sm:$0xff] %vm1987, %v1904
      %1995 = vst.msk [vmem:[#allocation3 + $0x38] sm:$0xff] %vm1987, %v1906
      %1996 = vst.msk [vmem:[#allocation3 + $0x40] sm:$0xff] %vm1987, %v1908
      %1997 = vst.msk [vmem:[#allocation3 + $0x48] sm:$0xff] %vm1987, %v1910
      %1998 = vst.msk [vmem:[#allocation3 + $0x50] sm:$0xff] %vm1987, %v1912
      %1999 = vst.msk [vmem:[#allocation3 + $0x58] sm:$0xff] %vm1987, %v1914
      %2000 = vst.msk [vmem:[#allocation3 + $0x60] sm:$0xff] %vm1987, %v1916
      %2001 = vst.msk [vmem:[#allocation3 + $0x68] sm:$0xff] %vm1987, %v1918
      %2002 = vst.msk [vmem:[#allocation3 + $0x70] sm:$0xff] %vm1987, %v1920
      %2003 = vst.msk [vmem:[#allocation3 + $0x78] sm:$0xff] %vm1987, %v1922
      %2004 = vst.msk [vmem:[#allocation3 + $0x80] sm:$0xff] %vm1987, %v1924
      %2005 = vst.msk [vmem:[#allocation3 + $0x88] sm:$0xff] %vm1987, %v1926
      %2006 = vst.msk [vmem:[#allocation3 + $0x90] sm:$0xff] %vm1987, %v1928
      %2007 = vst.msk [vmem:[#allocation3 + $0x98] sm:$0xff] %vm1987, %v1930
      %2008 = vst.msk [vmem:[#allocation3 + $0xa0] sm:$0xff] %vm1987, %v1932
      %2009 = vst.msk [vmem:[#allocation3 + $0xa8] sm:$0xff] %vm1987, %v1934
      %2010 = vst.msk [vmem:[#allocation3 + $0xb0] sm:$0xff] %vm1987, %v1936
      %2011 = vst.msk [vmem:[#allocation3 + $0xb8] sm:$0xff] %vm1987, %v1938
      %2012 = vst.msk [vmem:[#allocation3 + $0xc0] sm:$0xff] %vm1987, %v1940
      %2013 = vst.msk [vmem:[#allocation3 + $0xc8] sm:$0xff] %vm1987, %v1942
      %2014 = vst.msk [vmem:[#allocation3 + $0xd0] sm:$0xff] %vm1987, %v1944
      %2015 = vst.msk [vmem:[#allocation3 + $0xd8] sm:$0xff] %vm1987, %v1946
      %2016 = vst.msk [vmem:[#allocation3 + $0xe0] sm:$0xff] %vm1987, %v1948
      %2017 = vst.msk [vmem:[#allocation3 + $0xe8] sm:$0xff] %vm1987, %v1950
      %2018 = vst.msk [vmem:[#allocation3 + $0xf0] sm:$0xff] %vm1987, %v1952
      %2019 = vst.msk [vmem:[#allocation3 + $0xf8] sm:$0xff] %vm1987, %v1954
      %v2020 = vld [vmem:[%s1633 + $0x2] sm:$0xff]
      %v2021 = vld [vmem:[%s1633 + $0xa] sm:$0xff]
      %v2022 = vld [vmem:[%s1633 + $0x1a] sm:$0xff]
      %v2023 = vld [vmem:[%s1633 + $0x22] sm:$0xff]
      %v2024 = vld [vmem:[%s1633 + $0x32] sm:$0xff]
      %v2025 = vld [vmem:[%s1633 + $0x3a] sm:$0xff]
      %v2026 = vld [vmem:[%s1633 + $0x4a] sm:$0xff]
      %v2027 = vld [vmem:[%s1633 + $0x52] sm:$0xff]
      %v2028 = vld [vmem:[%s1633 + $0x62] sm:$0xff]
      %v2029 = vld [vmem:[%s1633 + $0x6a] sm:$0xff]
      %v2030 = vld [vmem:[%s1633 + $0x7a] sm:$0xff]
      %v2031 = vld [vmem:[%s1633 + $0x82] sm:$0xff]
      %v2032 = vld [vmem:[%s1633 + $0x92] sm:$0xff]
      %v2033 = vld [vmem:[%s1633 + $0x9a] sm:$0xff]
      %v2034 = vld [vmem:[%s1633 + $0xaa] sm:$0xff]
      %v2035 = vld [vmem:[%s1633 + $0xb2] sm:$0xff]
      %v2036 = vld [vmem:[%s1633 + $0xc2] sm:$0xff]
      %v2037 = vld [vmem:[%s1633 + $0xca] sm:$0xff]
      %v2038 = vld [vmem:[%s1633 + $0xda] sm:$0xff]
      %v2039 = vld [vmem:[%s1633 + $0xe2] sm:$0xff]
      %v2040 = vld [vmem:[%s1633 + $0xf2] sm:$0xff]
      %v2041 = vld [vmem:[%s1633 + $0xfa] sm:$0xff]
      %v2042 = vld [vmem:[%s1633 + $0x10a] sm:$0xff]
      %v2043 = vld [vmem:[%s1633 + $0x112] sm:$0xff]
      %v2044 = vld [vmem:[%s1633 + $0x122] sm:$0xff]
      %v2045 = vld [vmem:[%s1633 + $0x12a] sm:$0xff]
      %v2046 = vld [vmem:[%s1633 + $0x13a] sm:$0xff]
      %v2047 = vld [vmem:[%s1633 + $0x142] sm:$0xff]
      %v2048 = vld [vmem:[%s1633 + $0x152] sm:$0xff]
      %v2049 = vld [vmem:[%s1633 + $0x15a] sm:$0xff]
      %v2050 = vld [vmem:[%s1633 + $0x16a] sm:$0xff]
      %v2051 = vld [vmem:[%s1633 + $0x172] sm:$0xff]
      %2084 = vrot.lane.b32.xlu0 %v2020, 104
      %v2085 = vpop.permute.xlu0 %2084
      %2086 = vrot.lane.b32.xlu0 %v2021, 104
      %v2087 = vpop.permute.xlu0 %2086
      %2088 = vrot.lane.b32.xlu0 %v2022, 104
      %v2089 = vpop.permute.xlu0 %2088
      %2090 = vrot.lane.b32.xlu0 %v2023, 104
      %v2091 = vpop.permute.xlu0 %2090
      %2092 = vrot.lane.b32.xlu0 %v2024, 104
      %v2093 = vpop.permute.xlu0 %2092
      %2094 = vrot.lane.b32.xlu0 %v2025, 104
      %v2095 = vpop.permute.xlu0 %2094
      %2096 = vrot.lane.b32.xlu0 %v2026, 104
      %v2097 = vpop.permute.xlu0 %2096
      %2098 = vrot.lane.b32.xlu0 %v2027, 104
      %v2099 = vpop.permute.xlu0 %2098
      %2100 = vrot.lane.b32.xlu0 %v2028, 104
      %v2101 = vpop.permute.xlu0 %2100
      %2102 = vrot.lane.b32.xlu0 %v2029, 104
      %v2103 = vpop.permute.xlu0 %2102
      %2104 = vrot.lane.b32.xlu0 %v2030, 104
      %v2105 = vpop.permute.xlu0 %2104
      %2106 = vrot.lane.b32.xlu0 %v2031, 104
      %v2107 = vpop.permute.xlu0 %2106
      %2108 = vrot.lane.b32.xlu0 %v2032, 104
      %v2109 = vpop.permute.xlu0 %2108
      %2110 = vrot.lane.b32.xlu0 %v2033, 104
      %v2111 = vpop.permute.xlu0 %2110
      %2112 = vrot.lane.b32.xlu0 %v2034, 104
      %v2113 = vpop.permute.xlu0 %2112
      %2114 = vrot.lane.b32.xlu0 %v2035, 104
      %v2115 = vpop.permute.xlu0 %2114
      %2116 = vrot.lane.b32.xlu0 %v2036, 104
      %v2117 = vpop.permute.xlu0 %2116
      %2118 = vrot.lane.b32.xlu0 %v2037, 104
      %v2119 = vpop.permute.xlu0 %2118
      %2120 = vrot.lane.b32.xlu0 %v2038, 104
      %v2121 = vpop.permute.xlu0 %2120
      %2122 = vrot.lane.b32.xlu0 %v2039, 104
      %v2123 = vpop.permute.xlu0 %2122
      %2124 = vrot.lane.b32.xlu0 %v2040, 104
      %v2125 = vpop.permute.xlu0 %2124
      %2126 = vrot.lane.b32.xlu0 %v2041, 104
      %v2127 = vpop.permute.xlu0 %2126
      %2128 = vrot.lane.b32.xlu0 %v2042, 104
      %v2129 = vpop.permute.xlu0 %2128
      %2130 = vrot.lane.b32.xlu0 %v2043, 104
      %v2131 = vpop.permute.xlu0 %2130
      %2132 = vrot.lane.b32.xlu0 %v2044, 104
      %v2133 = vpop.permute.xlu0 %2132
      %2134 = vrot.lane.b32.xlu0 %v2045, 104
      %v2135 = vpop.permute.xlu0 %2134
      %2136 = vrot.lane.b32.xlu0 %v2046, 104
      %v2137 = vpop.permute.xlu0 %2136
      %2138 = vrot.lane.b32.xlu0 %v2047, 104
      %v2139 = vpop.permute.xlu0 %2138
      %2140 = vrot.lane.b32.xlu0 %v2048, 104
      %v2141 = vpop.permute.xlu0 %2140
      %2142 = vrot.lane.b32.xlu0 %v2049, 104
      %v2143 = vpop.permute.xlu0 %2142
      %2144 = vrot.lane.b32.xlu0 %v2050, 104
      %v2145 = vpop.permute.xlu0 %2144
      %2146 = vrot.lane.b32.xlu0 %v2051, 104
      %v2147 = vpop.permute.xlu0 %2146
      %vm2180 = vcmask 958272
      %2181 = vst.msk [vmem:[#allocation3] sm:$0xff] %vm2180, %v2085
      %2182 = vst.msk [vmem:[#allocation3 + $0x8] sm:$0xff] %vm2180, %v2087
      %2183 = vst.msk [vmem:[#allocation3 + $0x10] sm:$0xff] %vm2180, %v2089
      %2184 = vst.msk [vmem:[#allocation3 + $0x18] sm:$0xff] %vm2180, %v2091
      %2185 = vst.msk [vmem:[#allocation3 + $0x20] sm:$0xff] %vm2180, %v2093
      %2186 = vst.msk [vmem:[#allocation3 + $0x28] sm:$0xff] %vm2180, %v2095
      %2187 = vst.msk [vmem:[#allocation3 + $0x30] sm:$0xff] %vm2180, %v2097
      %2188 = vst.msk [vmem:[#allocation3 + $0x38] sm:$0xff] %vm2180, %v2099
      %2189 = vst.msk [vmem:[#allocation3 + $0x40] sm:$0xff] %vm2180, %v2101
      %2190 = vst.msk [vmem:[#allocation3 + $0x48] sm:$0xff] %vm2180, %v2103
      %2191 = vst.msk [vmem:[#allocation3 + $0x50] sm:$0xff] %vm2180, %v2105
      %2192 = vst.msk [vmem:[#allocation3 + $0x58] sm:$0xff] %vm2180, %v2107
      %2193 = vst.msk [vmem:[#allocation3 + $0x60] sm:$0xff] %vm2180, %v2109
      %2194 = vst.msk [vmem:[#allocation3 + $0x68] sm:$0xff] %vm2180, %v2111
      %2195 = vst.msk [vmem:[#allocation3 + $0x70] sm:$0xff] %vm2180, %v2113
      %2196 = vst.msk [vmem:[#allocation3 + $0x78] sm:$0xff] %vm2180, %v2115
      %2197 = vst.msk [vmem:[#allocation3 + $0x80] sm:$0xff] %vm2180, %v2117
      %2198 = vst.msk [vmem:[#allocation3 + $0x88] sm:$0xff] %vm2180, %v2119
      %2199 = vst.msk [vmem:[#allocation3 + $0x90] sm:$0xff] %vm2180, %v2121
      %2200 = vst.msk [vmem:[#allocation3 + $0x98] sm:$0xff] %vm2180, %v2123
      %2201 = vst.msk [vmem:[#allocation3 + $0xa0] sm:$0xff] %vm2180, %v2125
      %2202 = vst.msk [vmem:[#allocation3 + $0xa8] sm:$0xff] %vm2180, %v2127
      %2203 = vst.msk [vmem:[#allocation3 + $0xb0] sm:$0xff] %vm2180, %v2129
      %2204 = vst.msk [vmem:[#allocation3 + $0xb8] sm:$0xff] %vm2180, %v2131
      %2205 = vst.msk [vmem:[#allocation3 + $0xc0] sm:$0xff] %vm2180, %v2133
      %2206 = vst.msk [vmem:[#allocation3 + $0xc8] sm:$0xff] %vm2180, %v2135
      %2207 = vst.msk [vmem:[#allocation3 + $0xd0] sm:$0xff] %vm2180, %v2137
      %2208 = vst.msk [vmem:[#allocation3 + $0xd8] sm:$0xff] %vm2180, %v2139
      %2209 = vst.msk [vmem:[#allocation3 + $0xe0] sm:$0xff] %vm2180, %v2141
      %2210 = vst.msk [vmem:[#allocation3 + $0xe8] sm:$0xff] %vm2180, %v2143
      %2211 = vst.msk [vmem:[#allocation3 + $0xf0] sm:$0xff] %vm2180, %v2145
      %2212 = vst.msk [vmem:[#allocation3 + $0xf8] sm:$0xff] %vm2180, %v2147
      %v2213 = vld [vmem:[#allocation3] sm:$0xff]
      %v2214 = vld [vmem:[#allocation3 + $0x8] sm:$0xff]
      %v2215 = vld [vmem:[#allocation3 + $0x10] sm:$0xff]
      %v2216 = vld [vmem:[#allocation3 + $0x18] sm:$0xff]
      %v2217 = vld [vmem:[#allocation3 + $0x20] sm:$0xff]
      %v2218 = vld [vmem:[#allocation3 + $0x28] sm:$0xff]
      %v2219 = vld [vmem:[#allocation3 + $0x30] sm:$0xff]
      %v2220 = vld [vmem:[#allocation3 + $0x38] sm:$0xff]
      %v2221 = vld [vmem:[#allocation3 + $0x40] sm:$0xff]
      %v2222 = vld [vmem:[#allocation3 + $0x48] sm:$0xff]
      %v2223 = vld [vmem:[#allocation3 + $0x50] sm:$0xff]
      %v2224 = vld [vmem:[#allocation3 + $0x58] sm:$0xff]
      %v2225 = vld [vmem:[#allocation3 + $0x60] sm:$0xff]
      %v2226 = vld [vmem:[#allocation3 + $0x68] sm:$0xff]
      %v2227 = vld [vmem:[#allocation3 + $0x70] sm:$0xff]
      %v2228 = vld [vmem:[#allocation3 + $0x78] sm:$0xff]
      %v2229 = vld [vmem:[#allocation3 + $0x80] sm:$0xff]
      %v2230 = vld [vmem:[#allocation3 + $0x88] sm:$0xff]
      %v2231 = vld [vmem:[#allocation3 + $0x90] sm:$0xff]
      %v2232 = vld [vmem:[#allocation3 + $0x98] sm:$0xff]
      %v2233 = vld [vmem:[#allocation3 + $0xa0] sm:$0xff]
      %v2234 = vld [vmem:[#allocation3 + $0xa8] sm:$0xff]
      %v2235 = vld [vmem:[#allocation3 + $0xb0] sm:$0xff]
      %v2236 = vld [vmem:[#allocation3 + $0xb8] sm:$0xff]
      %v2237 = vld [vmem:[#allocation3 + $0xc0] sm:$0xff]
      %v2238 = vld [vmem:[#allocation3 + $0xc8] sm:$0xff]
      %v2239 = vld [vmem:[#allocation3 + $0xd0] sm:$0xff]
      %v2240 = vld [vmem:[#allocation3 + $0xd8] sm:$0xff]
      %v2241 = vld [vmem:[#allocation3 + $0xe0] sm:$0xff]
      %v2242 = vld [vmem:[#allocation3 + $0xe8] sm:$0xff]
      %v2243 = vld [vmem:[#allocation3 + $0xf0] sm:$0xff]
      %v2244 = vld [vmem:[#allocation3 + $0xf8] sm:$0xff]
      %v2245 = vld [vmem:[%s2] sm:$0xff]
      %v2246 = vld [vmem:[%s2 + $0x8] sm:$0xff]
      %v2247 = vld [vmem:[%s2 + $0x10] sm:$0xff]
      %v2248 = vld [vmem:[%s2 + $0x18] sm:$0xff]
      %v2249 = vld [vmem:[%s2 + $0x20] sm:$0xff]
      %v2250 = vld [vmem:[%s2 + $0x28] sm:$0xff]
      %v2251 = vld [vmem:[%s2 + $0x30] sm:$0xff]
      %v2252 = vld [vmem:[%s2 + $0x38] sm:$0xff]
      %v2253 = vld [vmem:[%s2 + $0x40] sm:$0xff]
      %v2254 = vld [vmem:[%s2 + $0x48] sm:$0xff]
      %v2255 = vld [vmem:[%s2 + $0x50] sm:$0xff]
      %v2256 = vld [vmem:[%s2 + $0x58] sm:$0xff]
      %v2257 = vld [vmem:[%s2 + $0x60] sm:$0xff]
      %v2258 = vld [vmem:[%s2 + $0x68] sm:$0xff]
      %v2259 = vld [vmem:[%s2 + $0x70] sm:$0x1f]
      %v2260 = vld [vmem:[%s3] sm:$0x1]
      %v2262 = vlaneseq
      %v2263 = vshrl.u32 %v2262, 7
      %v2264 = vsub.s32 0, %v2263
      %v2265 = vrot.slane %v2260, %v2264
      %vm2267 = vcmask 957440
      %v2269 = vsel %vm2267, %v2213, 0
      %v2272 = vsel %vm2267, %v2214, 0
      %v2275 = vsel %vm2267, %v2215, 0
      %v2278 = vsel %vm2267, %v2216, 0
      %v2281 = vsel %vm2267, %v2217, 0
      %v2284 = vsel %vm2267, %v2218, 0
      %v2287 = vsel %vm2267, %v2219, 0
      %v2290 = vsel %vm2267, %v2220, 0
      %v2293 = vsel %vm2267, %v2221, 0
      %v2296 = vsel %vm2267, %v2222, 0
      %v2299 = vsel %vm2267, %v2223, 0
      %v2302 = vsel %vm2267, %v2224, 0
      %v2305 = vsel %vm2267, %v2225, 0
      %v2308 = vsel %vm2267, %v2226, 0
      %v2311 = vsel %vm2267, %v2227, 0
      %v2314 = vsel %vm2267, %v2228, 0
      %v2317 = vsel %vm2267, %v2229, 0
      %v2320 = vsel %vm2267, %v2230, 0
      %v2323 = vsel %vm2267, %v2231, 0
      %v2326 = vsel %vm2267, %v2232, 0
      %v2329 = vsel %vm2267, %v2233, 0
      %v2332 = vsel %vm2267, %v2234, 0
      %v2335 = vsel %vm2267, %v2235, 0
      %v2338 = vsel %vm2267, %v2236, 0
      %v2341 = vsel %vm2267, %v2237, 0
      %v2344 = vsel %vm2267, %v2238, 0
      %v2347 = vsel %vm2267, %v2239, 0
      %v2350 = vsel %vm2267, %v2240, 0
      %v2353 = vsel %vm2267, %v2241, 0
      %v2356 = vsel %vm2267, %v2242, 0
      %v2359 = vsel %vm2267, %v2243, 0
      %v2362 = vsel %vm2267, %v2244, 0
      %vm2364 = vcmask 1044480
      %v2366 = vsel %vm2364, %v2259, 0
      %2368 = vmatprep.subr.mxu0 0.0
      %2369 = vmatpush1.msra.mxu0 0.0
      %2370 = vmatprep.subr.mxu0 0.0
      %2371 = vmatpush1.msra.mxu0 %v2366
      %2372 = vmatprep.subr.mxu0 0.0
      %2373 = vmatpush1.msra.mxu0 %v2258
      %2374 = vmatprep.subr.mxu0 0.0
      %2375 = vmatpush1.msra.mxu0 %v2257
      %2376 = vmatprep.subr.mxu0 0.0
      %2377 = vmatpush1.msra.mxu0 %v2256
      %2378 = vmatprep.subr.mxu0 0.0
      %2379 = vmatpush1.msra.mxu0 %v2255
      %2380 = vmatprep.subr.mxu0 0.0
      %2381 = vmatpush1.msra.mxu0 %v2254
      %2382 = vmatprep.subr.mxu0 0.0
      %2383 = vmatpush1.msra.mxu0 %v2253
      %2384 = vmatprep.subr.mxu0 0.0
      %2385 = vmatpush1.msra.mxu0 %v2252
      %2386 = vmatprep.subr.mxu0 0.0
      %2387 = vmatpush1.msra.mxu0 %v2251
      %2388 = vmatprep.subr.mxu0 0.0
      %2389 = vmatpush1.msra.mxu0 %v2250
      %2390 = vmatprep.subr.mxu0 0.0
      %2391 = vmatpush1.msra.mxu0 %v2249
      %2392 = vmatprep.subr.mxu0 0.0
      %2393 = vmatpush1.msra.mxu0 %v2248
      %2394 = vmatprep.subr.mxu0 0.0
      %2395 = vmatpush1.msra.mxu0 %v2247
      %2396 = vmatprep.subr.mxu0 0.0
      %2397 = vmatpush1.msra.mxu0 %v2246
      %2398 = vmatprep.subr.mxu0 0.0
      %2399 = vmatpush1.msra.mxu0 %v2245
      %2400 = vmatprep.subr.mxu0 0.0
      %2401 = vmatpush2.msra.mxu0 0.0
      %2402 = vmatprep.subr.mxu0 0.0
      %2403 = vmatpush2.msra.mxu0 0.0
      %2404 = vmatprep.subr.mxu0 0.0
      %2405 = vmatpush2.msra.mxu0 0.0
      %2406 = vmatprep.subr.mxu0 0.0
      %2407 = vmatpush2.msra.mxu0 0.0
      %2408 = vmatprep.subr.mxu0 0.0
      %2409 = vmatpush2.msra.mxu0 0.0
      %2410 = vmatprep.subr.mxu0 0.0
      %2411 = vmatpush2.msra.mxu0 0.0
      %2412 = vmatprep.subr.mxu0 0.0
      %2413 = vmatpush2.msra.mxu0 0.0
      %2414 = vmatprep.subr.mxu0 0.0
      %2415 = vmatpush2.msra.mxu0 0.0
      %2416 = vmatprep.subr.mxu0 0.0
      %2417 = vmatpush2.msra.mxu0 0.0
      %2418 = vmatprep.subr.mxu0 0.0
      %2419 = vmatpush2.msra.mxu0 0.0
      %2420 = vmatprep.subr.mxu0 0.0
      %2421 = vmatpush2.msra.mxu0 0.0
      %2422 = vmatprep.subr.mxu0 0.0
      %2423 = vmatpush2.msra.mxu0 0.0
      %2424 = vmatprep.subr.mxu0 0.0
      %2425 = vmatpush2.msra.mxu0 0.0
      %2426 = vmatprep.subr.mxu0 0.0
      %2427 = vmatpush2.msra.mxu0 0.0
      %2428 = vmatprep.subr.mxu0 0.0
      %2429 = vmatpush2.msra.mxu0 0.0
      %2430 = vmatprep.subr.mxu0 0.0
      %2431 = vmatpush2.msra.mxu0 0.0
      %2432 = vmatprep.mubr.f32.mxu0 0.0
      %2433 = vmatmul.mubr.f32.gmra.mxu0 %v2269
      %v2434 = vpop.f32.mrf.mxu0
      %v2435 = vadd.f32 %v2265, %v2434
      %v2436 = vpop.f32.mrf.mxu0
      %2437 = vmatprep.mubr.f32.mxu0 0.0
      %2438 = vmatmul.mubr.f32.gmra.mxu0 %v2272
      %v2439 = vpop.f32.mrf.mxu0
      %v2440 = vadd.f32 %v2265, %v2439
      %v2441 = vpop.f32.mrf.mxu0
      %2442 = vmatprep.mubr.f32.mxu0 0.0
      %2443 = vmatmul.mubr.f32.gmra.mxu0 %v2275
      %v2444 = vpop.f32.mrf.mxu0
      %v2445 = vadd.f32 %v2265, %v2444
      %v2446 = vpop.f32.mrf.mxu0
      %2447 = vmatprep.mubr.f32.mxu0 0.0
      %2448 = vmatmul.mubr.f32.gmra.mxu0 %v2278
      %v2449 = vpop.f32.mrf.mxu0
      %v2450 = vadd.f32 %v2265, %v2449
      %v2451 = vpop.f32.mrf.mxu0
      %2452 = vmatprep.mubr.f32.mxu0 0.0
      %2453 = vmatmul.mubr.f32.gmra.mxu0 %v2281
      %v2454 = vpop.f32.mrf.mxu0
      %v2455 = vadd.f32 %v2265, %v2454
      %v2456 = vpop.f32.mrf.mxu0
      %2457 = vmatprep.mubr.f32.mxu0 0.0
      %2458 = vmatmul.mubr.f32.gmra.mxu0 %v2284
      %v2459 = vpop.f32.mrf.mxu0
      %v2460 = vadd.f32 %v2265, %v2459
      %v2461 = vpop.f32.mrf.mxu0
      %2462 = vmatprep.mubr.f32.mxu0 0.0
      %2463 = vmatmul.mubr.f32.gmra.mxu0 %v2287
      %v2464 = vpop.f32.mrf.mxu0
      %v2465 = vadd.f32 %v2265, %v2464
      %v2466 = vpop.f32.mrf.mxu0
      %2467 = vmatprep.mubr.f32.mxu0 0.0
      %2468 = vmatmul.mubr.f32.gmra.mxu0 %v2290
      %v2469 = vpop.f32.mrf.mxu0
      %v2470 = vadd.f32 %v2265, %v2469
      %v2471 = vpop.f32.mrf.mxu0
      %2472 = vmatprep.mubr.f32.mxu0 0.0
      %2473 = vmatmul.mubr.f32.gmra.mxu0 %v2293
      %v2474 = vpop.f32.mrf.mxu0
      %v2475 = vadd.f32 %v2265, %v2474
      %v2476 = vpop.f32.mrf.mxu0
      %2477 = vmatprep.mubr.f32.mxu0 0.0
      %2478 = vmatmul.mubr.f32.gmra.mxu0 %v2296
      %v2479 = vpop.f32.mrf.mxu0
      %v2480 = vadd.f32 %v2265, %v2479
      %v2481 = vpop.f32.mrf.mxu0
      %2482 = vmatprep.mubr.f32.mxu0 0.0
      %2483 = vmatmul.mubr.f32.gmra.mxu0 %v2299
      %v2484 = vpop.f32.mrf.mxu0
      %v2485 = vadd.f32 %v2265, %v2484
      %v2486 = vpop.f32.mrf.mxu0
      %2487 = vmatprep.mubr.f32.mxu0 0.0
      %2488 = vmatmul.mubr.f32.gmra.mxu0 %v2302
      %v2489 = vpop.f32.mrf.mxu0
      %v2490 = vadd.f32 %v2265, %v2489
      %v2491 = vpop.f32.mrf.mxu0
      %2492 = vmatprep.mubr.f32.mxu0 0.0
      %2493 = vmatmul.mubr.f32.gmra.mxu0 %v2305
      %v2494 = vpop.f32.mrf.mxu0
      %v2495 = vadd.f32 %v2265, %v2494
      %v2496 = vpop.f32.mrf.mxu0
      %2497 = vmatprep.mubr.f32.mxu0 0.0
      %2498 = vmatmul.mubr.f32.gmra.mxu0 %v2308
      %v2499 = vpop.f32.mrf.mxu0
      %v2500 = vadd.f32 %v2265, %v2499
      %v2501 = vpop.f32.mrf.mxu0
      %2502 = vmatprep.mubr.f32.mxu0 0.0
      %2503 = vmatmul.mubr.f32.gmra.mxu0 %v2311
      %v2504 = vpop.f32.mrf.mxu0
      %v2505 = vadd.f32 %v2265, %v2504
      %v2506 = vpop.f32.mrf.mxu0
      %2507 = vmatprep.mubr.f32.mxu0 0.0
      %2508 = vmatmul.mubr.f32.gmra.mxu0 %v2314
      %v2509 = vpop.f32.mrf.mxu0
      %v2510 = vadd.f32 %v2265, %v2509
      %v2511 = vpop.f32.mrf.mxu0
      %2512 = vmatprep.mubr.f32.mxu0 0.0
      %2513 = vmatmul.mubr.f32.gmra.mxu0 %v2317
      %v2514 = vpop.f32.mrf.mxu0
      %v2515 = vadd.f32 %v2265, %v2514
      %v2516 = vpop.f32.mrf.mxu0
      %2517 = vmatprep.mubr.f32.mxu0 0.0
      %2518 = vmatmul.mubr.f32.gmra.mxu0 %v2320
      %v2519 = vpop.f32.mrf.mxu0
      %v2520 = vadd.f32 %v2265, %v2519
      %v2521 = vpop.f32.mrf.mxu0
      %2522 = vmatprep.mubr.f32.mxu0 0.0
      %2523 = vmatmul.mubr.f32.gmra.mxu0 %v2323
      %v2524 = vpop.f32.mrf.mxu0
      %v2525 = vadd.f32 %v2265, %v2524
      %v2526 = vpop.f32.mrf.mxu0
      %2527 = vmatprep.mubr.f32.mxu0 0.0
      %2528 = vmatmul.mubr.f32.gmra.mxu0 %v2326
      %v2529 = vpop.f32.mrf.mxu0
      %v2530 = vadd.f32 %v2265, %v2529
      %v2531 = vpop.f32.mrf.mxu0
      %2532 = vmatprep.mubr.f32.mxu0 0.0
      %2533 = vmatmul.mubr.f32.gmra.mxu0 %v2329
      %v2534 = vpop.f32.mrf.mxu0
      %v2535 = vadd.f32 %v2265, %v2534
      %v2536 = vpop.f32.mrf.mxu0
      %2537 = vmatprep.mubr.f32.mxu0 0.0
      %2538 = vmatmul.mubr.f32.gmra.mxu0 %v2332
      %v2539 = vpop.f32.mrf.mxu0
      %v2540 = vadd.f32 %v2265, %v2539
      %v2541 = vpop.f32.mrf.mxu0
      %2542 = vmatprep.mubr.f32.mxu0 0.0
      %2543 = vmatmul.mubr.f32.gmra.mxu0 %v2335
      %v2544 = vpop.f32.mrf.mxu0
      %v2545 = vadd.f32 %v2265, %v2544
      %v2546 = vpop.f32.mrf.mxu0
      %2547 = vmatprep.mubr.f32.mxu0 0.0
      %2548 = vmatmul.mubr.f32.gmra.mxu0 %v2338
      %v2549 = vpop.f32.mrf.mxu0
      %v2550 = vadd.f32 %v2265, %v2549
      %v2551 = vpop.f32.mrf.mxu0
      %2552 = vmatprep.mubr.f32.mxu0 0.0
      %2553 = vmatmul.mubr.f32.gmra.mxu0 %v2341
      %v2554 = vpop.f32.mrf.mxu0
      %v2555 = vadd.f32 %v2265, %v2554
      %v2556 = vpop.f32.mrf.mxu0
      %2557 = vmatprep.mubr.f32.mxu0 0.0
      %2558 = vmatmul.mubr.f32.gmra.mxu0 %v2344
      %v2559 = vpop.f32.mrf.mxu0
      %v2560 = vadd.f32 %v2265, %v2559
      %v2561 = vpop.f32.mrf.mxu0
      %2562 = vmatprep.mubr.f32.mxu0 0.0
      %2563 = vmatmul.mubr.f32.gmra.mxu0 %v2347
      %v2564 = vpop.f32.mrf.mxu0
      %v2565 = vadd.f32 %v2265, %v2564
      %v2566 = vpop.f32.mrf.mxu0
      %2567 = vmatprep.mubr.f32.mxu0 0.0
      %2568 = vmatmul.mubr.f32.gmra.mxu0 %v2350
      %v2569 = vpop.f32.mrf.mxu0
      %v2570 = vadd.f32 %v2265, %v2569
      %v2571 = vpop.f32.mrf.mxu0
      %2572 = vmatprep.mubr.f32.mxu0 0.0
      %2573 = vmatmul.mubr.f32.gmra.mxu0 %v2353
      %v2574 = vpop.f32.mrf.mxu0
      %v2575 = vadd.f32 %v2265, %v2574
      %v2576 = vpop.f32.mrf.mxu0
      %2577 = vmatprep.mubr.f32.mxu0 0.0
      %2578 = vmatmul.mubr.f32.gmra.mxu0 %v2356
      %v2579 = vpop.f32.mrf.mxu0
      %v2580 = vadd.f32 %v2265, %v2579
      %v2581 = vpop.f32.mrf.mxu0
      %2582 = vmatprep.mubr.f32.mxu0 0.0
      %2583 = vmatmul.mubr.f32.gmra.mxu0 %v2359
      %v2584 = vpop.f32.mrf.mxu0
      %v2585 = vadd.f32 %v2265, %v2584
      %v2586 = vpop.f32.mrf.mxu0
      %2587 = vmatprep.mubr.f32.mxu0 0.0
      %2588 = vmatmul.mubr.f32.gmra.mxu0 %v2362
      %v2589 = vpop.f32.mrf.mxu0
      %v2590 = vadd.f32 %v2265, %v2589
      %v2591 = vpop.f32.mrf.mxu0
      %2592 = vdwg.mxu0
      %v2593 = vmax.f32 %v2435, 0.0
      %v2594 = vmax.f32 %v2440, 0.0
      %v2595 = vmax.f32 %v2445, 0.0
      %v2596 = vmax.f32 %v2450, 0.0
      %v2597 = vmax.f32 %v2455, 0.0
      %v2598 = vmax.f32 %v2460, 0.0
      %v2599 = vmax.f32 %v2465, 0.0
      %v2600 = vmax.f32 %v2470, 0.0
      %v2601 = vmax.f32 %v2475, 0.0
      %v2602 = vmax.f32 %v2480, 0.0
      %v2603 = vmax.f32 %v2485, 0.0
      %v2604 = vmax.f32 %v2490, 0.0
      %v2605 = vmax.f32 %v2495, 0.0
      %v2606 = vmax.f32 %v2500, 0.0
      %v2607 = vmax.f32 %v2505, 0.0
      %v2608 = vmax.f32 %v2510, 0.0
      %v2609 = vmax.f32 %v2515, 0.0
      %v2610 = vmax.f32 %v2520, 0.0
      %v2611 = vmax.f32 %v2525, 0.0
      %v2612 = vmax.f32 %v2530, 0.0
      %v2613 = vmax.f32 %v2535, 0.0
      %v2614 = vmax.f32 %v2540, 0.0
      %v2615 = vmax.f32 %v2545, 0.0
      %v2616 = vmax.f32 %v2550, 0.0
      %v2617 = vmax.f32 %v2555, 0.0
      %v2618 = vmax.f32 %v2560, 0.0
      %v2619 = vmax.f32 %v2565, 0.0
      %v2620 = vmax.f32 %v2570, 0.0
      %v2621 = vmax.f32 %v2575, 0.0
      %v2622 = vmax.f32 %v2580, 0.0
      %v2623 = vmax.f32 %v2585, 0.0
      %v2624 = vmax.f32 %v2590, 0.0
      %2625 = vst [vmem:[%s251] sm:$0xff] %v2593
      %2626 = vst [vmem:[%s251 + $0x8] sm:$0xff] %v2594
      %2627 = vst [vmem:[%s251 + $0x10] sm:$0xff] %v2595
      %2628 = vst [vmem:[%s251 + $0x18] sm:$0xff] %v2596
      %2629 = vst [vmem:[%s251 + $0x20] sm:$0xff] %v2597
      %2630 = vst [vmem:[%s251 + $0x28] sm:$0xff] %v2598
      %2631 = vst [vmem:[%s251 + $0x30] sm:$0xff] %v2599
      %2632 = vst [vmem:[%s251 + $0x38] sm:$0xff] %v2600
      %2633 = vst [vmem:[%s251 + $0x40] sm:$0xff] %v2601
      %2634 = vst [vmem:[%s251 + $0x48] sm:$0xff] %v2602
      %2635 = vst [vmem:[%s251 + $0x50] sm:$0xff] %v2603
      %2636 = vst [vmem:[%s251 + $0x58] sm:$0xff] %v2604
      %2637 = vst [vmem:[%s251 + $0x60] sm:$0xff] %v2605
      %2638 = vst [vmem:[%s251 + $0x68] sm:$0xff] %v2606
      %2639 = vst [vmem:[%s251 + $0x70] sm:$0xff] %v2607
      %2640 = vst [vmem:[%s251 + $0x78] sm:$0xff] %v2608
      %2641 = vst [vmem:[%s251 + $0x80] sm:$0xff] %v2609
      %2642 = vst [vmem:[%s251 + $0x88] sm:$0xff] %v2610
      %2643 = vst [vmem:[%s251 + $0x90] sm:$0xff] %v2611
      %2644 = vst [vmem:[%s251 + $0x98] sm:$0xff] %v2612
      %2645 = vst [vmem:[%s251 + $0xa0] sm:$0xff] %v2613
      %2646 = vst [vmem:[%s251 + $0xa8] sm:$0xff] %v2614
      %2647 = vst [vmem:[%s251 + $0xb0] sm:$0xff] %v2615
      %2648 = vst [vmem:[%s251 + $0xb8] sm:$0xff] %v2616
      %2649 = vst [vmem:[%s251 + $0xc0] sm:$0xff] %v2617
      %2650 = vst [vmem:[%s251 + $0xc8] sm:$0xff] %v2618
      %2651 = vst [vmem:[%s251 + $0xd0] sm:$0xff] %v2619
      %2652 = vst [vmem:[%s251 + $0xd8] sm:$0xff] %v2620
      %2653 = vst [vmem:[%s251 + $0xe0] sm:$0xff] %v2621
      %2654 = vst [vmem:[%s251 + $0xe8] sm:$0xff] %v2622
      %2655 = vst [vmem:[%s251 + $0xf0] sm:$0xff] %v2623
      %2656 = vst [vmem:[%s251 + $0xf8] sm:$0xff] %v2624
      %v2657 = vadd.f32 %v2593, %v2594
      %v2658 = vadd.f32 %v2657, %v2595
      %v2659 = vadd.f32 %v2658, %v2596
      %v2660 = vadd.f32 %v2659, %v2597
      %v2661 = vadd.f32 %v2660, %v2598
      %v2662 = vadd.f32 %v2661, %v2599
      %v2663 = vadd.f32 %v2662, %v2600
      %v2664 = vadd.f32 %v2663, %v2601
      %v2665 = vadd.f32 %v2664, %v2602
      %v2666 = vadd.f32 %v2665, %v2603
      %v2667 = vadd.f32 %v2666, %v2604
      %v2668 = vadd.f32 %v2667, %v2605
      %v2669 = vadd.f32 %v2668, %v2606
      %v2670 = vadd.f32 %v2669, %v2607
      %v2671 = vadd.f32 %v2670, %v2608
      %v2672 = vadd.f32 %v2671, %v2609
      %v2673 = vadd.f32 %v2672, %v2610
      %v2674 = vadd.f32 %v2673, %v2611
      %v2675 = vadd.f32 %v2674, %v2612
      %v2676 = vadd.f32 %v2675, %v2613
      %v2677 = vadd.f32 %v2676, %v2614
      %v2678 = vadd.f32 %v2677, %v2615
      %v2679 = vadd.f32 %v2678, %v2616
      %v2680 = vadd.f32 %v2679, %v2617
      %v2681 = vadd.f32 %v2680, %v2618
      %v2682 = vadd.f32 %v2681, %v2619
      %v2683 = vadd.f32 %v2682, %v2620
      %v2684 = vadd.f32 %v2683, %v2621
      %v2685 = vadd.f32 %v2684, %v2622
      %v2686 = vadd.f32 %v2685, %v2623
      %v2687 = vadd.f32 %v2686, %v2624
      %v2688 = vrot.slane %v2687, 4
      %v2689 = vadd.f32 %v2687, %v2688
      %v2690 = vrot.slane %v2689, 2
      %v2691 = vadd.f32 %v2689, %v2690
      %v2692 = vrot.slane %v2691, 1
      %v2693 = vadd.f32 %v2691, %v2692
      %v2694 = vmul.f32 %v2593, %v2593
      %v2695 = vmul.f32 %v2594, %v2594
      %v2696 = vmul.f32 %v2595, %v2595
      %v2697 = vmul.f32 %v2596, %v2596
      %v2698 = vmul.f32 %v2597, %v2597
      %v2699 = vmul.f32 %v2598, %v2598
      %v2700 = vmul.f32 %v2599, %v2599
      %v2701 = vmul.f32 %v2600, %v2600
      %v2702 = vmul.f32 %v2601, %v2601
      %v2703 = vmul.f32 %v2602, %v2602
      %v2704 = vmul.f32 %v2603, %v2603
      %v2705 = vmul.f32 %v2604, %v2604
      %v2706 = vmul.f32 %v2605, %v2605
      %v2707 = vmul.f32 %v2606, %v2606
      %v2708 = vmul.f32 %v2607, %v2607
      %v2709 = vmul.f32 %v2608, %v2608
      %v2710 = vmul.f32 %v2609, %v2609
      %v2711 = vmul.f32 %v2610, %v2610
      %v2712 = vmul.f32 %v2611, %v2611
      %v2713 = vmul.f32 %v2612, %v2612
      %v2714 = vmul.f32 %v2613, %v2613
      %v2715 = vmul.f32 %v2614, %v2614
      %v2716 = vmul.f32 %v2615, %v2615
      %v2717 = vmul.f32 %v2616, %v2616
      %v2718 = vmul.f32 %v2617, %v2617
      %v2719 = vmul.f32 %v2618, %v2618
      %v2720 = vmul.f32 %v2619, %v2619
      %v2721 = vmul.f32 %v2620, %v2620
      %v2722 = vmul.f32 %v2621, %v2621
      %v2723 = vmul.f32 %v2622, %v2622
      %v2724 = vmul.f32 %v2623, %v2623
      %v2725 = vmul.f32 %v2624, %v2624
      %v2726 = vadd.f32 %v2694, %v2695
      %v2727 = vadd.f32 %v2726, %v2696
      %v2728 = vadd.f32 %v2727, %v2697
      %v2729 = vadd.f32 %v2728, %v2698
      %v2730 = vadd.f32 %v2729, %v2699
      %v2731 = vadd.f32 %v2730, %v2700
      %v2732 = vadd.f32 %v2731, %v2701
      %v2733 = vadd.f32 %v2732, %v2702
      %v2734 = vadd.f32 %v2733, %v2703
      %v2735 = vadd.f32 %v2734, %v2704
      %v2736 = vadd.f32 %v2735, %v2705
      %v2737 = vadd.f32 %v2736, %v2706
      %v2738 = vadd.f32 %v2737, %v2707
      %v2739 = vadd.f32 %v2738, %v2708
      %v2740 = vadd.f32 %v2739, %v2709
      %v2741 = vadd.f32 %v2740, %v2710
      %v2742 = vadd.f32 %v2741, %v2711
      %v2743 = vadd.f32 %v2742, %v2712
      %v2744 = vadd.f32 %v2743, %v2713
      %v2745 = vadd.f32 %v2744, %v2714
      %v2746 = vadd.f32 %v2745, %v2715
      %v2747 = vadd.f32 %v2746, %v2716
      %v2748 = vadd.f32 %v2747, %v2717
      %v2749 = vadd.f32 %v2748, %v2718
      %v2750 = vadd.f32 %v2749, %v2719
      %v2751 = vadd.f32 %v2750, %v2720
      %v2752 = vadd.f32 %v2751, %v2721
      %v2753 = vadd.f32 %v2752, %v2722
      %v2754 = vadd.f32 %v2753, %v2723
      %v2755 = vadd.f32 %v2754, %v2724
      %v2756 = vadd.f32 %v2755, %v2725
      %v2757 = vrot.slane %v2756, 4
      %v2758 = vadd.f32 %v2756, %v2757
      %v2759 = vrot.slane %v2758, 2
      %v2760 = vadd.f32 %v2758, %v2759
      %v2761 = vrot.slane %v2760, 1
      %v2762 = vadd.f32 %v2760, %v2761
      %vm2763 = vcmask 1040384
      %v2764 = vsel %vm2763, %v2693, %v2762
      %2765 = vst [vmem:[%s255] sm:$0x3] %v2764
      %p2766 = scmp.lt.s32.totalorder %s17, 1
      %s2767 = scalar_select %p2766, %s17, 1
      %s2768 = smul.addr %s2767, 32
      %s2769 = smul.addr %s2768, 8
      %s2770 = scalar_lea.vmem %s4, %s2769
      %p2771 = scmp.lt.s32.totalorder %s17, 1
      %s2772 = scalar_select %p2771, %s17, 1
      %s2773 = smul.addr %s2772, 2
      %s2774 = scalar_lea.vmem %s5, %s2773
      // Predicated region
      $region37: #{unet_block_up_forward.2} parent=35 // pred_check
        %p2775 = pneg %p129
      $region38: #{unet_block_up_forward.2} parent=35 // pred_check_branch
        %2777 = sbr.rel (%p2775) target = $region40
      $region39: #{unet_block_up_forward.2} parent=35 // pred_region
        _
      $region40: #{unet_block_up_forward.2} parent=35 // pred_fallthru
        _
      // Predicated region
      $region41: #{unet_block_up_forward.2} parent=35 // pred_check
        %p2778 = pneg %p155
      $region42: #{unet_block_up_forward.2} parent=35 // pred_check_branch
        %2780 = sbr.rel (%p2778) target = $region44
      $region43: #{unet_block_up_forward.2} parent=35 // pred_region
        _
      $region44: #{unet_block_up_forward.2} parent=35 // pred_fallthru
        _
    $region36: #{unet_block_up_forward.2} parent=5 // pred_fallthru
      _
    %p2781 = scmp.le.s32.totalorder 2, %s12
    // Predicated region
    $region45: #{unet_block_up_forward.2} parent=5 // pred_check
      %p2782 = pneg %p2781
    $region46: #{unet_block_up_forward.2} parent=5 // pred_check_branch
      %2784 = sbr.rel (%p2782) target = $region48
    $region47: #{unet_block_up_forward.2} parent=5 // pred_region
      %s2785 = ssub.s32 %s12, 2
      // Predicated region
      $region49: #{unet_block_up_forward.2} parent=47 // pred_check
        %p2786 = pneg %p135
      $region50: #{unet_block_up_forward.2} parent=47 // pred_check_branch
        %2788 = sbr.rel (%p2786) target = $region52
      $region51: #{unet_block_up_forward.2} parent=47 // pred_region
        %p2789 = scmp.lt.s32.totalorder %s18, 1
        %s2790 = scalar_select %p2789, %s18, 1
        %s2791 = smul.addr %s2790, 32
        %s2792 = smul.addr %s2791, 8
        %s2793 = scalar_lea.vmem %s4, %s2792
      $region52: #{unet_block_up_forward.2} parent=47 // pred_fallthru
        _
      // Predicated region
      $region53: #{unet_block_up_forward.2} parent=47 // pred_check
        %p2794 = pneg %p161
      $region54: #{unet_block_up_forward.2} parent=47 // pred_check_branch
        %2796 = sbr.rel (%p2794) target = $region56
      $region55: #{unet_block_up_forward.2} parent=47 // pred_region
        %p2797 = scmp.lt.s32.totalorder %s18, 1
        %s2798 = scalar_select %p2797, %s18, 1
        %s2799 = smul.addr %s2798, 2
        %s2800 = scalar_lea.vmem %s5, %s2799
      $region56: #{unet_block_up_forward.2} parent=47 // pred_fallthru
        _
    $region48: #{unet_block_up_forward.2} parent=5 // pred_fallthru
      _
  $region6: #{unet_block_up_forward.2} parent=0 // loop_footer
    %s16 = sadd.s32 1, %s12
  $region7: #{unet_block_up_forward.2} parent=0 // loop_footer_branch
    %11 = sbr.rel target = $region3
  $region8: #{unet_block_up_forward.2} parent=0 // loop_exit
    _

// kernel: unet_block_up_forward.3
$region0: #{unet_block_up_forward.3}
  #allocation0 [shape = 'u32[]', space=smem, size = 0x4, offset = 0x4, fixed_abs, tag = 'smem constant byte address 0x4 - core index']
  #allocation1 [shape = 'u32[144,128]{1,0:T(1,128)}', space=vmem, size = 0x12000, scoped, tag = 'internal scratch']
  #allocation2 [shape = 'f32[18,18,5]{2,1,0:T(8,128)}', space=vmem, size = 0x36000, scoped, tag = 'scratch operand']
  #allocation3 [shape = 'f32[16,16,45]{2,1,0:T(8,128)}', space=vmem, size = 0x20000, scoped, tag = 'scratch operand']
  %s0 = inlined_call_operand.vmem [shape: f32[2,16,16,128], index: 0, kind: input, shape index: {}]
  %s1 = inlined_call_operand.vmem [shape: f32[45,128], index: 1, kind: input, shape index: {}]
  %s2 = inlined_call_operand.vmem [shape: f32[1,128], index: 2, kind: input, shape index: {}]
  %s3 = inlined_call_operand.vmem [shape: f32[2,256,128], index: 3, kind: output, shape index: {0}]
  %s4 = inlined_call_operand.vmem [shape: f32[2,2,128], index: 4, kind: output, shape index: {1}]
  %5 = xla_tuple %s3, %s4
  %s6 = sld [smem:[#allocation0]]
  $region53: #{unet_block_up_forward.3} parent=0
    _
  %s8 = ssub.s32 1, %s6
  %s9 = scalar_select 0, %s8, %s6
  loop: start=0, step=1, limit=4
  $region2: #{unet_block_up_forward.3} parent=0 // loop_pre_header
    _
  $region3: #{unet_block_up_forward.3} parent=0 // loop_header
    %s11 = sphi 0, %s15
    %p12 = scmp.ge.s32.totalorder %s11, 4
    %s21 = sphi 0, %s23
    %s24 = sphi 0, %s21
    %s25 = sphi 0, %s24
    %s41 = sphi 0, %s25
    %s45 = sphi 0, %s45
    %s47 = sphi 0, %s45
    %s48 = sphi 0, %s47
    %s62 = sphi 0, %s48
    %s66 = sphi 0, %s66
    %s68 = sphi 0, %s66
    %s69 = sphi 0, %s68
    %s83 = sphi 0, %s69
    %s89 = sphi 0, %s91
    %s92 = sphi 0, %s89
    %s93 = sphi 0, %s92
    %s109 = sphi 0, %s93
    %s115 = sphi 0, %s117
    %s118 = sphi 0, %s115
    %s119 = sphi 0, %s118
    %s135 = sphi 0, %s119
  $region4: #{unet_block_up_forward.3} parent=0 // loop_header_branch
    %14 = sbr.rel (%p12) target = $region8
  $region5: #{unet_block_up_forward.3} parent=0 // loop_body
    %s16 = ssub.s32 %s11, 1
    %s17 = ssub.s32 %s11, 2
    %s18 = sadd.s32 %s11, 1
    %s19 = ssub.s32 %s11, %s18
    %p20 = scmp.eq.s32.totalorder %s19, 0
    %s22 = sadd.s32 %s21, 1
    %s23 = scalar_select %p20, %s21, %s22
    %p26 = pneg %p20
    %p27 = scmp.eq.s32.totalorder %s11, 1
    %p28 = por %p26, %p27
    %p29 = scmp.ne.s32.totalorder %s21, %s24
    %p30 = scmp.eq.s32.totalorder %s11, 0
    %p31 = por %p29, %p30
    %p32 = scmp.ne.s32.totalorder %s21, %s24
    %p33 = scmp.eq.s32.totalorder %s16, 1
    %p34 = por %p32, %p33
    %p35 = scmp.ne.s32.totalorder %s24, %s25
    %p36 = scmp.eq.s32.totalorder %s16, 0
    %p37 = por %p35, %p36
    %p38 = scmp.ne.s32.totalorder %s24, %s25
    %p39 = scmp.eq.s32.totalorder %s17, 1
    %p40 = por %p38, %p39
    %p42 = scmp.ne.s32.totalorder %s25, %s41
    %p43 = scmp.eq.s32.totalorder %s17, 0
    %p44 = por %p42, %p43
    %s46 = sadd.s32 %s45, 1
    %p49 = scmp.eq.s32.totalorder %s11, 1
    %p50 = scmp.ne.s32.totalorder %s45, %s47
    %p51 = scmp.eq.s32.totalorder %s11, 0
    %p52 = por %p50, %p51
    %p53 = scmp.ne.s32.totalorder %s45, %s47
    %p54 = scmp.eq.s32.totalorder %s16, 1
    %p55 = por %p53, %p54
    %p56 = scmp.ne.s32.totalorder %s47, %s48
    %p57 = scmp.eq.s32.totalorder %s16, 0
    %p58 = por %p56, %p57
    %p59 = scmp.ne.s32.totalorder %s47, %s48
    %p60 = scmp.eq.s32.totalorder %s17, 1
    %p61 = por %p59, %p60
    %p63 = scmp.ne.s32.totalorder %s48, %s62
    %p64 = scmp.eq.s32.totalorder %s17, 0
    %p65 = por %p63, %p64
    %s67 = sadd.s32 %s66, 1
    %p70 = scmp.eq.s32.totalorder %s11, 1
    %p71 = scmp.ne.s32.totalorder %s66, %s68
    %p72 = scmp.eq.s32.totalorder %s11, 0
    %p73 = por %p71, %p72
    %p74 = scmp.ne.s32.totalorder %s66, %s68
    %p75 = scmp.eq.s32.totalorder %s16, 1
    %p76 = por %p74, %p75
    %p77 = scmp.ne.s32.totalorder %s68, %s69
    %p78 = scmp.eq.s32.totalorder %s16, 0
    %p79 = por %p77, %p78
    %p80 = scmp.ne.s32.totalorder %s68, %s69
    %p81 = scmp.eq.s32.totalorder %s17, 1
    %p82 = por %p80, %p81
    %p84 = scmp.ne.s32.totalorder %s69, %s83
    %p85 = scmp.eq.s32.totalorder %s17, 0
    %p86 = por %p84, %p85
    %s87 = ssub.s32 %s11, %s18
    %p88 = scmp.eq.s32.totalorder %s87, 0
    %s90 = sadd.s32 %s89, 1
    %s91 = scalar_select %p88, %s89, %s90
    %p94 = pneg %p88
    %p95 = scmp.eq.s32.totalorder %s11, 1
    %p96 = por %p94, %p95
    %p97 = scmp.ne.s32.totalorder %s89, %s92
    %p98 = scmp.eq.s32.totalorder %s11, 0
    %p99 = por %p97, %p98
    %p100 = scmp.ne.s32.totalorder %s89, %s92
    %p101 = scmp.eq.s32.totalorder %s16, 1
    %p102 = por %p100, %p101
    %p103 = scmp.ne.s32.totalorder %s92, %s93
    %p104 = scmp.eq.s32.totalorder %s16, 0
    %p105 = por %p103, %p104
    %p106 = scmp.ne.s32.totalorder %s92, %s93
    %p107 = scmp.eq.s32.totalorder %s17, 1
    %p108 = por %p106, %p107
    %p110 = scmp.ne.s32.totalorder %s93, %s109
    %p111 = scmp.eq.s32.totalorder %s17, 0
    %p112 = por %p110, %p111
    %s113 = ssub.s32 %s11, %s18
    %p114 = scmp.eq.s32.totalorder %s113, 0
    %s116 = sadd.s32 %s115, 1
    %s117 = scalar_select %p114, %s115, %s116
    %p120 = pneg %p114
    %p121 = scmp.eq.s32.totalorder %s11, 1
    %p122 = por %p120, %p121
    %p123 = scmp.ne.s32.totalorder %s115, %s118
    %p124 = scmp.eq.s32.totalorder %s11, 0
    %p125 = por %p123, %p124
    %p126 = scmp.ne.s32.totalorder %s115, %s118
    %p127 = scmp.eq.s32.totalorder %s16, 1
    %p128 = por %p126, %p127
    %p129 = scmp.ne.s32.totalorder %s118, %s119
    %p130 = scmp.eq.s32.totalorder %s16, 0
    %p131 = por %p129, %p130
    %p132 = scmp.ne.s32.totalorder %s118, %s119
    %p133 = scmp.eq.s32.totalorder %s17, 1
    %p134 = por %p132, %p133
    %p136 = scmp.ne.s32.totalorder %s119, %s135
    %p137 = scmp.eq.s32.totalorder %s17, 0
    %p138 = por %p136, %p137
    %p139 = scmp.le.s32.totalorder 1, %s11
    %p140 = scmp.lt.s32.totalorder %s11, 3
    %p141 = pnand %p139, %p140
    %p142 = pneg %p141
    // Predicated region
    $region9: #{unet_block_up_forward.3} parent=5 // pred_check
      _
    $region10: #{unet_block_up_forward.3} parent=5 // pred_check_branch
      %144 = sbr.rel (%p141) target = $region12
    $region11: #{unet_block_up_forward.3} parent=5 // pred_region
      %s145 = ssub.s32 %s11, 1
      // Predicated region
      $region13: #{unet_block_up_forward.3} parent=11 // pred_check
        %p146 = pneg %p58
      $region14: #{unet_block_up_forward.3} parent=11 // pred_check_branch
        %148 = sbr.rel (%p146) target = $region16
      $region15: #{unet_block_up_forward.3} parent=11 // pred_region
        _
      $region16: #{unet_block_up_forward.3} parent=11 // pred_fallthru
        _
      // Predicated region
      $region17: #{unet_block_up_forward.3} parent=11 // pred_check
        %p149 = pneg %p79
      $region18: #{unet_block_up_forward.3} parent=11 // pred_check_branch
        %151 = sbr.rel (%p149) target = $region20
      $region19: #{unet_block_up_forward.3} parent=11 // pred_region
        _
      $region20: #{unet_block_up_forward.3} parent=11 // pred_fallthru
        _
    $region12: #{unet_block_up_forward.3} parent=5 // pred_fallthru
      _
    %p152 = scmp.lt.s32.totalorder %s11, 2
    // Predicated region
    $region21: #{unet_block_up_forward.3} parent=5 // pred_check
      %p153 = pneg %p152
    $region22: #{unet_block_up_forward.3} parent=5 // pred_check_branch
      %155 = sbr.rel (%p153) target = $region24
    $region23: #{unet_block_up_forward.3} parent=5 // pred_region
      // Predicated region
      $region25: #{unet_block_up_forward.3} parent=23 // pred_check
        %p156 = pneg %p31
      $region26: #{unet_block_up_forward.3} parent=23 // pred_check_branch
        %158 = sbr.rel (%p156) target = $region28
      $region27: #{unet_block_up_forward.3} parent=23 // pred_region
        %p159 = scmp.lt.s32.totalorder %s11, 1
        %s160 = scalar_select %p159, %s11, 1
        %s161 = smul.addr %s160, 32
        %s162 = smul.addr %s161, 8
        %s163 = scalar_lea.vmem %s0, %s162
      $region28: #{unet_block_up_forward.3} parent=23 // pred_fallthru
        _
    $region24: #{unet_block_up_forward.3} parent=5 // pred_fallthru
      _
    %p164 = scmp.le.s32.totalorder 1, %s11
    %p165 = scmp.lt.s32.totalorder %s11, 3
    %p166 = pnand %p164, %p165
    %p167 = pneg %p166
    // Predicated region
    $region29: #{unet_block_up_forward.3} parent=5 // pred_check
      _
    $region30: #{unet_block_up_forward.3} parent=5 // pred_check_branch
      %169 = sbr.rel (%p166) target = $region32
    $region31: #{unet_block_up_forward.3} parent=5 // pred_region
      %s170 = ssub.s32 %s11, 1
      %p171 = scmp.lt.s32.totalorder %s16, 1
      %s172 = scalar_select %p171, %s16, 1
      %s173 = smul.addr %s172, 32
      %s174 = smul.addr %s173, 8
      %s175 = scalar_lea.vmem %s0, %s174
      %p176 = pneg %p37
      %p177 = pneg %p34
      %p178 = pneg %p58
      %p179 = pneg %p55
      %p180 = pneg %p79
      %p181 = pneg %p76
      %p182 = pneg %p105
      %p183 = pneg %p102
      %p184 = scmp.lt.s32.totalorder %s16, 1
      %s185 = scalar_select %p184, %s16, 1
      %s186 = smul.addr %s185, 32
      %s187 = smul.addr %s186, 8
      %s188 = scalar_lea.vmem %s3, %s187
      %p189 = pneg %p131
      %p190 = pneg %p128
      %p191 = scmp.lt.s32.totalorder %s16, 1
      %s192 = scalar_select %p191, %s16, 1
      %s193 = smul.addr %s192, 2
      %s194 = scalar_lea.vmem %s4, %s193
      %p195 = scmp.lt.s32.totalorder %s16, 1
      %s196 = scalar_select %p195, %s16, 1
      %s197 = smul.addr %s196, 32
      %s198 = smul.addr %s197, 8
      %s199 = scalar_lea.vmem %s0, %s198
      %p200 = scmp.lt.s32.totalorder %s16, 1
      %s201 = scalar_select %p200, %s16, 1
      %s202 = smul.addr %s201, 32
      %s203 = smul.addr %s202, 8
      %s204 = scalar_lea.vmem %s3, %s203
      %p205 = scmp.lt.s32.totalorder %s16, 1
      %s206 = scalar_select %p205, %s16, 1
      %s207 = smul.addr %s206, 2
      %s208 = scalar_lea.vmem %s4, %s207
      %vm209 = vcmask 39936
      %210 = vst.msk [vmem:[#allocation2] sm:$0xff] %vm209, 0.0
      %211 = vst.msk [vmem:[#allocation2 + $0x8] sm:$0xff] %vm209, 0.0
      %vm212 = vcmask 33792
      %213 = vst.msk [vmem:[#allocation2 + $0x10] sm:$0x3] %vm212, 0.0
      %214 = vst.msk [vmem:[#allocation2 + $0x18] sm:$0xff] %vm209, 0.0
      %215 = vst.msk [vmem:[#allocation2 + $0x20] sm:$0xff] %vm209, 0.0
      %216 = vst.msk [vmem:[#allocation2 + $0x28] sm:$0x3] %vm212, 0.0
      %217 = vst.msk [vmem:[#allocation2 + $0x30] sm:$0xff] %vm209, 0.0
      %218 = vst.msk [vmem:[#allocation2 + $0x38] sm:$0xff] %vm209, 0.0
      %219 = vst.msk [vmem:[#allocation2 + $0x40] sm:$0x3] %vm212, 0.0
      %220 = vst.msk [vmem:[#allocation2 + $0x48] sm:$0xff] %vm209, 0.0
      %221 = vst.msk [vmem:[#allocation2 + $0x50] sm:$0xff] %vm209, 0.0
      %222 = vst.msk [vmem:[#allocation2 + $0x58] sm:$0x3] %vm212, 0.0
      %223 = vst.msk [vmem:[#allocation2 + $0x60] sm:$0xff] %vm209, 0.0
      %224 = vst.msk [vmem:[#allocation2 + $0x68] sm:$0xff] %vm209, 0.0
      %225 = vst.msk [vmem:[#allocation2 + $0x70] sm:$0x3] %vm212, 0.0
      %226 = vst.msk [vmem:[#allocation2 + $0x78] sm:$0xff] %vm209, 0.0
      %227 = vst.msk [vmem:[#allocation2 + $0x80] sm:$0xff] %vm209, 0.0
      %228 = vst.msk [vmem:[#allocation2 + $0x88] sm:$0x3] %vm212, 0.0
      %229 = vst.msk [vmem:[#allocation2 + $0x90] sm:$0xff] %vm209, 0.0
      %230 = vst.msk [vmem:[#allocation2 + $0x98] sm:$0xff] %vm209, 0.0
      %231 = vst.msk [vmem:[#allocation2 + $0xa0] sm:$0x3] %vm212, 0.0
      %232 = vst.msk [vmem:[#allocation2 + $0xa8] sm:$0xff] %vm209, 0.0
      %233 = vst.msk [vmem:[#allocation2 + $0xb0] sm:$0xff] %vm209, 0.0
      %234 = vst.msk [vmem:[#allocation2 + $0xb8] sm:$0x3] %vm212, 0.0
      %235 = vst.msk [vmem:[#allocation2 + $0xc0] sm:$0xff] %vm209, 0.0
      %236 = vst.msk [vmem:[#allocation2 + $0xc8] sm:$0xff] %vm209, 0.0
      %237 = vst.msk [vmem:[#allocation2 + $0xd0] sm:$0x3] %vm212, 0.0
      %238 = vst.msk [vmem:[#allocation2 + $0xd8] sm:$0xff] %vm209, 0.0
      %239 = vst.msk [vmem:[#allocation2 + $0xe0] sm:$0xff] %vm209, 0.0
      %240 = vst.msk [vmem:[#allocation2 + $0xe8] sm:$0x3] %vm212, 0.0
      %241 = vst.msk [vmem:[#allocation2 + $0xf0] sm:$0xff] %vm209, 0.0
      %242 = vst.msk [vmem:[#allocation2 + $0xf8] sm:$0xff] %vm209, 0.0
      %243 = vst.msk [vmem:[#allocation2 + $0x100] sm:$0x3] %vm212, 0.0
      %244 = vst.msk [vmem:[#allocation2 + $0x108] sm:$0xff] %vm209, 0.0
      %245 = vst.msk [vmem:[#allocation2 + $0x110] sm:$0xff] %vm209, 0.0
      %246 = vst.msk [vmem:[#allocation2 + $0x118] sm:$0x3] %vm212, 0.0
      %247 = vst.msk [vmem:[#allocation2 + $0x120] sm:$0xff] %vm209, 0.0
      %248 = vst.msk [vmem:[#allocation2 + $0x128] sm:$0xff] %vm209, 0.0
      %249 = vst.msk [vmem:[#allocation2 + $0x130] sm:$0x3] %vm212, 0.0
      %250 = vst.msk [vmem:[#allocation2 + $0x138] sm:$0xff] %vm209, 0.0
      %251 = vst.msk [vmem:[#allocation2 + $0x140] sm:$0xff] %vm209, 0.0
      %252 = vst.msk [vmem:[#allocation2 + $0x148] sm:$0x3] %vm212, 0.0
      %253 = vst.msk [vmem:[#allocation2 + $0x150] sm:$0xff] %vm209, 0.0
      %254 = vst.msk [vmem:[#allocation2 + $0x158] sm:$0xff] %vm209, 0.0
      %255 = vst.msk [vmem:[#allocation2 + $0x160] sm:$0x3] %vm212, 0.0
      %256 = vst.msk [vmem:[#allocation2 + $0x168] sm:$0xff] %vm209, 0.0
      %257 = vst.msk [vmem:[#allocation2 + $0x170] sm:$0xff] %vm209, 0.0
      %258 = vst.msk [vmem:[#allocation2 + $0x178] sm:$0x3] %vm212, 0.0
      %259 = vst.msk [vmem:[#allocation2 + $0x180] sm:$0xff] %vm209, 0.0
      %260 = vst.msk [vmem:[#allocation2 + $0x188] sm:$0xff] %vm209, 0.0
      %261 = vst.msk [vmem:[#allocation2 + $0x190] sm:$0x3] %vm212, 0.0
      %262 = vst.msk [vmem:[#allocation2 + $0x198] sm:$0xff] %vm209, 0.0
      %263 = vst.msk [vmem:[#allocation2 + $0x1a0] sm:$0xff] %vm209, 0.0
      %264 = vst.msk [vmem:[#allocation2 + $0x1a8] sm:$0x3] %vm212, 0.0
      %v265 = vld [vmem:[%s199] sm:$0xff]
      %v266 = vld [vmem:[%s199 + $0x8] sm:$0xff]
      %v267 = vld [vmem:[%s199 + $0x10] sm:$0xff]
      %v268 = vld [vmem:[%s199 + $0x18] sm:$0xff]
      %v269 = vld [vmem:[%s199 + $0x20] sm:$0xff]
      %v270 = vld [vmem:[%s199 + $0x28] sm:$0xff]
      %v271 = vld [vmem:[%s199 + $0x30] sm:$0xff]
      %v272 = vld [vmem:[%s199 + $0x38] sm:$0xff]
      %v273 = vld [vmem:[%s199 + $0x40] sm:$0xff]
      %v274 = vld [vmem:[%s199 + $0x48] sm:$0xff]
      %v275 = vld [vmem:[%s199 + $0x50] sm:$0xff]
      %v276 = vld [vmem:[%s199 + $0x58] sm:$0xff]
      %v277 = vld [vmem:[%s199 + $0x60] sm:$0xff]
      %v278 = vld [vmem:[%s199 + $0x68] sm:$0xff]
      %v279 = vld [vmem:[%s199 + $0x70] sm:$0xff]
      %v280 = vld [vmem:[%s199 + $0x78] sm:$0xff]
      %v281 = vld [vmem:[%s199 + $0x80] sm:$0xff]
      %v282 = vld [vmem:[%s199 + $0x88] sm:$0xff]
      %v283 = vld [vmem:[%s199 + $0x90] sm:$0xff]
      %v284 = vld [vmem:[%s199 + $0x98] sm:$0xff]
      %v285 = vld [vmem:[%s199 + $0xa0] sm:$0xff]
      %v286 = vld [vmem:[%s199 + $0xa8] sm:$0xff]
      %v287 = vld [vmem:[%s199 + $0xb0] sm:$0xff]
      %v288 = vld [vmem:[%s199 + $0xb8] sm:$0xff]
      %v289 = vld [vmem:[%s199 + $0xc0] sm:$0xff]
      %v290 = vld [vmem:[%s199 + $0xc8] sm:$0xff]
      %v291 = vld [vmem:[%s199 + $0xd0] sm:$0xff]
      %v292 = vld [vmem:[%s199 + $0xd8] sm:$0xff]
      %v293 = vld [vmem:[%s199 + $0xe0] sm:$0xff]
      %v294 = vld [vmem:[%s199 + $0xe8] sm:$0xff]
      %v295 = vld [vmem:[%s199 + $0xf0] sm:$0xff]
      %v296 = vld [vmem:[%s199 + $0xf8] sm:$0xff]
      %s297 = scalar_lea.vmem [#allocation2], 24
      %vm298 = vcmask 31744
      %299 = vst.msk [vmem:[%s297 + $0x1] sm:$0xff] %vm298, %v265
      %300 = vst.msk [vmem:[%s297 + $0x9] sm:$0xff] %vm298, %v266
      %301 = vst.msk [vmem:[%s297 + $0x19] sm:$0xff] %vm298, %v267
      %302 = vst.msk [vmem:[%s297 + $0x21] sm:$0xff] %vm298, %v268
      %303 = vst.msk [vmem:[%s297 + $0x31] sm:$0xff] %vm298, %v269
      %304 = vst.msk [vmem:[%s297 + $0x39] sm:$0xff] %vm298, %v270
      %305 = vst.msk [vmem:[%s297 + $0x49] sm:$0xff] %vm298, %v271
      %306 = vst.msk [vmem:[%s297 + $0x51] sm:$0xff] %vm298, %v272
      %307 = vst.msk [vmem:[%s297 + $0x61] sm:$0xff] %vm298, %v273
      %308 = vst.msk [vmem:[%s297 + $0x69] sm:$0xff] %vm298, %v274
      %309 = vst.msk [vmem:[%s297 + $0x79] sm:$0xff] %vm298, %v275
      %310 = vst.msk [vmem:[%s297 + $0x81] sm:$0xff] %vm298, %v276
      %311 = vst.msk [vmem:[%s297 + $0x91] sm:$0xff] %vm298, %v277
      %312 = vst.msk [vmem:[%s297 + $0x99] sm:$0xff] %vm298, %v278
      %313 = vst.msk [vmem:[%s297 + $0xa9] sm:$0xff] %vm298, %v279
      %314 = vst.msk [vmem:[%s297 + $0xb1] sm:$0xff] %vm298, %v280
      %315 = vst.msk [vmem:[%s297 + $0xc1] sm:$0xff] %vm298, %v281
      %316 = vst.msk [vmem:[%s297 + $0xc9] sm:$0xff] %vm298, %v282
      %317 = vst.msk [vmem:[%s297 + $0xd9] sm:$0xff] %vm298, %v283
      %318 = vst.msk [vmem:[%s297 + $0xe1] sm:$0xff] %vm298, %v284
      %319 = vst.msk [vmem:[%s297 + $0xf1] sm:$0xff] %vm298, %v285
      %320 = vst.msk [vmem:[%s297 + $0xf9] sm:$0xff] %vm298, %v286
      %321 = vst.msk [vmem:[%s297 + $0x109] sm:$0xff] %vm298, %v287
      %322 = vst.msk [vmem:[%s297 + $0x111] sm:$0xff] %vm298, %v288
      %323 = vst.msk [vmem:[%s297 + $0x121] sm:$0xff] %vm298, %v289
      %324 = vst.msk [vmem:[%s297 + $0x129] sm:$0xff] %vm298, %v290
      %325 = vst.msk [vmem:[%s297 + $0x139] sm:$0xff] %vm298, %v291
      %326 = vst.msk [vmem:[%s297 + $0x141] sm:$0xff] %vm298, %v292
      %327 = vst.msk [vmem:[%s297 + $0x151] sm:$0xff] %vm298, %v293
      %328 = vst.msk [vmem:[%s297 + $0x159] sm:$0xff] %vm298, %v294
      %329 = vst.msk [vmem:[%s297 + $0x169] sm:$0xff] %vm298, %v295
      %330 = vst.msk [vmem:[%s297 + $0x171] sm:$0xff] %vm298, %v296
      %vm331 = vcmask 39968
      %332 = vst.msk [vmem:[%s297 + $0x1] sm:$0xff] %vm331, 1.0
      %333 = vst.msk [vmem:[%s297 + $0x9] sm:$0xff] %vm331, 1.0
      %334 = vst.msk [vmem:[%s297 + $0x19] sm:$0xff] %vm331, 1.0
      %335 = vst.msk [vmem:[%s297 + $0x21] sm:$0xff] %vm331, 1.0
      %336 = vst.msk [vmem:[%s297 + $0x31] sm:$0xff] %vm331, 1.0
      %337 = vst.msk [vmem:[%s297 + $0x39] sm:$0xff] %vm331, 1.0
      %338 = vst.msk [vmem:[%s297 + $0x49] sm:$0xff] %vm331, 1.0
      %339 = vst.msk [vmem:[%s297 + $0x51] sm:$0xff] %vm331, 1.0
      %340 = vst.msk [vmem:[%s297 + $0x61] sm:$0xff] %vm331, 1.0
      %341 = vst.msk [vmem:[%s297 + $0x69] sm:$0xff] %vm331, 1.0
      %342 = vst.msk [vmem:[%s297 + $0x79] sm:$0xff] %vm331, 1.0
      %343 = vst.msk [vmem:[%s297 + $0x81] sm:$0xff] %vm331, 1.0
      %344 = vst.msk [vmem:[%s297 + $0x91] sm:$0xff] %vm331, 1.0
      %345 = vst.msk [vmem:[%s297 + $0x99] sm:$0xff] %vm331, 1.0
      %346 = vst.msk [vmem:[%s297 + $0xa9] sm:$0xff] %vm331, 1.0
      %347 = vst.msk [vmem:[%s297 + $0xb1] sm:$0xff] %vm331, 1.0
      %348 = vst.msk [vmem:[%s297 + $0xc1] sm:$0xff] %vm331, 1.0
      %349 = vst.msk [vmem:[%s297 + $0xc9] sm:$0xff] %vm331, 1.0
      %350 = vst.msk [vmem:[%s297 + $0xd9] sm:$0xff] %vm331, 1.0
      %351 = vst.msk [vmem:[%s297 + $0xe1] sm:$0xff] %vm331, 1.0
      %352 = vst.msk [vmem:[%s297 + $0xf1] sm:$0xff] %vm331, 1.0
      %353 = vst.msk [vmem:[%s297 + $0xf9] sm:$0xff] %vm331, 1.0
      %354 = vst.msk [vmem:[%s297 + $0x109] sm:$0xff] %vm331, 1.0
      %355 = vst.msk [vmem:[%s297 + $0x111] sm:$0xff] %vm331, 1.0
      %356 = vst.msk [vmem:[%s297 + $0x121] sm:$0xff] %vm331, 1.0
      %357 = vst.msk [vmem:[%s297 + $0x129] sm:$0xff] %vm331, 1.0
      %358 = vst.msk [vmem:[%s297 + $0x139] sm:$0xff] %vm331, 1.0
      %359 = vst.msk [vmem:[%s297 + $0x141] sm:$0xff] %vm331, 1.0
      %360 = vst.msk [vmem:[%s297 + $0x151] sm:$0xff] %vm331, 1.0
      %361 = vst.msk [vmem:[%s297 + $0x159] sm:$0xff] %vm331, 1.0
      %362 = vst.msk [vmem:[%s297 + $0x169] sm:$0xff] %vm331, 1.0
      %363 = vst.msk [vmem:[%s297 + $0x171] sm:$0xff] %vm331, 1.0
      %v364 = vld [vmem:[#allocation2] sm:$0xff]
      %v365 = vld [vmem:[#allocation2 + $0x8] sm:$0xff]
      %v366 = vld [vmem:[#allocation2 + $0x18] sm:$0xff]
      %v367 = vld [vmem:[#allocation2 + $0x20] sm:$0xff]
      %v368 = vld [vmem:[#allocation2 + $0x30] sm:$0xff]
      %v369 = vld [vmem:[#allocation2 + $0x38] sm:$0xff]
      %v370 = vld [vmem:[#allocation2 + $0x48] sm:$0xff]
      %v371 = vld [vmem:[#allocation2 + $0x50] sm:$0xff]
      %v372 = vld [vmem:[#allocation2 + $0x60] sm:$0xff]
      %v373 = vld [vmem:[#allocation2 + $0x68] sm:$0xff]
      %v374 = vld [vmem:[#allocation2 + $0x78] sm:$0xff]
      %v375 = vld [vmem:[#allocation2 + $0x80] sm:$0xff]
      %v376 = vld [vmem:[#allocation2 + $0x90] sm:$0xff]
      %v377 = vld [vmem:[#allocation2 + $0x98] sm:$0xff]
      %v378 = vld [vmem:[#allocation2 + $0xa8] sm:$0xff]
      %v379 = vld [vmem:[#allocation2 + $0xb0] sm:$0xff]
      %v380 = vld [vmem:[#allocation2 + $0xc0] sm:$0xff]
      %v381 = vld [vmem:[#allocation2 + $0xc8] sm:$0xff]
      %v382 = vld [vmem:[#allocation2 + $0xd8] sm:$0xff]
      %v383 = vld [vmem:[#allocation2 + $0xe0] sm:$0xff]
      %v384 = vld [vmem:[#allocation2 + $0xf0] sm:$0xff]
      %v385 = vld [vmem:[#allocation2 + $0xf8] sm:$0xff]
      %v386 = vld [vmem:[#allocation2 + $0x108] sm:$0xff]
      %v387 = vld [vmem:[#allocation2 + $0x110] sm:$0xff]
      %v388 = vld [vmem:[#allocation2 + $0x120] sm:$0xff]
      %v389 = vld [vmem:[#allocation2 + $0x128] sm:$0xff]
      %v390 = vld [vmem:[#allocation2 + $0x138] sm:$0xff]
      %v391 = vld [vmem:[#allocation2 + $0x140] sm:$0xff]
      %v392 = vld [vmem:[#allocation2 + $0x150] sm:$0xff]
      %v393 = vld [vmem:[#allocation2 + $0x158] sm:$0xff]
      %v394 = vld [vmem:[#allocation2 + $0x168] sm:$0xff]
      %v395 = vld [vmem:[#allocation2 + $0x170] sm:$0xff]
      %396 = vst.msk [vmem:[#allocation3] sm:$0xff] %vm209, %v364
      %397 = vst.msk [vmem:[#allocation3 + $0x8] sm:$0xff] %vm209, %v365
      %398 = vst.msk [vmem:[#allocation3 + $0x10] sm:$0xff] %vm209, %v366
      %399 = vst.msk [vmem:[#allocation3 + $0x18] sm:$0xff] %vm209, %v367
      %400 = vst.msk [vmem:[#allocation3 + $0x20] sm:$0xff] %vm209, %v368
      %401 = vst.msk [vmem:[#allocation3 + $0x28] sm:$0xff] %vm209, %v369
      %402 = vst.msk [vmem:[#allocation3 + $0x30] sm:$0xff] %vm209, %v370
      %403 = vst.msk [vmem:[#allocation3 + $0x38] sm:$0xff] %vm209, %v371
      %404 = vst.msk [vmem:[#allocation3 + $0x40] sm:$0xff] %vm209, %v372
      %405 = vst.msk [vmem:[#allocation3 + $0x48] sm:$0xff] %vm209, %v373
      %406 = vst.msk [vmem:[#allocation3 + $0x50] sm:$0xff] %vm209, %v374
      %407 = vst.msk [vmem:[#allocation3 + $0x58] sm:$0xff] %vm209, %v375
      %408 = vst.msk [vmem:[#allocation3 + $0x60] sm:$0xff] %vm209, %v376
      %409 = vst.msk [vmem:[#allocation3 + $0x68] sm:$0xff] %vm209, %v377
      %410 = vst.msk [vmem:[#allocation3 + $0x70] sm:$0xff] %vm209, %v378
      %411 = vst.msk [vmem:[#allocation3 + $0x78] sm:$0xff] %vm209, %v379
      %412 = vst.msk [vmem:[#allocation3 + $0x80] sm:$0xff] %vm209, %v380
      %413 = vst.msk [vmem:[#allocation3 + $0x88] sm:$0xff] %vm209, %v381
      %414 = vst.msk [vmem:[#allocation3 + $0x90] sm:$0xff] %vm209, %v382
      %415 = vst.msk [vmem:[#allocation3 + $0x98] sm:$0xff] %vm209, %v383
      %416 = vst.msk [vmem:[#allocation3 + $0xa0] sm:$0xff] %vm209, %v384
      %417 = vst.msk [vmem:[#allocation3 + $0xa8] sm:$0xff] %vm209, %v385
      %418 = vst.msk [vmem:[#allocation3 + $0xb0] sm:$0xff] %vm209, %v386
      %419 = vst.msk [vmem:[#allocation3 + $0xb8] sm:$0xff] %vm209, %v387
      %420 = vst.msk [vmem:[#allocation3 + $0xc0] sm:$0xff] %vm209, %v388
      %421 = vst.msk [vmem:[#allocation3 + $0xc8] sm:$0xff] %vm209, %v389
      %422 = vst.msk [vmem:[#allocation3 + $0xd0] sm:$0xff] %vm209, %v390
      %423 = vst.msk [vmem:[#allocation3 + $0xd8] sm:$0xff] %vm209, %v391
      %424 = vst.msk [vmem:[#allocation3 + $0xe0] sm:$0xff] %vm209, %v392
      %425 = vst.msk [vmem:[#allocation3 + $0xe8] sm:$0xff] %vm209, %v393
      %426 = vst.msk [vmem:[#allocation3 + $0xf0] sm:$0xff] %vm209, %v394
      %427 = vst.msk [vmem:[#allocation3 + $0xf8] sm:$0xff] %vm209, %v395
      %v428 = vld [vmem:[#allocation2 + $0x1] sm:$0xff]
      %v429 = vld [vmem:[#allocation2 + $0x9] sm:$0xff]
      %v430 = vld [vmem:[#allocation2 + $0x19] sm:$0xff]
      %v431 = vld [vmem:[#allocation2 + $0x21] sm:$0xff]
      %v432 = vld [vmem:[#allocation2 + $0x31] sm:$0xff]
      %v433 = vld [vmem:[#allocation2 + $0x39] sm:$0xff]
      %v434 = vld [vmem:[#allocation2 + $0x49] sm:$0xff]
      %v435 = vld [vmem:[#allocation2 + $0x51] sm:$0xff]
      %v436 = vld [vmem:[#allocation2 + $0x61] sm:$0xff]
      %v437 = vld [vmem:[#allocation2 + $0x69] sm:$0xff]
      %v438 = vld [vmem:[#allocation2 + $0x79] sm:$0xff]
      %v439 = vld [vmem:[#allocation2 + $0x81] sm:$0xff]
      %v440 = vld [vmem:[#allocation2 + $0x91] sm:$0xff]
      %v441 = vld [vmem:[#allocation2 + $0x99] sm:$0xff]
      %v442 = vld [vmem:[#allocation2 + $0xa9] sm:$0xff]
      %v443 = vld [vmem:[#allocation2 + $0xb1] sm:$0xff]
      %v444 = vld [vmem:[#allocation2 + $0xc1] sm:$0xff]
      %v445 = vld [vmem:[#allocation2 + $0xc9] sm:$0xff]
      %v446 = vld [vmem:[#allocation2 + $0xd9] sm:$0xff]
      %v447 = vld [vmem:[#allocation2 + $0xe1] sm:$0xff]
      %v448 = vld [vmem:[#allocation2 + $0xf1] sm:$0xff]
      %v449 = vld [vmem:[#allocation2 + $0xf9] sm:$0xff]
      %v450 = vld [vmem:[#allocation2 + $0x109] sm:$0xff]
      %v451 = vld [vmem:[#allocation2 + $0x111] sm:$0xff]
      %v452 = vld [vmem:[#allocation2 + $0x121] sm:$0xff]
      %v453 = vld [vmem:[#allocation2 + $0x129] sm:$0xff]
      %v454 = vld [vmem:[#allocation2 + $0x139] sm:$0xff]
      %v455 = vld [vmem:[#allocation2 + $0x141] sm:$0xff]
      %v456 = vld [vmem:[#allocation2 + $0x151] sm:$0xff]
      %v457 = vld [vmem:[#allocation2 + $0x159] sm:$0xff]
      %v458 = vld [vmem:[#allocation2 + $0x169] sm:$0xff]
      %v459 = vld [vmem:[#allocation2 + $0x171] sm:$0xff]
      %492 = vrot.lane.b32.xlu0 %v428, 5
      %v493 = vpop.permute.xlu0 %492
      %494 = vrot.lane.b32.xlu0 %v429, 5
      %v495 = vpop.permute.xlu0 %494
      %496 = vrot.lane.b32.xlu0 %v430, 5
      %v497 = vpop.permute.xlu0 %496
      %498 = vrot.lane.b32.xlu0 %v431, 5
      %v499 = vpop.permute.xlu0 %498
      %500 = vrot.lane.b32.xlu0 %v432, 5
      %v501 = vpop.permute.xlu0 %500
      %502 = vrot.lane.b32.xlu0 %v433, 5
      %v503 = vpop.permute.xlu0 %502
      %504 = vrot.lane.b32.xlu0 %v434, 5
      %v505 = vpop.permute.xlu0 %504
      %506 = vrot.lane.b32.xlu0 %v435, 5
      %v507 = vpop.permute.xlu0 %506
      %508 = vrot.lane.b32.xlu0 %v436, 5
      %v509 = vpop.permute.xlu0 %508
      %510 = vrot.lane.b32.xlu0 %v437, 5
      %v511 = vpop.permute.xlu0 %510
      %512 = vrot.lane.b32.xlu0 %v438, 5
      %v513 = vpop.permute.xlu0 %512
      %514 = vrot.lane.b32.xlu0 %v439, 5
      %v515 = vpop.permute.xlu0 %514
      %516 = vrot.lane.b32.xlu0 %v440, 5
      %v517 = vpop.permute.xlu0 %516
      %518 = vrot.lane.b32.xlu0 %v441, 5
      %v519 = vpop.permute.xlu0 %518
      %520 = vrot.lane.b32.xlu0 %v442, 5
      %v521 = vpop.permute.xlu0 %520
      %522 = vrot.lane.b32.xlu0 %v443, 5
      %v523 = vpop.permute.xlu0 %522
      %524 = vrot.lane.b32.xlu0 %v444, 5
      %v525 = vpop.permute.xlu0 %524
      %526 = vrot.lane.b32.xlu0 %v445, 5
      %v527 = vpop.permute.xlu0 %526
      %528 = vrot.lane.b32.xlu0 %v446, 5
      %v529 = vpop.permute.xlu0 %528
      %530 = vrot.lane.b32.xlu0 %v447, 5
      %v531 = vpop.permute.xlu0 %530
      %532 = vrot.lane.b32.xlu0 %v448, 5
      %v533 = vpop.permute.xlu0 %532
      %534 = vrot.lane.b32.xlu0 %v449, 5
      %v535 = vpop.permute.xlu0 %534
      %536 = vrot.lane.b32.xlu0 %v450, 5
      %v537 = vpop.permute.xlu0 %536
      %538 = vrot.lane.b32.xlu0 %v451, 5
      %v539 = vpop.permute.xlu0 %538
      %540 = vrot.lane.b32.xlu0 %v452, 5
      %v541 = vpop.permute.xlu0 %540
      %542 = vrot.lane.b32.xlu0 %v453, 5
      %v543 = vpop.permute.xlu0 %542
      %544 = vrot.lane.b32.xlu0 %v454, 5
      %v545 = vpop.permute.xlu0 %544
      %546 = vrot.lane.b32.xlu0 %v455, 5
      %v547 = vpop.permute.xlu0 %546
      %548 = vrot.lane.b32.xlu0 %v456, 5
      %v549 = vpop.permute.xlu0 %548
      %550 = vrot.lane.b32.xlu0 %v457, 5
      %v551 = vpop.permute.xlu0 %550
      %552 = vrot.lane.b32.xlu0 %v458, 5
      %v553 = vpop.permute.xlu0 %552
      %554 = vrot.lane.b32.xlu0 %v459, 5
      %v555 = vpop.permute.xlu0 %554
      %vm588 = vcmask 80936
      %589 = vst.msk [vmem:[#allocation3] sm:$0xff] %vm588, %v493
      %590 = vst.msk [vmem:[#allocation3 + $0x8] sm:$0xff] %vm588, %v495
      %591 = vst.msk [vmem:[#allocation3 + $0x10] sm:$0xff] %vm588, %v497
      %592 = vst.msk [vmem:[#allocation3 + $0x18] sm:$0xff] %vm588, %v499
      %593 = vst.msk [vmem:[#allocation3 + $0x20] sm:$0xff] %vm588, %v501
      %594 = vst.msk [vmem:[#allocation3 + $0x28] sm:$0xff] %vm588, %v503
      %595 = vst.msk [vmem:[#allocation3 + $0x30] sm:$0xff] %vm588, %v505
      %596 = vst.msk [vmem:[#allocation3 + $0x38] sm:$0xff] %vm588, %v507
      %597 = vst.msk [vmem:[#allocation3 + $0x40] sm:$0xff] %vm588, %v509
      %598 = vst.msk [vmem:[#allocation3 + $0x48] sm:$0xff] %vm588, %v511
      %599 = vst.msk [vmem:[#allocation3 + $0x50] sm:$0xff] %vm588, %v513
      %600 = vst.msk [vmem:[#allocation3 + $0x58] sm:$0xff] %vm588, %v515
      %601 = vst.msk [vmem:[#allocation3 + $0x60] sm:$0xff] %vm588, %v517
      %602 = vst.msk [vmem:[#allocation3 + $0x68] sm:$0xff] %vm588, %v519
      %603 = vst.msk [vmem:[#allocation3 + $0x70] sm:$0xff] %vm588, %v521
      %604 = vst.msk [vmem:[#allocation3 + $0x78] sm:$0xff] %vm588, %v523
      %605 = vst.msk [vmem:[#allocation3 + $0x80] sm:$0xff] %vm588, %v525
      %606 = vst.msk [vmem:[#allocation3 + $0x88] sm:$0xff] %vm588, %v527
      %607 = vst.msk [vmem:[#allocation3 + $0x90] sm:$0xff] %vm588, %v529
      %608 = vst.msk [vmem:[#allocation3 + $0x98] sm:$0xff] %vm588, %v531
      %609 = vst.msk [vmem:[#allocation3 + $0xa0] sm:$0xff] %vm588, %v533
      %610 = vst.msk [vmem:[#allocation3 + $0xa8] sm:$0xff] %vm588, %v535
      %611 = vst.msk [vmem:[#allocation3 + $0xb0] sm:$0xff] %vm588, %v537
      %612 = vst.msk [vmem:[#allocation3 + $0xb8] sm:$0xff] %vm588, %v539
      %613 = vst.msk [vmem:[#allocation3 + $0xc0] sm:$0xff] %vm588, %v541
      %614 = vst.msk [vmem:[#allocation3 + $0xc8] sm:$0xff] %vm588, %v543
      %615 = vst.msk [vmem:[#allocation3 + $0xd0] sm:$0xff] %vm588, %v545
      %616 = vst.msk [vmem:[#allocation3 + $0xd8] sm:$0xff] %vm588, %v547
      %617 = vst.msk [vmem:[#allocation3 + $0xe0] sm:$0xff] %vm588, %v549
      %618 = vst.msk [vmem:[#allocation3 + $0xe8] sm:$0xff] %vm588, %v551
      %619 = vst.msk [vmem:[#allocation3 + $0xf0] sm:$0xff] %vm588, %v553
      %620 = vst.msk [vmem:[#allocation3 + $0xf8] sm:$0xff] %vm588, %v555
      %v621 = vld [vmem:[#allocation2 + $0x2] sm:$0xff]
      %v622 = vld [vmem:[#allocation2 + $0xa] sm:$0xff]
      %v623 = vld [vmem:[#allocation2 + $0x1a] sm:$0xff]
      %v624 = vld [vmem:[#allocation2 + $0x22] sm:$0xff]
      %v625 = vld [vmem:[#allocation2 + $0x32] sm:$0xff]
      %v626 = vld [vmem:[#allocation2 + $0x3a] sm:$0xff]
      %v627 = vld [vmem:[#allocation2 + $0x4a] sm:$0xff]
      %v628 = vld [vmem:[#allocation2 + $0x52] sm:$0xff]
      %v629 = vld [vmem:[#allocation2 + $0x62] sm:$0xff]
      %v630 = vld [vmem:[#allocation2 + $0x6a] sm:$0xff]
      %v631 = vld [vmem:[#allocation2 + $0x7a] sm:$0xff]
      %v632 = vld [vmem:[#allocation2 + $0x82] sm:$0xff]
      %v633 = vld [vmem:[#allocation2 + $0x92] sm:$0xff]
      %v634 = vld [vmem:[#allocation2 + $0x9a] sm:$0xff]
      %v635 = vld [vmem:[#allocation2 + $0xaa] sm:$0xff]
      %v636 = vld [vmem:[#allocation2 + $0xb2] sm:$0xff]
      %v637 = vld [vmem:[#allocation2 + $0xc2] sm:$0xff]
      %v638 = vld [vmem:[#allocation2 + $0xca] sm:$0xff]
      %v639 = vld [vmem:[#allocation2 + $0xda] sm:$0xff]
      %v640 = vld [vmem:[#allocation2 + $0xe2] sm:$0xff]
      %v641 = vld [vmem:[#allocation2 + $0xf2] sm:$0xff]
      %v642 = vld [vmem:[#allocation2 + $0xfa] sm:$0xff]
      %v643 = vld [vmem:[#allocation2 + $0x10a] sm:$0xff]
      %v644 = vld [vmem:[#allocation2 + $0x112] sm:$0xff]
      %v645 = vld [vmem:[#allocation2 + $0x122] sm:$0xff]
      %v646 = vld [vmem:[#allocation2 + $0x12a] sm:$0xff]
      %v647 = vld [vmem:[#allocation2 + $0x13a] sm:$0xff]
      %v648 = vld [vmem:[#allocation2 + $0x142] sm:$0xff]
      %v649 = vld [vmem:[#allocation2 + $0x152] sm:$0xff]
      %v650 = vld [vmem:[#allocation2 + $0x15a] sm:$0xff]
      %v651 = vld [vmem:[#allocation2 + $0x16a] sm:$0xff]
      %v652 = vld [vmem:[#allocation2 + $0x172] sm:$0xff]
      %685 = vrot.lane.b32.xlu0 %v621, 10
      %v686 = vpop.permute.xlu0 %685
      %687 = vrot.lane.b32.xlu0 %v622, 10
      %v688 = vpop.permute.xlu0 %687
      %689 = vrot.lane.b32.xlu0 %v623, 10
      %v690 = vpop.permute.xlu0 %689
      %691 = vrot.lane.b32.xlu0 %v624, 10
      %v692 = vpop.permute.xlu0 %691
      %693 = vrot.lane.b32.xlu0 %v625, 10
      %v694 = vpop.permute.xlu0 %693
      %695 = vrot.lane.b32.xlu0 %v626, 10
      %v696 = vpop.permute.xlu0 %695
      %697 = vrot.lane.b32.xlu0 %v627, 10
      %v698 = vpop.permute.xlu0 %697
      %699 = vrot.lane.b32.xlu0 %v628, 10
      %v700 = vpop.permute.xlu0 %699
      %701 = vrot.lane.b32.xlu0 %v629, 10
      %v702 = vpop.permute.xlu0 %701
      %703 = vrot.lane.b32.xlu0 %v630, 10
      %v704 = vpop.permute.xlu0 %703
      %705 = vrot.lane.b32.xlu0 %v631, 10
      %v706 = vpop.permute.xlu0 %705
      %707 = vrot.lane.b32.xlu0 %v632, 10
      %v708 = vpop.permute.xlu0 %707
      %709 = vrot.lane.b32.xlu0 %v633, 10
      %v710 = vpop.permute.xlu0 %709
      %711 = vrot.lane.b32.xlu0 %v634, 10
      %v712 = vpop.permute.xlu0 %711
      %713 = vrot.lane.b32.xlu0 %v635, 10
      %v714 = vpop.permute.xlu0 %713
      %715 = vrot.lane.b32.xlu0 %v636, 10
      %v716 = vpop.permute.xlu0 %715
      %717 = vrot.lane.b32.xlu0 %v637, 10
      %v718 = vpop.permute.xlu0 %717
      %719 = vrot.lane.b32.xlu0 %v638, 10
      %v720 = vpop.permute.xlu0 %719
      %721 = vrot.lane.b32.xlu0 %v639, 10
      %v722 = vpop.permute.xlu0 %721
      %723 = vrot.lane.b32.xlu0 %v640, 10
      %v724 = vpop.permute.xlu0 %723
      %725 = vrot.lane.b32.xlu0 %v641, 10
      %v726 = vpop.permute.xlu0 %725
      %727 = vrot.lane.b32.xlu0 %v642, 10
      %v728 = vpop.permute.xlu0 %727
      %729 = vrot.lane.b32.xlu0 %v643, 10
      %v730 = vpop.permute.xlu0 %729
      %731 = vrot.lane.b32.xlu0 %v644, 10
      %v732 = vpop.permute.xlu0 %731
      %733 = vrot.lane.b32.xlu0 %v645, 10
      %v734 = vpop.permute.xlu0 %733
      %735 = vrot.lane.b32.xlu0 %v646, 10
      %v736 = vpop.permute.xlu0 %735
      %737 = vrot.lane.b32.xlu0 %v647, 10
      %v738 = vpop.permute.xlu0 %737
      %739 = vrot.lane.b32.xlu0 %v648, 10
      %v740 = vpop.permute.xlu0 %739
      %741 = vrot.lane.b32.xlu0 %v649, 10
      %v742 = vpop.permute.xlu0 %741
      %743 = vrot.lane.b32.xlu0 %v650, 10
      %v744 = vpop.permute.xlu0 %743
      %745 = vrot.lane.b32.xlu0 %v651, 10
      %v746 = vpop.permute.xlu0 %745
      %747 = vrot.lane.b32.xlu0 %v652, 10
      %v748 = vpop.permute.xlu0 %747
      %vm781 = vcmask 121936
      %782 = vst.msk [vmem:[#allocation3] sm:$0xff] %vm781, %v686
      %783 = vst.msk [vmem:[#allocation3 + $0x8] sm:$0xff] %vm781, %v688
      %784 = vst.msk [vmem:[#allocation3 + $0x10] sm:$0xff] %vm781, %v690
      %785 = vst.msk [vmem:[#allocation3 + $0x18] sm:$0xff] %vm781, %v692
      %786 = vst.msk [vmem:[#allocation3 + $0x20] sm:$0xff] %vm781, %v694
      %787 = vst.msk [vmem:[#allocation3 + $0x28] sm:$0xff] %vm781, %v696
      %788 = vst.msk [vmem:[#allocation3 + $0x30] sm:$0xff] %vm781, %v698
      %789 = vst.msk [vmem:[#allocation3 + $0x38] sm:$0xff] %vm781, %v700
      %790 = vst.msk [vmem:[#allocation3 + $0x40] sm:$0xff] %vm781, %v702
      %791 = vst.msk [vmem:[#allocation3 + $0x48] sm:$0xff] %vm781, %v704
      %792 = vst.msk [vmem:[#allocation3 + $0x50] sm:$0xff] %vm781, %v706
      %793 = vst.msk [vmem:[#allocation3 + $0x58] sm:$0xff] %vm781, %v708
      %794 = vst.msk [vmem:[#allocation3 + $0x60] sm:$0xff] %vm781, %v710
      %795 = vst.msk [vmem:[#allocation3 + $0x68] sm:$0xff] %vm781, %v712
      %796 = vst.msk [vmem:[#allocation3 + $0x70] sm:$0xff] %vm781, %v714
      %797 = vst.msk [vmem:[#allocation3 + $0x78] sm:$0xff] %vm781, %v716
      %798 = vst.msk [vmem:[#allocation3 + $0x80] sm:$0xff] %vm781, %v718
      %799 = vst.msk [vmem:[#allocation3 + $0x88] sm:$0xff] %vm781, %v720
      %800 = vst.msk [vmem:[#allocation3 + $0x90] sm:$0xff] %vm781, %v722
      %801 = vst.msk [vmem:[#allocation3 + $0x98] sm:$0xff] %vm781, %v724
      %802 = vst.msk [vmem:[#allocation3 + $0xa0] sm:$0xff] %vm781, %v726
      %803 = vst.msk [vmem:[#allocation3 + $0xa8] sm:$0xff] %vm781, %v728
      %804 = vst.msk [vmem:[#allocation3 + $0xb0] sm:$0xff] %vm781, %v730
      %805 = vst.msk [vmem:[#allocation3 + $0xb8] sm:$0xff] %vm781, %v732
      %806 = vst.msk [vmem:[#allocation3 + $0xc0] sm:$0xff] %vm781, %v734
      %807 = vst.msk [vmem:[#allocation3 + $0xc8] sm:$0xff] %vm781, %v736
      %808 = vst.msk [vmem:[#allocation3 + $0xd0] sm:$0xff] %vm781, %v738
      %809 = vst.msk [vmem:[#allocation3 + $0xd8] sm:$0xff] %vm781, %v740
      %810 = vst.msk [vmem:[#allocation3 + $0xe0] sm:$0xff] %vm781, %v742
      %811 = vst.msk [vmem:[#allocation3 + $0xe8] sm:$0xff] %vm781, %v744
      %812 = vst.msk [vmem:[#allocation3 + $0xf0] sm:$0xff] %vm781, %v746
      %813 = vst.msk [vmem:[#allocation3 + $0xf8] sm:$0xff] %vm781, %v748
      %v814 = vld [vmem:[%s297] sm:$0xff]
      %v815 = vld [vmem:[%s297 + $0x8] sm:$0xff]
      %v816 = vld [vmem:[%s297 + $0x18] sm:$0xff]
      %v817 = vld [vmem:[%s297 + $0x20] sm:$0xff]
      %v818 = vld [vmem:[%s297 + $0x30] sm:$0xff]
      %v819 = vld [vmem:[%s297 + $0x38] sm:$0xff]
      %v820 = vld [vmem:[%s297 + $0x48] sm:$0xff]
      %v821 = vld [vmem:[%s297 + $0x50] sm:$0xff]
      %v822 = vld [vmem:[%s297 + $0x60] sm:$0xff]
      %v823 = vld [vmem:[%s297 + $0x68] sm:$0xff]
      %v824 = vld [vmem:[%s297 + $0x78] sm:$0xff]
      %v825 = vld [vmem:[%s297 + $0x80] sm:$0xff]
      %v826 = vld [vmem:[%s297 + $0x90] sm:$0xff]
      %v827 = vld [vmem:[%s297 + $0x98] sm:$0xff]
      %v828 = vld [vmem:[%s297 + $0xa8] sm:$0xff]
      %v829 = vld [vmem:[%s297 + $0xb0] sm:$0xff]
      %v830 = vld [vmem:[%s297 + $0xc0] sm:$0xff]
      %v831 = vld [vmem:[%s297 + $0xc8] sm:$0xff]
      %v832 = vld [vmem:[%s297 + $0xd8] sm:$0xff]
      %v833 = vld [vmem:[%s297 + $0xe0] sm:$0xff]
      %v834 = vld [vmem:[%s297 + $0xf0] sm:$0xff]
      %v835 = vld [vmem:[%s297 + $0xf8] sm:$0xff]
      %v836 = vld [vmem:[%s297 + $0x108] sm:$0xff]
      %v837 = vld [vmem:[%s297 + $0x110] sm:$0xff]
      %v838 = vld [vmem:[%s297 + $0x120] sm:$0xff]
      %v839 = vld [vmem:[%s297 + $0x128] sm:$0xff]
      %v840 = vld [vmem:[%s297 + $0x138] sm:$0xff]
      %v841 = vld [vmem:[%s297 + $0x140] sm:$0xff]
      %v842 = vld [vmem:[%s297 + $0x150] sm:$0xff]
      %v843 = vld [vmem:[%s297 + $0x158] sm:$0xff]
      %v844 = vld [vmem:[%s297 + $0x168] sm:$0xff]
      %v845 = vld [vmem:[%s297 + $0x170] sm:$0xff]
      %878 = vrot.lane.b32.xlu0 %v814, 15
      %v879 = vpop.permute.xlu0 %878
      %880 = vrot.lane.b32.xlu0 %v815, 15
      %v881 = vpop.permute.xlu0 %880
      %882 = vrot.lane.b32.xlu0 %v816, 15
      %v883 = vpop.permute.xlu0 %882
      %884 = vrot.lane.b32.xlu0 %v817, 15
      %v885 = vpop.permute.xlu0 %884
      %886 = vrot.lane.b32.xlu0 %v818, 15
      %v887 = vpop.permute.xlu0 %886
      %888 = vrot.lane.b32.xlu0 %v819, 15
      %v889 = vpop.permute.xlu0 %888
      %890 = vrot.lane.b32.xlu0 %v820, 15
      %v891 = vpop.permute.xlu0 %890
      %892 = vrot.lane.b32.xlu0 %v821, 15
      %v893 = vpop.permute.xlu0 %892
      %894 = vrot.lane.b32.xlu0 %v822, 15
      %v895 = vpop.permute.xlu0 %894
      %896 = vrot.lane.b32.xlu0 %v823, 15
      %v897 = vpop.permute.xlu0 %896
      %898 = vrot.lane.b32.xlu0 %v824, 15
      %v899 = vpop.permute.xlu0 %898
      %900 = vrot.lane.b32.xlu0 %v825, 15
      %v901 = vpop.permute.xlu0 %900
      %902 = vrot.lane.b32.xlu0 %v826, 15
      %v903 = vpop.permute.xlu0 %902
      %904 = vrot.lane.b32.xlu0 %v827, 15
      %v905 = vpop.permute.xlu0 %904
      %906 = vrot.lane.b32.xlu0 %v828, 15
      %v907 = vpop.permute.xlu0 %906
      %908 = vrot.lane.b32.xlu0 %v829, 15
      %v909 = vpop.permute.xlu0 %908
      %910 = vrot.lane.b32.xlu0 %v830, 15
      %v911 = vpop.permute.xlu0 %910
      %912 = vrot.lane.b32.xlu0 %v831, 15
      %v913 = vpop.permute.xlu0 %912
      %914 = vrot.lane.b32.xlu0 %v832, 15
      %v915 = vpop.permute.xlu0 %914
      %916 = vrot.lane.b32.xlu0 %v833, 15
      %v917 = vpop.permute.xlu0 %916
      %918 = vrot.lane.b32.xlu0 %v834, 15
      %v919 = vpop.permute.xlu0 %918
      %920 = vrot.lane.b32.xlu0 %v835, 15
      %v921 = vpop.permute.xlu0 %920
      %922 = vrot.lane.b32.xlu0 %v836, 15
      %v923 = vpop.permute.xlu0 %922
      %924 = vrot.lane.b32.xlu0 %v837, 15
      %v925 = vpop.permute.xlu0 %924
      %926 = vrot.lane.b32.xlu0 %v838, 15
      %v927 = vpop.permute.xlu0 %926
      %928 = vrot.lane.b32.xlu0 %v839, 15
      %v929 = vpop.permute.xlu0 %928
      %930 = vrot.lane.b32.xlu0 %v840, 15
      %v931 = vpop.permute.xlu0 %930
      %932 = vrot.lane.b32.xlu0 %v841, 15
      %v933 = vpop.permute.xlu0 %932
      %934 = vrot.lane.b32.xlu0 %v842, 15
      %v935 = vpop.permute.xlu0 %934
      %936 = vrot.lane.b32.xlu0 %v843, 15
      %v937 = vpop.permute.xlu0 %936
      %938 = vrot.lane.b32.xlu0 %v844, 15
      %v939 = vpop.permute.xlu0 %938
      %940 = vrot.lane.b32.xlu0 %v845, 15
      %v941 = vpop.permute.xlu0 %940
      %vm974 = vcmask 162936
      %975 = vst.msk [vmem:[#allocation3] sm:$0xff] %vm974, %v879
      %976 = vst.msk [vmem:[#allocation3 + $0x8] sm:$0xff] %vm974, %v881
      %977 = vst.msk [vmem:[#allocation3 + $0x10] sm:$0xff] %vm974, %v883
      %978 = vst.msk [vmem:[#allocation3 + $0x18] sm:$0xff] %vm974, %v885
      %979 = vst.msk [vmem:[#allocation3 + $0x20] sm:$0xff] %vm974, %v887
      %980 = vst.msk [vmem:[#allocation3 + $0x28] sm:$0xff] %vm974, %v889
      %981 = vst.msk [vmem:[#allocation3 + $0x30] sm:$0xff] %vm974, %v891
      %982 = vst.msk [vmem:[#allocation3 + $0x38] sm:$0xff] %vm974, %v893
      %983 = vst.msk [vmem:[#allocation3 + $0x40] sm:$0xff] %vm974, %v895
      %984 = vst.msk [vmem:[#allocation3 + $0x48] sm:$0xff] %vm974, %v897
      %985 = vst.msk [vmem:[#allocation3 + $0x50] sm:$0xff] %vm974, %v899
      %986 = vst.msk [vmem:[#allocation3 + $0x58] sm:$0xff] %vm974, %v901
      %987 = vst.msk [vmem:[#allocation3 + $0x60] sm:$0xff] %vm974, %v903
      %988 = vst.msk [vmem:[#allocation3 + $0x68] sm:$0xff] %vm974, %v905
      %989 = vst.msk [vmem:[#allocation3 + $0x70] sm:$0xff] %vm974, %v907
      %990 = vst.msk [vmem:[#allocation3 + $0x78] sm:$0xff] %vm974, %v909
      %991 = vst.msk [vmem:[#allocation3 + $0x80] sm:$0xff] %vm974, %v911
      %992 = vst.msk [vmem:[#allocation3 + $0x88] sm:$0xff] %vm974, %v913
      %993 = vst.msk [vmem:[#allocation3 + $0x90] sm:$0xff] %vm974, %v915
      %994 = vst.msk [vmem:[#allocation3 + $0x98] sm:$0xff] %vm974, %v917
      %995 = vst.msk [vmem:[#allocation3 + $0xa0] sm:$0xff] %vm974, %v919
      %996 = vst.msk [vmem:[#allocation3 + $0xa8] sm:$0xff] %vm974, %v921
      %997 = vst.msk [vmem:[#allocation3 + $0xb0] sm:$0xff] %vm974, %v923
      %998 = vst.msk [vmem:[#allocation3 + $0xb8] sm:$0xff] %vm974, %v925
      %999 = vst.msk [vmem:[#allocation3 + $0xc0] sm:$0xff] %vm974, %v927
      %1000 = vst.msk [vmem:[#allocation3 + $0xc8] sm:$0xff] %vm974, %v929
      %1001 = vst.msk [vmem:[#allocation3 + $0xd0] sm:$0xff] %vm974, %v931
      %1002 = vst.msk [vmem:[#allocation3 + $0xd8] sm:$0xff] %vm974, %v933
      %1003 = vst.msk [vmem:[#allocation3 + $0xe0] sm:$0xff] %vm974, %v935
      %1004 = vst.msk [vmem:[#allocation3 + $0xe8] sm:$0xff] %vm974, %v937
      %1005 = vst.msk [vmem:[#allocation3 + $0xf0] sm:$0xff] %vm974, %v939
      %1006 = vst.msk [vmem:[#allocation3 + $0xf8] sm:$0xff] %vm974, %v941
      %v1007 = vld [vmem:[%s297 + $0x1] sm:$0xff]
      %v1008 = vld [vmem:[%s297 + $0x9] sm:$0xff]
      %v1009 = vld [vmem:[%s297 + $0x19] sm:$0xff]
      %v1010 = vld [vmem:[%s297 + $0x21] sm:$0xff]
      %v1011 = vld [vmem:[%s297 + $0x31] sm:$0xff]
      %v1012 = vld [vmem:[%s297 + $0x39] sm:$0xff]
      %v1013 = vld [vmem:[%s297 + $0x49] sm:$0xff]
      %v1014 = vld [vmem:[%s297 + $0x51] sm:$0xff]
      %v1015 = vld [vmem:[%s297 + $0x61] sm:$0xff]
      %v1016 = vld [vmem:[%s297 + $0x69] sm:$0xff]
      %v1017 = vld [vmem:[%s297 + $0x79] sm:$0xff]
      %v1018 = vld [vmem:[%s297 + $0x81] sm:$0xff]
      %v1019 = vld [vmem:[%s297 + $0x91] sm:$0xff]
      %v1020 = vld [vmem:[%s297 + $0x99] sm:$0xff]
      %v1021 = vld [vmem:[%s297 + $0xa9] sm:$0xff]
      %v1022 = vld [vmem:[%s297 + $0xb1] sm:$0xff]
      %v1023 = vld [vmem:[%s297 + $0xc1] sm:$0xff]
      %v1024 = vld [vmem:[%s297 + $0xc9] sm:$0xff]
      %v1025 = vld [vmem:[%s297 + $0xd9] sm:$0xff]
      %v1026 = vld [vmem:[%s297 + $0xe1] sm:$0xff]
      %v1027 = vld [vmem:[%s297 + $0xf1] sm:$0xff]
      %v1028 = vld [vmem:[%s297 + $0xf9] sm:$0xff]
      %v1029 = vld [vmem:[%s297 + $0x109] sm:$0xff]
      %v1030 = vld [vmem:[%s297 + $0x111] sm:$0xff]
      %v1031 = vld [vmem:[%s297 + $0x121] sm:$0xff]
      %v1032 = vld [vmem:[%s297 + $0x129] sm:$0xff]
      %v1033 = vld [vmem:[%s297 + $0x139] sm:$0xff]
      %v1034 = vld [vmem:[%s297 + $0x141] sm:$0xff]
      %v1035 = vld [vmem:[%s297 + $0x151] sm:$0xff]
      %v1036 = vld [vmem:[%s297 + $0x159] sm:$0xff]
      %v1037 = vld [vmem:[%s297 + $0x169] sm:$0xff]
      %v1038 = vld [vmem:[%s297 + $0x171] sm:$0xff]
      %1071 = vrot.lane.b32.xlu0 %v1007, 20
      %v1072 = vpop.permute.xlu0 %1071
      %1073 = vrot.lane.b32.xlu0 %v1008, 20
      %v1074 = vpop.permute.xlu0 %1073
      %1075 = vrot.lane.b32.xlu0 %v1009, 20
      %v1076 = vpop.permute.xlu0 %1075
      %1077 = vrot.lane.b32.xlu0 %v1010, 20
      %v1078 = vpop.permute.xlu0 %1077
      %1079 = vrot.lane.b32.xlu0 %v1011, 20
      %v1080 = vpop.permute.xlu0 %1079
      %1081 = vrot.lane.b32.xlu0 %v1012, 20
      %v1082 = vpop.permute.xlu0 %1081
      %1083 = vrot.lane.b32.xlu0 %v1013, 20
      %v1084 = vpop.permute.xlu0 %1083
      %1085 = vrot.lane.b32.xlu0 %v1014, 20
      %v1086 = vpop.permute.xlu0 %1085
      %1087 = vrot.lane.b32.xlu0 %v1015, 20
      %v1088 = vpop.permute.xlu0 %1087
      %1089 = vrot.lane.b32.xlu0 %v1016, 20
      %v1090 = vpop.permute.xlu0 %1089
      %1091 = vrot.lane.b32.xlu0 %v1017, 20
      %v1092 = vpop.permute.xlu0 %1091
      %1093 = vrot.lane.b32.xlu0 %v1018, 20
      %v1094 = vpop.permute.xlu0 %1093
      %1095 = vrot.lane.b32.xlu0 %v1019, 20
      %v1096 = vpop.permute.xlu0 %1095
      %1097 = vrot.lane.b32.xlu0 %v1020, 20
      %v1098 = vpop.permute.xlu0 %1097
      %1099 = vrot.lane.b32.xlu0 %v1021, 20
      %v1100 = vpop.permute.xlu0 %1099
      %1101 = vrot.lane.b32.xlu0 %v1022, 20
      %v1102 = vpop.permute.xlu0 %1101
      %1103 = vrot.lane.b32.xlu0 %v1023, 20
      %v1104 = vpop.permute.xlu0 %1103
      %1105 = vrot.lane.b32.xlu0 %v1024, 20
      %v1106 = vpop.permute.xlu0 %1105
      %1107 = vrot.lane.b32.xlu0 %v1025, 20
      %v1108 = vpop.permute.xlu0 %1107
      %1109 = vrot.lane.b32.xlu0 %v1026, 20
      %v1110 = vpop.permute.xlu0 %1109
      %1111 = vrot.lane.b32.xlu0 %v1027, 20
      %v1112 = vpop.permute.xlu0 %1111
      %1113 = vrot.lane.b32.xlu0 %v1028, 20
      %v1114 = vpop.permute.xlu0 %1113
      %1115 = vrot.lane.b32.xlu0 %v1029, 20
      %v1116 = vpop.permute.xlu0 %1115
      %1117 = vrot.lane.b32.xlu0 %v1030, 20
      %v1118 = vpop.permute.xlu0 %1117
      %1119 = vrot.lane.b32.xlu0 %v1031, 20
      %v1120 = vpop.permute.xlu0 %1119
      %1121 = vrot.lane.b32.xlu0 %v1032, 20
      %v1122 = vpop.permute.xlu0 %1121
      %1123 = vrot.lane.b32.xlu0 %v1033, 20
      %v1124 = vpop.permute.xlu0 %1123
      %1125 = vrot.lane.b32.xlu0 %v1034, 20
      %v1126 = vpop.permute.xlu0 %1125
      %1127 = vrot.lane.b32.xlu0 %v1035, 20
      %v1128 = vpop.permute.xlu0 %1127
      %1129 = vrot.lane.b32.xlu0 %v1036, 20
      %v1130 = vpop.permute.xlu0 %1129
      %1131 = vrot.lane.b32.xlu0 %v1037, 20
      %v1132 = vpop.permute.xlu0 %1131
      %1133 = vrot.lane.b32.xlu0 %v1038, 20
      %v1134 = vpop.permute.xlu0 %1133
      %vm1167 = vcmask 203936
      %1168 = vst.msk [vmem:[#allocation3] sm:$0xff] %vm1167, %v1072
      %1169 = vst.msk [vmem:[#allocation3 + $0x8] sm:$0xff] %vm1167, %v1074
      %1170 = vst.msk [vmem:[#allocation3 + $0x10] sm:$0xff] %vm1167, %v1076
      %1171 = vst.msk [vmem:[#allocation3 + $0x18] sm:$0xff] %vm1167, %v1078
      %1172 = vst.msk [vmem:[#allocation3 + $0x20] sm:$0xff] %vm1167, %v1080
      %1173 = vst.msk [vmem:[#allocation3 + $0x28] sm:$0xff] %vm1167, %v1082
      %1174 = vst.msk [vmem:[#allocation3 + $0x30] sm:$0xff] %vm1167, %v1084
      %1175 = vst.msk [vmem:[#allocation3 + $0x38] sm:$0xff] %vm1167, %v1086
      %1176 = vst.msk [vmem:[#allocation3 + $0x40] sm:$0xff] %vm1167, %v1088
      %1177 = vst.msk [vmem:[#allocation3 + $0x48] sm:$0xff] %vm1167, %v1090
      %1178 = vst.msk [vmem:[#allocation3 + $0x50] sm:$0xff] %vm1167, %v1092
      %1179 = vst.msk [vmem:[#allocation3 + $0x58] sm:$0xff] %vm1167, %v1094
      %1180 = vst.msk [vmem:[#allocation3 + $0x60] sm:$0xff] %vm1167, %v1096
      %1181 = vst.msk [vmem:[#allocation3 + $0x68] sm:$0xff] %vm1167, %v1098
      %1182 = vst.msk [vmem:[#allocation3 + $0x70] sm:$0xff] %vm1167, %v1100
      %1183 = vst.msk [vmem:[#allocation3 + $0x78] sm:$0xff] %vm1167, %v1102
      %1184 = vst.msk [vmem:[#allocation3 + $0x80] sm:$0xff] %vm1167, %v1104
      %1185 = vst.msk [vmem:[#allocation3 + $0x88] sm:$0xff] %vm1167, %v1106
      %1186 = vst.msk [vmem:[#allocation3 + $0x90] sm:$0xff] %vm1167, %v1108
      %1187 = vst.msk [vmem:[#allocation3 + $0x98] sm:$0xff] %vm1167, %v1110
      %1188 = vst.msk [vmem:[#allocation3 + $0xa0] sm:$0xff] %vm1167, %v1112
      %1189 = vst.msk [vmem:[#allocation3 + $0xa8] sm:$0xff] %vm1167, %v1114
      %1190 = vst.msk [vmem:[#allocation3 + $0xb0] sm:$0xff] %vm1167, %v1116
      %1191 = vst.msk [vmem:[#allocation3 + $0xb8] sm:$0xff] %vm1167, %v1118
      %1192 = vst.msk [vmem:[#allocation3 + $0xc0] sm:$0xff] %vm1167, %v1120
      %1193 = vst.msk [vmem:[#allocation3 + $0xc8] sm:$0xff] %vm1167, %v1122
      %1194 = vst.msk [vmem:[#allocation3 + $0xd0] sm:$0xff] %vm1167, %v1124
      %1195 = vst.msk [vmem:[#allocation3 + $0xd8] sm:$0xff] %vm1167, %v1126
      %1196 = vst.msk [vmem:[#allocation3 + $0xe0] sm:$0xff] %vm1167, %v1128
      %1197 = vst.msk [vmem:[#allocation3 + $0xe8] sm:$0xff] %vm1167, %v1130
      %1198 = vst.msk [vmem:[#allocation3 + $0xf0] sm:$0xff] %vm1167, %v1132
      %1199 = vst.msk [vmem:[#allocation3 + $0xf8] sm:$0xff] %vm1167, %v1134
      %v1200 = vld [vmem:[%s297 + $0x2] sm:$0xff]
      %v1201 = vld [vmem:[%s297 + $0xa] sm:$0xff]
      %v1202 = vld [vmem:[%s297 + $0x1a] sm:$0xff]
      %v1203 = vld [vmem:[%s297 + $0x22] sm:$0xff]
      %v1204 = vld [vmem:[%s297 + $0x32] sm:$0xff]
      %v1205 = vld [vmem:[%s297 + $0x3a] sm:$0xff]
      %v1206 = vld [vmem:[%s297 + $0x4a] sm:$0xff]
      %v1207 = vld [vmem:[%s297 + $0x52] sm:$0xff]
      %v1208 = vld [vmem:[%s297 + $0x62] sm:$0xff]
      %v1209 = vld [vmem:[%s297 + $0x6a] sm:$0xff]
      %v1210 = vld [vmem:[%s297 + $0x7a] sm:$0xff]
      %v1211 = vld [vmem:[%s297 + $0x82] sm:$0xff]
      %v1212 = vld [vmem:[%s297 + $0x92] sm:$0xff]
      %v1213 = vld [vmem:[%s297 + $0x9a] sm:$0xff]
      %v1214 = vld [vmem:[%s297 + $0xaa] sm:$0xff]
      %v1215 = vld [vmem:[%s297 + $0xb2] sm:$0xff]
      %v1216 = vld [vmem:[%s297 + $0xc2] sm:$0xff]
      %v1217 = vld [vmem:[%s297 + $0xca] sm:$0xff]
      %v1218 = vld [vmem:[%s297 + $0xda] sm:$0xff]
      %v1219 = vld [vmem:[%s297 + $0xe2] sm:$0xff]
      %v1220 = vld [vmem:[%s297 + $0xf2] sm:$0xff]
      %v1221 = vld [vmem:[%s297 + $0xfa] sm:$0xff]
      %v1222 = vld [vmem:[%s297 + $0x10a] sm:$0xff]
      %v1223 = vld [vmem:[%s297 + $0x112] sm:$0xff]
      %v1224 = vld [vmem:[%s297 + $0x122] sm:$0xff]
      %v1225 = vld [vmem:[%s297 + $0x12a] sm:$0xff]
      %v1226 = vld [vmem:[%s297 + $0x13a] sm:$0xff]
      %v1227 = vld [vmem:[%s297 + $0x142] sm:$0xff]
      %v1228 = vld [vmem:[%s297 + $0x152] sm:$0xff]
      %v1229 = vld [vmem:[%s297 + $0x15a] sm:$0xff]
      %v1230 = vld [vmem:[%s297 + $0x16a] sm:$0xff]
      %v1231 = vld [vmem:[%s297 + $0x172] sm:$0xff]
      %1264 = vrot.lane.b32.xlu0 %v1200, 25
      %v1265 = vpop.permute.xlu0 %1264
      %1266 = vrot.lane.b32.xlu0 %v1201, 25
      %v1267 = vpop.permute.xlu0 %1266
      %1268 = vrot.lane.b32.xlu0 %v1202, 25
      %v1269 = vpop.permute.xlu0 %1268
      %1270 = vrot.lane.b32.xlu0 %v1203, 25
      %v1271 = vpop.permute.xlu0 %1270
      %1272 = vrot.lane.b32.xlu0 %v1204, 25
      %v1273 = vpop.permute.xlu0 %1272
      %1274 = vrot.lane.b32.xlu0 %v1205, 25
      %v1275 = vpop.permute.xlu0 %1274
      %1276 = vrot.lane.b32.xlu0 %v1206, 25
      %v1277 = vpop.permute.xlu0 %1276
      %1278 = vrot.lane.b32.xlu0 %v1207, 25
      %v1279 = vpop.permute.xlu0 %1278
      %1280 = vrot.lane.b32.xlu0 %v1208, 25
      %v1281 = vpop.permute.xlu0 %1280
      %1282 = vrot.lane.b32.xlu0 %v1209, 25
      %v1283 = vpop.permute.xlu0 %1282
      %1284 = vrot.lane.b32.xlu0 %v1210, 25
      %v1285 = vpop.permute.xlu0 %1284
      %1286 = vrot.lane.b32.xlu0 %v1211, 25
      %v1287 = vpop.permute.xlu0 %1286
      %1288 = vrot.lane.b32.xlu0 %v1212, 25
      %v1289 = vpop.permute.xlu0 %1288
      %1290 = vrot.lane.b32.xlu0 %v1213, 25
      %v1291 = vpop.permute.xlu0 %1290
      %1292 = vrot.lane.b32.xlu0 %v1214, 25
      %v1293 = vpop.permute.xlu0 %1292
      %1294 = vrot.lane.b32.xlu0 %v1215, 25
      %v1295 = vpop.permute.xlu0 %1294
      %1296 = vrot.lane.b32.xlu0 %v1216, 25
      %v1297 = vpop.permute.xlu0 %1296
      %1298 = vrot.lane.b32.xlu0 %v1217, 25
      %v1299 = vpop.permute.xlu0 %1298
      %1300 = vrot.lane.b32.xlu0 %v1218, 25
      %v1301 = vpop.permute.xlu0 %1300
      %1302 = vrot.lane.b32.xlu0 %v1219, 25
      %v1303 = vpop.permute.xlu0 %1302
      %1304 = vrot.lane.b32.xlu0 %v1220, 25
      %v1305 = vpop.permute.xlu0 %1304
      %1306 = vrot.lane.b32.xlu0 %v1221, 25
      %v1307 = vpop.permute.xlu0 %1306
      %1308 = vrot.lane.b32.xlu0 %v1222, 25
      %v1309 = vpop.permute.xlu0 %1308
      %1310 = vrot.lane.b32.xlu0 %v1223, 25
      %v1311 = vpop.permute.xlu0 %1310
      %1312 = vrot.lane.b32.xlu0 %v1224, 25
      %v1313 = vpop.permute.xlu0 %1312
      %1314 = vrot.lane.b32.xlu0 %v1225, 25
      %v1315 = vpop.permute.xlu0 %1314
      %1316 = vrot.lane.b32.xlu0 %v1226, 25
      %v1317 = vpop.permute.xlu0 %1316
      %1318 = vrot.lane.b32.xlu0 %v1227, 25
      %v1319 = vpop.permute.xlu0 %1318
      %1320 = vrot.lane.b32.xlu0 %v1228, 25
      %v1321 = vpop.permute.xlu0 %1320
      %1322 = vrot.lane.b32.xlu0 %v1229, 25
      %v1323 = vpop.permute.xlu0 %1322
      %1324 = vrot.lane.b32.xlu0 %v1230, 25
      %v1325 = vpop.permute.xlu0 %1324
      %1326 = vrot.lane.b32.xlu0 %v1231, 25
      %v1327 = vpop.permute.xlu0 %1326
      %vm1360 = vcmask 244936
      %1361 = vst.msk [vmem:[#allocation3] sm:$0xff] %vm1360, %v1265
      %1362 = vst.msk [vmem:[#allocation3 + $0x8] sm:$0xff] %vm1360, %v1267
      %1363 = vst.msk [vmem:[#allocation3 + $0x10] sm:$0xff] %vm1360, %v1269
      %1364 = vst.msk [vmem:[#allocation3 + $0x18] sm:$0xff] %vm1360, %v1271
      %1365 = vst.msk [vmem:[#allocation3 + $0x20] sm:$0xff] %vm1360, %v1273
      %1366 = vst.msk [vmem:[#allocation3 + $0x28] sm:$0xff] %vm1360, %v1275
      %1367 = vst.msk [vmem:[#allocation3 + $0x30] sm:$0xff] %vm1360, %v1277
      %1368 = vst.msk [vmem:[#allocation3 + $0x38] sm:$0xff] %vm1360, %v1279
      %1369 = vst.msk [vmem:[#allocation3 + $0x40] sm:$0xff] %vm1360, %v1281
      %1370 = vst.msk [vmem:[#allocation3 + $0x48] sm:$0xff] %vm1360, %v1283
      %1371 = vst.msk [vmem:[#allocation3 + $0x50] sm:$0xff] %vm1360, %v1285
      %1372 = vst.msk [vmem:[#allocation3 + $0x58] sm:$0xff] %vm1360, %v1287
      %1373 = vst.msk [vmem:[#allocation3 + $0x60] sm:$0xff] %vm1360, %v1289
      %1374 = vst.msk [vmem:[#allocation3 + $0x68] sm:$0xff] %vm1360, %v1291
      %1375 = vst.msk [vmem:[#allocation3 + $0x70] sm:$0xff] %vm1360, %v1293
      %1376 = vst.msk [vmem:[#allocation3 + $0x78] sm:$0xff] %vm1360, %v1295
      %1377 = vst.msk [vmem:[#allocation3 + $0x80] sm:$0xff] %vm1360, %v1297
      %1378 = vst.msk [vmem:[#allocation3 + $0x88] sm:$0xff] %vm1360, %v1299
      %1379 = vst.msk [vmem:[#allocation3 + $0x90] sm:$0xff] %vm1360, %v1301
      %1380 = vst.msk [vmem:[#allocation3 + $0x98] sm:$0xff] %vm1360, %v1303
      %1381 = vst.msk [vmem:[#allocation3 + $0xa0] sm:$0xff] %vm1360, %v1305
      %1382 = vst.msk [vmem:[#allocation3 + $0xa8] sm:$0xff] %vm1360, %v1307
      %1383 = vst.msk [vmem:[#allocation3 + $0xb0] sm:$0xff] %vm1360, %v1309
      %1384 = vst.msk [vmem:[#allocation3 + $0xb8] sm:$0xff] %vm1360, %v1311
      %1385 = vst.msk [vmem:[#allocation3 + $0xc0] sm:$0xff] %vm1360, %v1313
      %1386 = vst.msk [vmem:[#allocation3 + $0xc8] sm:$0xff] %vm1360, %v1315
      %1387 = vst.msk [vmem:[#allocation3 + $0xd0] sm:$0xff] %vm1360, %v1317
      %1388 = vst.msk [vmem:[#allocation3 + $0xd8] sm:$0xff] %vm1360, %v1319
      %1389 = vst.msk [vmem:[#allocation3 + $0xe0] sm:$0xff] %vm1360, %v1321
      %1390 = vst.msk [vmem:[#allocation3 + $0xe8] sm:$0xff] %vm1360, %v1323
      %1391 = vst.msk [vmem:[#allocation3 + $0xf0] sm:$0xff] %vm1360, %v1325
      %1392 = vst.msk [vmem:[#allocation3 + $0xf8] sm:$0xff] %vm1360, %v1327
      %s1393 = scalar_lea.vmem [#allocation2], 48
      %v1394 = vld [vmem:[%s1393] sm:$0xff]
      %v1395 = vld [vmem:[%s1393 + $0x8] sm:$0xff]
      %v1396 = vld [vmem:[%s1393 + $0x18] sm:$0xff]
      %v1397 = vld [vmem:[%s1393 + $0x20] sm:$0xff]
      %v1398 = vld [vmem:[%s1393 + $0x30] sm:$0xff]
      %v1399 = vld [vmem:[%s1393 + $0x38] sm:$0xff]
      %v1400 = vld [vmem:[%s1393 + $0x48] sm:$0xff]
      %v1401 = vld [vmem:[%s1393 + $0x50] sm:$0xff]
      %v1402 = vld [vmem:[%s1393 + $0x60] sm:$0xff]
      %v1403 = vld [vmem:[%s1393 + $0x68] sm:$0xff]
      %v1404 = vld [vmem:[%s1393 + $0x78] sm:$0xff]
      %v1405 = vld [vmem:[%s1393 + $0x80] sm:$0xff]
      %v1406 = vld [vmem:[%s1393 + $0x90] sm:$0xff]
      %v1407 = vld [vmem:[%s1393 + $0x98] sm:$0xff]
      %v1408 = vld [vmem:[%s1393 + $0xa8] sm:$0xff]
      %v1409 = vld [vmem:[%s1393 + $0xb0] sm:$0xff]
      %v1410 = vld [vmem:[%s1393 + $0xc0] sm:$0xff]
      %v1411 = vld [vmem:[%s1393 + $0xc8] sm:$0xff]
      %v1412 = vld [vmem:[%s1393 + $0xd8] sm:$0xff]
      %v1413 = vld [vmem:[%s1393 + $0xe0] sm:$0xff]
      %v1414 = vld [vmem:[%s1393 + $0xf0] sm:$0xff]
      %v1415 = vld [vmem:[%s1393 + $0xf8] sm:$0xff]
      %v1416 = vld [vmem:[%s1393 + $0x108] sm:$0xff]
      %v1417 = vld [vmem:[%s1393 + $0x110] sm:$0xff]
      %v1418 = vld [vmem:[%s1393 + $0x120] sm:$0xff]
      %v1419 = vld [vmem:[%s1393 + $0x128] sm:$0xff]
      %v1420 = vld [vmem:[%s1393 + $0x138] sm:$0xff]
      %v1421 = vld [vmem:[%s1393 + $0x140] sm:$0xff]
      %v1422 = vld [vmem:[%s1393 + $0x150] sm:$0xff]
      %v1423 = vld [vmem:[%s1393 + $0x158] sm:$0xff]
      %v1424 = vld [vmem:[%s1393 + $0x168] sm:$0xff]
      %v1425 = vld [vmem:[%s1393 + $0x170] sm:$0xff]
      %1458 = vrot.lane.b32.xlu0 %v1394, 30
      %v1459 = vpop.permute.xlu0 %1458
      %1460 = vrot.lane.b32.xlu0 %v1395, 30
      %v1461 = vpop.permute.xlu0 %1460
      %1462 = vrot.lane.b32.xlu0 %v1396, 30
      %v1463 = vpop.permute.xlu0 %1462
      %1464 = vrot.lane.b32.xlu0 %v1397, 30
      %v1465 = vpop.permute.xlu0 %1464
      %1466 = vrot.lane.b32.xlu0 %v1398, 30
      %v1467 = vpop.permute.xlu0 %1466
      %1468 = vrot.lane.b32.xlu0 %v1399, 30
      %v1469 = vpop.permute.xlu0 %1468
      %1470 = vrot.lane.b32.xlu0 %v1400, 30
      %v1471 = vpop.permute.xlu0 %1470
      %1472 = vrot.lane.b32.xlu0 %v1401, 30
      %v1473 = vpop.permute.xlu0 %1472
      %1474 = vrot.lane.b32.xlu0 %v1402, 30
      %v1475 = vpop.permute.xlu0 %1474
      %1476 = vrot.lane.b32.xlu0 %v1403, 30
      %v1477 = vpop.permute.xlu0 %1476
      %1478 = vrot.lane.b32.xlu0 %v1404, 30
      %v1479 = vpop.permute.xlu0 %1478
      %1480 = vrot.lane.b32.xlu0 %v1405, 30
      %v1481 = vpop.permute.xlu0 %1480
      %1482 = vrot.lane.b32.xlu0 %v1406, 30
      %v1483 = vpop.permute.xlu0 %1482
      %1484 = vrot.lane.b32.xlu0 %v1407, 30
      %v1485 = vpop.permute.xlu0 %1484
      %1486 = vrot.lane.b32.xlu0 %v1408, 30
      %v1487 = vpop.permute.xlu0 %1486
      %1488 = vrot.lane.b32.xlu0 %v1409, 30
      %v1489 = vpop.permute.xlu0 %1488
      %1490 = vrot.lane.b32.xlu0 %v1410, 30
      %v1491 = vpop.permute.xlu0 %1490
      %1492 = vrot.lane.b32.xlu0 %v1411, 30
      %v1493 = vpop.permute.xlu0 %1492
      %1494 = vrot.lane.b32.xlu0 %v1412, 30
      %v1495 = vpop.permute.xlu0 %1494
      %1496 = vrot.lane.b32.xlu0 %v1413, 30
      %v1497 = vpop.permute.xlu0 %1496
      %1498 = vrot.lane.b32.xlu0 %v1414, 30
      %v1499 = vpop.permute.xlu0 %1498
      %1500 = vrot.lane.b32.xlu0 %v1415, 30
      %v1501 = vpop.permute.xlu0 %1500
      %1502 = vrot.lane.b32.xlu0 %v1416, 30
      %v1503 = vpop.permute.xlu0 %1502
      %1504 = vrot.lane.b32.xlu0 %v1417, 30
      %v1505 = vpop.permute.xlu0 %1504
      %1506 = vrot.lane.b32.xlu0 %v1418, 30
      %v1507 = vpop.permute.xlu0 %1506
      %1508 = vrot.lane.b32.xlu0 %v1419, 30
      %v1509 = vpop.permute.xlu0 %1508
      %1510 = vrot.lane.b32.xlu0 %v1420, 30
      %v1511 = vpop.permute.xlu0 %1510
      %1512 = vrot.lane.b32.xlu0 %v1421, 30
      %v1513 = vpop.permute.xlu0 %1512
      %1514 = vrot.lane.b32.xlu0 %v1422, 30
      %v1515 = vpop.permute.xlu0 %1514
      %1516 = vrot.lane.b32.xlu0 %v1423, 30
      %v1517 = vpop.permute.xlu0 %1516
      %1518 = vrot.lane.b32.xlu0 %v1424, 30
      %v1519 = vpop.permute.xlu0 %1518
      %1520 = vrot.lane.b32.xlu0 %v1425, 30
      %v1521 = vpop.permute.xlu0 %1520
      %vm1554 = vcmask 285936
      %1555 = vst.msk [vmem:[#allocation3] sm:$0xff] %vm1554, %v1459
      %1556 = vst.msk [vmem:[#allocation3 + $0x8] sm:$0xff] %vm1554, %v1461
      %1557 = vst.msk [vmem:[#allocation3 + $0x10] sm:$0xff] %vm1554, %v1463
      %1558 = vst.msk [vmem:[#allocation3 + $0x18] sm:$0xff] %vm1554, %v1465
      %1559 = vst.msk [vmem:[#allocation3 + $0x20] sm:$0xff] %vm1554, %v1467
      %1560 = vst.msk [vmem:[#allocation3 + $0x28] sm:$0xff] %vm1554, %v1469
      %1561 = vst.msk [vmem:[#allocation3 + $0x30] sm:$0xff] %vm1554, %v1471
      %1562 = vst.msk [vmem:[#allocation3 + $0x38] sm:$0xff] %vm1554, %v1473
      %1563 = vst.msk [vmem:[#allocation3 + $0x40] sm:$0xff] %vm1554, %v1475
      %1564 = vst.msk [vmem:[#allocation3 + $0x48] sm:$0xff] %vm1554, %v1477
      %1565 = vst.msk [vmem:[#allocation3 + $0x50] sm:$0xff] %vm1554, %v1479
      %1566 = vst.msk [vmem:[#allocation3 + $0x58] sm:$0xff] %vm1554, %v1481
      %1567 = vst.msk [vmem:[#allocation3 + $0x60] sm:$0xff] %vm1554, %v1483
      %1568 = vst.msk [vmem:[#allocation3 + $0x68] sm:$0xff] %vm1554, %v1485
      %1569 = vst.msk [vmem:[#allocation3 + $0x70] sm:$0xff] %vm1554, %v1487
      %1570 = vst.msk [vmem:[#allocation3 + $0x78] sm:$0xff] %vm1554, %v1489
      %1571 = vst.msk [vmem:[#allocation3 + $0x80] sm:$0xff] %vm1554, %v1491
      %1572 = vst.msk [vmem:[#allocation3 + $0x88] sm:$0xff] %vm1554, %v1493
      %1573 = vst.msk [vmem:[#allocation3 + $0x90] sm:$0xff] %vm1554, %v1495
      %1574 = vst.msk [vmem:[#allocation3 + $0x98] sm:$0xff] %vm1554, %v1497
      %1575 = vst.msk [vmem:[#allocation3 + $0xa0] sm:$0xff] %vm1554, %v1499
      %1576 = vst.msk [vmem:[#allocation3 + $0xa8] sm:$0xff] %vm1554, %v1501
      %1577 = vst.msk [vmem:[#allocation3 + $0xb0] sm:$0xff] %vm1554, %v1503
      %1578 = vst.msk [vmem:[#allocation3 + $0xb8] sm:$0xff] %vm1554, %v1505
      %1579 = vst.msk [vmem:[#allocation3 + $0xc0] sm:$0xff] %vm1554, %v1507
      %1580 = vst.msk [vmem:[#allocation3 + $0xc8] sm:$0xff] %vm1554, %v1509
      %1581 = vst.msk [vmem:[#allocation3 + $0xd0] sm:$0xff] %vm1554, %v1511
      %1582 = vst.msk [vmem:[#allocation3 + $0xd8] sm:$0xff] %vm1554, %v1513
      %1583 = vst.msk [vmem:[#allocation3 + $0xe0] sm:$0xff] %vm1554, %v1515
      %1584 = vst.msk [vmem:[#allocation3 + $0xe8] sm:$0xff] %vm1554, %v1517
      %1585 = vst.msk [vmem:[#allocation3 + $0xf0] sm:$0xff] %vm1554, %v1519
      %1586 = vst.msk [vmem:[#allocation3 + $0xf8] sm:$0xff] %vm1554, %v1521
      %v1587 = vld [vmem:[%s1393 + $0x1] sm:$0xff]
      %v1588 = vld [vmem:[%s1393 + $0x9] sm:$0xff]
      %v1589 = vld [vmem:[%s1393 + $0x19] sm:$0xff]
      %v1590 = vld [vmem:[%s1393 + $0x21] sm:$0xff]
      %v1591 = vld [vmem:[%s1393 + $0x31] sm:$0xff]
      %v1592 = vld [vmem:[%s1393 + $0x39] sm:$0xff]
      %v1593 = vld [vmem:[%s1393 + $0x49] sm:$0xff]
      %v1594 = vld [vmem:[%s1393 + $0x51] sm:$0xff]
      %v1595 = vld [vmem:[%s1393 + $0x61] sm:$0xff]
      %v1596 = vld [vmem:[%s1393 + $0x69] sm:$0xff]
      %v1597 = vld [vmem:[%s1393 + $0x79] sm:$0xff]
      %v1598 = vld [vmem:[%s1393 + $0x81] sm:$0xff]
      %v1599 = vld [vmem:[%s1393 + $0x91] sm:$0xff]
      %v1600 = vld [vmem:[%s1393 + $0x99] sm:$0xff]
      %v1601 = vld [vmem:[%s1393 + $0xa9] sm:$0xff]
      %v1602 = vld [vmem:[%s1393 + $0xb1] sm:$0xff]
      %v1603 = vld [vmem:[%s1393 + $0xc1] sm:$0xff]
      %v1604 = vld [vmem:[%s1393 + $0xc9] sm:$0xff]
      %v1605 = vld [vmem:[%s1393 + $0xd9] sm:$0xff]
      %v1606 = vld [vmem:[%s1393 + $0xe1] sm:$0xff]
      %v1607 = vld [vmem:[%s1393 + $0xf1] sm:$0xff]
      %v1608 = vld [vmem:[%s1393 + $0xf9] sm:$0xff]
      %v1609 = vld [vmem:[%s1393 + $0x109] sm:$0xff]
      %v1610 = vld [vmem:[%s1393 + $0x111] sm:$0xff]
      %v1611 = vld [vmem:[%s1393 + $0x121] sm:$0xff]
      %v1612 = vld [vmem:[%s1393 + $0x129] sm:$0xff]
      %v1613 = vld [vmem:[%s1393 + $0x139] sm:$0xff]
      %v1614 = vld [vmem:[%s1393 + $0x141] sm:$0xff]
      %v1615 = vld [vmem:[%s1393 + $0x151] sm:$0xff]
      %v1616 = vld [vmem:[%s1393 + $0x159] sm:$0xff]
      %v1617 = vld [vmem:[%s1393 + $0x169] sm:$0xff]
      %v1618 = vld [vmem:[%s1393 + $0x171] sm:$0xff]
      %1651 = vrot.lane.b32.xlu0 %v1587, 35
      %v1652 = vpop.permute.xlu0 %1651
      %1653 = vrot.lane.b32.xlu0 %v1588, 35
      %v1654 = vpop.permute.xlu0 %1653
      %1655 = vrot.lane.b32.xlu0 %v1589, 35
      %v1656 = vpop.permute.xlu0 %1655
      %1657 = vrot.lane.b32.xlu0 %v1590, 35
      %v1658 = vpop.permute.xlu0 %1657
      %1659 = vrot.lane.b32.xlu0 %v1591, 35
      %v1660 = vpop.permute.xlu0 %1659
      %1661 = vrot.lane.b32.xlu0 %v1592, 35
      %v1662 = vpop.permute.xlu0 %1661
      %1663 = vrot.lane.b32.xlu0 %v1593, 35
      %v1664 = vpop.permute.xlu0 %1663
      %1665 = vrot.lane.b32.xlu0 %v1594, 35
      %v1666 = vpop.permute.xlu0 %1665
      %1667 = vrot.lane.b32.xlu0 %v1595, 35
      %v1668 = vpop.permute.xlu0 %1667
      %1669 = vrot.lane.b32.xlu0 %v1596, 35
      %v1670 = vpop.permute.xlu0 %1669
      %1671 = vrot.lane.b32.xlu0 %v1597, 35
      %v1672 = vpop.permute.xlu0 %1671
      %1673 = vrot.lane.b32.xlu0 %v1598, 35
      %v1674 = vpop.permute.xlu0 %1673
      %1675 = vrot.lane.b32.xlu0 %v1599, 35
      %v1676 = vpop.permute.xlu0 %1675
      %1677 = vrot.lane.b32.xlu0 %v1600, 35
      %v1678 = vpop.permute.xlu0 %1677
      %1679 = vrot.lane.b32.xlu0 %v1601, 35
      %v1680 = vpop.permute.xlu0 %1679
      %1681 = vrot.lane.b32.xlu0 %v1602, 35
      %v1682 = vpop.permute.xlu0 %1681
      %1683 = vrot.lane.b32.xlu0 %v1603, 35
      %v1684 = vpop.permute.xlu0 %1683
      %1685 = vrot.lane.b32.xlu0 %v1604, 35
      %v1686 = vpop.permute.xlu0 %1685
      %1687 = vrot.lane.b32.xlu0 %v1605, 35
      %v1688 = vpop.permute.xlu0 %1687
      %1689 = vrot.lane.b32.xlu0 %v1606, 35
      %v1690 = vpop.permute.xlu0 %1689
      %1691 = vrot.lane.b32.xlu0 %v1607, 35
      %v1692 = vpop.permute.xlu0 %1691
      %1693 = vrot.lane.b32.xlu0 %v1608, 35
      %v1694 = vpop.permute.xlu0 %1693
      %1695 = vrot.lane.b32.xlu0 %v1609, 35
      %v1696 = vpop.permute.xlu0 %1695
      %1697 = vrot.lane.b32.xlu0 %v1610, 35
      %v1698 = vpop.permute.xlu0 %1697
      %1699 = vrot.lane.b32.xlu0 %v1611, 35
      %v1700 = vpop.permute.xlu0 %1699
      %1701 = vrot.lane.b32.xlu0 %v1612, 35
      %v1702 = vpop.permute.xlu0 %1701
      %1703 = vrot.lane.b32.xlu0 %v1613, 35
      %v1704 = vpop.permute.xlu0 %1703
      %1705 = vrot.lane.b32.xlu0 %v1614, 35
      %v1706 = vpop.permute.xlu0 %1705
      %1707 = vrot.lane.b32.xlu0 %v1615, 35
      %v1708 = vpop.permute.xlu0 %1707
      %1709 = vrot.lane.b32.xlu0 %v1616, 35
      %v1710 = vpop.permute.xlu0 %1709
      %1711 = vrot.lane.b32.xlu0 %v1617, 35
      %v1712 = vpop.permute.xlu0 %1711
      %1713 = vrot.lane.b32.xlu0 %v1618, 35
      %v1714 = vpop.permute.xlu0 %1713
      %vm1747 = vcmask 326936
      %1748 = vst.msk [vmem:[#allocation3] sm:$0xff] %vm1747, %v1652
      %1749 = vst.msk [vmem:[#allocation3 + $0x8] sm:$0xff] %vm1747, %v1654
      %1750 = vst.msk [vmem:[#allocation3 + $0x10] sm:$0xff] %vm1747, %v1656
      %1751 = vst.msk [vmem:[#allocation3 + $0x18] sm:$0xff] %vm1747, %v1658
      %1752 = vst.msk [vmem:[#allocation3 + $0x20] sm:$0xff] %vm1747, %v1660
      %1753 = vst.msk [vmem:[#allocation3 + $0x28] sm:$0xff] %vm1747, %v1662
      %1754 = vst.msk [vmem:[#allocation3 + $0x30] sm:$0xff] %vm1747, %v1664
      %1755 = vst.msk [vmem:[#allocation3 + $0x38] sm:$0xff] %vm1747, %v1666
      %1756 = vst.msk [vmem:[#allocation3 + $0x40] sm:$0xff] %vm1747, %v1668
      %1757 = vst.msk [vmem:[#allocation3 + $0x48] sm:$0xff] %vm1747, %v1670
      %1758 = vst.msk [vmem:[#allocation3 + $0x50] sm:$0xff] %vm1747, %v1672
      %1759 = vst.msk [vmem:[#allocation3 + $0x58] sm:$0xff] %vm1747, %v1674
      %1760 = vst.msk [vmem:[#allocation3 + $0x60] sm:$0xff] %vm1747, %v1676
      %1761 = vst.msk [vmem:[#allocation3 + $0x68] sm:$0xff] %vm1747, %v1678
      %1762 = vst.msk [vmem:[#allocation3 + $0x70] sm:$0xff] %vm1747, %v1680
      %1763 = vst.msk [vmem:[#allocation3 + $0x78] sm:$0xff] %vm1747, %v1682
      %1764 = vst.msk [vmem:[#allocation3 + $0x80] sm:$0xff] %vm1747, %v1684
      %1765 = vst.msk [vmem:[#allocation3 + $0x88] sm:$0xff] %vm1747, %v1686
      %1766 = vst.msk [vmem:[#allocation3 + $0x90] sm:$0xff] %vm1747, %v1688
      %1767 = vst.msk [vmem:[#allocation3 + $0x98] sm:$0xff] %vm1747, %v1690
      %1768 = vst.msk [vmem:[#allocation3 + $0xa0] sm:$0xff] %vm1747, %v1692
      %1769 = vst.msk [vmem:[#allocation3 + $0xa8] sm:$0xff] %vm1747, %v1694
      %1770 = vst.msk [vmem:[#allocation3 + $0xb0] sm:$0xff] %vm1747, %v1696
      %1771 = vst.msk [vmem:[#allocation3 + $0xb8] sm:$0xff] %vm1747, %v1698
      %1772 = vst.msk [vmem:[#allocation3 + $0xc0] sm:$0xff] %vm1747, %v1700
      %1773 = vst.msk [vmem:[#allocation3 + $0xc8] sm:$0xff] %vm1747, %v1702
      %1774 = vst.msk [vmem:[#allocation3 + $0xd0] sm:$0xff] %vm1747, %v1704
      %1775 = vst.msk [vmem:[#allocation3 + $0xd8] sm:$0xff] %vm1747, %v1706
      %1776 = vst.msk [vmem:[#allocation3 + $0xe0] sm:$0xff] %vm1747, %v1708
      %1777 = vst.msk [vmem:[#allocation3 + $0xe8] sm:$0xff] %vm1747, %v1710
      %1778 = vst.msk [vmem:[#allocation3 + $0xf0] sm:$0xff] %vm1747, %v1712
      %1779 = vst.msk [vmem:[#allocation3 + $0xf8] sm:$0xff] %vm1747, %v1714
      %v1780 = vld [vmem:[%s1393 + $0x2] sm:$0xff]
      %v1781 = vld [vmem:[%s1393 + $0xa] sm:$0xff]
      %v1782 = vld [vmem:[%s1393 + $0x1a] sm:$0xff]
      %v1783 = vld [vmem:[%s1393 + $0x22] sm:$0xff]
      %v1784 = vld [vmem:[%s1393 + $0x32] sm:$0xff]
      %v1785 = vld [vmem:[%s1393 + $0x3a] sm:$0xff]
      %v1786 = vld [vmem:[%s1393 + $0x4a] sm:$0xff]
      %v1787 = vld [vmem:[%s1393 + $0x52] sm:$0xff]
      %v1788 = vld [vmem:[%s1393 + $0x62] sm:$0xff]
      %v1789 = vld [vmem:[%s1393 + $0x6a] sm:$0xff]
      %v1790 = vld [vmem:[%s1393 + $0x7a] sm:$0xff]
      %v1791 = vld [vmem:[%s1393 + $0x82] sm:$0xff]
      %v1792 = vld [vmem:[%s1393 + $0x92] sm:$0xff]
      %v1793 = vld [vmem:[%s1393 + $0x9a] sm:$0xff]
      %v1794 = vld [vmem:[%s1393 + $0xaa] sm:$0xff]
      %v1795 = vld [vmem:[%s1393 + $0xb2] sm:$0xff]
      %v1796 = vld [vmem:[%s1393 + $0xc2] sm:$0xff]
      %v1797 = vld [vmem:[%s1393 + $0xca] sm:$0xff]
      %v1798 = vld [vmem:[%s1393 + $0xda] sm:$0xff]
      %v1799 = vld [vmem:[%s1393 + $0xe2] sm:$0xff]
      %v1800 = vld [vmem:[%s1393 + $0xf2] sm:$0xff]
      %v1801 = vld [vmem:[%s1393 + $0xfa] sm:$0xff]
      %v1802 = vld [vmem:[%s1393 + $0x10a] sm:$0xff]
      %v1803 = vld [vmem:[%s1393 + $0x112] sm:$0xff]
      %v1804 = vld [vmem:[%s1393 + $0x122] sm:$0xff]
      %v1805 = vld [vmem:[%s1393 + $0x12a] sm:$0xff]
      %v1806 = vld [vmem:[%s1393 + $0x13a] sm:$0xff]
      %v1807 = vld [vmem:[%s1393 + $0x142] sm:$0xff]
      %v1808 = vld [vmem:[%s1393 + $0x152] sm:$0xff]
      %v1809 = vld [vmem:[%s1393 + $0x15a] sm:$0xff]
      %v1810 = vld [vmem:[%s1393 + $0x16a] sm:$0xff]
      %v1811 = vld [vmem:[%s1393 + $0x172] sm:$0xff]
      %1844 = vrot.lane.b32.xlu0 %v1780, 40
      %v1845 = vpop.permute.xlu0 %1844
      %1846 = vrot.lane.b32.xlu0 %v1781, 40
      %v1847 = vpop.permute.xlu0 %1846
      %1848 = vrot.lane.b32.xlu0 %v1782, 40
      %v1849 = vpop.permute.xlu0 %1848
      %1850 = vrot.lane.b32.xlu0 %v1783, 40
      %v1851 = vpop.permute.xlu0 %1850
      %1852 = vrot.lane.b32.xlu0 %v1784, 40
      %v1853 = vpop.permute.xlu0 %1852
      %1854 = vrot.lane.b32.xlu0 %v1785, 40
      %v1855 = vpop.permute.xlu0 %1854
      %1856 = vrot.lane.b32.xlu0 %v1786, 40
      %v1857 = vpop.permute.xlu0 %1856
      %1858 = vrot.lane.b32.xlu0 %v1787, 40
      %v1859 = vpop.permute.xlu0 %1858
      %1860 = vrot.lane.b32.xlu0 %v1788, 40
      %v1861 = vpop.permute.xlu0 %1860
      %1862 = vrot.lane.b32.xlu0 %v1789, 40
      %v1863 = vpop.permute.xlu0 %1862
      %1864 = vrot.lane.b32.xlu0 %v1790, 40
      %v1865 = vpop.permute.xlu0 %1864
      %1866 = vrot.lane.b32.xlu0 %v1791, 40
      %v1867 = vpop.permute.xlu0 %1866
      %1868 = vrot.lane.b32.xlu0 %v1792, 40
      %v1869 = vpop.permute.xlu0 %1868
      %1870 = vrot.lane.b32.xlu0 %v1793, 40
      %v1871 = vpop.permute.xlu0 %1870
      %1872 = vrot.lane.b32.xlu0 %v1794, 40
      %v1873 = vpop.permute.xlu0 %1872
      %1874 = vrot.lane.b32.xlu0 %v1795, 40
      %v1875 = vpop.permute.xlu0 %1874
      %1876 = vrot.lane.b32.xlu0 %v1796, 40
      %v1877 = vpop.permute.xlu0 %1876
      %1878 = vrot.lane.b32.xlu0 %v1797, 40
      %v1879 = vpop.permute.xlu0 %1878
      %1880 = vrot.lane.b32.xlu0 %v1798, 40
      %v1881 = vpop.permute.xlu0 %1880
      %1882 = vrot.lane.b32.xlu0 %v1799, 40
      %v1883 = vpop.permute.xlu0 %1882
      %1884 = vrot.lane.b32.xlu0 %v1800, 40
      %v1885 = vpop.permute.xlu0 %1884
      %1886 = vrot.lane.b32.xlu0 %v1801, 40
      %v1887 = vpop.permute.xlu0 %1886
      %1888 = vrot.lane.b32.xlu0 %v1802, 40
      %v1889 = vpop.permute.xlu0 %1888
      %1890 = vrot.lane.b32.xlu0 %v1803, 40
      %v1891 = vpop.permute.xlu0 %1890
      %1892 = vrot.lane.b32.xlu0 %v1804, 40
      %v1893 = vpop.permute.xlu0 %1892
      %1894 = vrot.lane.b32.xlu0 %v1805, 40
      %v1895 = vpop.permute.xlu0 %1894
      %1896 = vrot.lane.b32.xlu0 %v1806, 40
      %v1897 = vpop.permute.xlu0 %1896
      %1898 = vrot.lane.b32.xlu0 %v1807, 40
      %v1899 = vpop.permute.xlu0 %1898
      %1900 = vrot.lane.b32.xlu0 %v1808, 40
      %v1901 = vpop.permute.xlu0 %1900
      %1902 = vrot.lane.b32.xlu0 %v1809, 40
      %v1903 = vpop.permute.xlu0 %1902
      %1904 = vrot.lane.b32.xlu0 %v1810, 40
      %v1905 = vpop.permute.xlu0 %1904
      %1906 = vrot.lane.b32.xlu0 %v1811, 40
      %v1907 = vpop.permute.xlu0 %1906
      %vm1940 = vcmask 367936
      %1941 = vst.msk [vmem:[#allocation3] sm:$0xff] %vm1940, %v1845
      %1942 = vst.msk [vmem:[#allocation3 + $0x8] sm:$0xff] %vm1940, %v1847
      %1943 = vst.msk [vmem:[#allocation3 + $0x10] sm:$0xff] %vm1940, %v1849
      %1944 = vst.msk [vmem:[#allocation3 + $0x18] sm:$0xff] %vm1940, %v1851
      %1945 = vst.msk [vmem:[#allocation3 + $0x20] sm:$0xff] %vm1940, %v1853
      %1946 = vst.msk [vmem:[#allocation3 + $0x28] sm:$0xff] %vm1940, %v1855
      %1947 = vst.msk [vmem:[#allocation3 + $0x30] sm:$0xff] %vm1940, %v1857
      %1948 = vst.msk [vmem:[#allocation3 + $0x38] sm:$0xff] %vm1940, %v1859
      %1949 = vst.msk [vmem:[#allocation3 + $0x40] sm:$0xff] %vm1940, %v1861
      %1950 = vst.msk [vmem:[#allocation3 + $0x48] sm:$0xff] %vm1940, %v1863
      %1951 = vst.msk [vmem:[#allocation3 + $0x50] sm:$0xff] %vm1940, %v1865
      %1952 = vst.msk [vmem:[#allocation3 + $0x58] sm:$0xff] %vm1940, %v1867
      %1953 = vst.msk [vmem:[#allocation3 + $0x60] sm:$0xff] %vm1940, %v1869
      %1954 = vst.msk [vmem:[#allocation3 + $0x68] sm:$0xff] %vm1940, %v1871
      %1955 = vst.msk [vmem:[#allocation3 + $0x70] sm:$0xff] %vm1940, %v1873
      %1956 = vst.msk [vmem:[#allocation3 + $0x78] sm:$0xff] %vm1940, %v1875
      %1957 = vst.msk [vmem:[#allocation3 + $0x80] sm:$0xff] %vm1940, %v1877
      %1958 = vst.msk [vmem:[#allocation3 + $0x88] sm:$0xff] %vm1940, %v1879
      %1959 = vst.msk [vmem:[#allocation3 + $0x90] sm:$0xff] %vm1940, %v1881
      %1960 = vst.msk [vmem:[#allocation3 + $0x98] sm:$0xff] %vm1940, %v1883
      %1961 = vst.msk [vmem:[#allocation3 + $0xa0] sm:$0xff] %vm1940, %v1885
      %1962 = vst.msk [vmem:[#allocation3 + $0xa8] sm:$0xff] %vm1940, %v1887
      %1963 = vst.msk [vmem:[#allocation3 + $0xb0] sm:$0xff] %vm1940, %v1889
      %1964 = vst.msk [vmem:[#allocation3 + $0xb8] sm:$0xff] %vm1940, %v1891
      %1965 = vst.msk [vmem:[#allocation3 + $0xc0] sm:$0xff] %vm1940, %v1893
      %1966 = vst.msk [vmem:[#allocation3 + $0xc8] sm:$0xff] %vm1940, %v1895
      %1967 = vst.msk [vmem:[#allocation3 + $0xd0] sm:$0xff] %vm1940, %v1897
      %1968 = vst.msk [vmem:[#allocation3 + $0xd8] sm:$0xff] %vm1940, %v1899
      %1969 = vst.msk [vmem:[#allocation3 + $0xe0] sm:$0xff] %vm1940, %v1901
      %1970 = vst.msk [vmem:[#allocation3 + $0xe8] sm:$0xff] %vm1940, %v1903
      %1971 = vst.msk [vmem:[#allocation3 + $0xf0] sm:$0xff] %vm1940, %v1905
      %1972 = vst.msk [vmem:[#allocation3 + $0xf8] sm:$0xff] %vm1940, %v1907
      %v1973 = vld [vmem:[#allocation3] sm:$0xff]
      %v1974 = vld [vmem:[#allocation3 + $0x8] sm:$0xff]
      %v1975 = vld [vmem:[#allocation3 + $0x10] sm:$0xff]
      %v1976 = vld [vmem:[#allocation3 + $0x18] sm:$0xff]
      %v1977 = vld [vmem:[#allocation3 + $0x20] sm:$0xff]
      %v1978 = vld [vmem:[#allocation3 + $0x28] sm:$0xff]
      %v1979 = vld [vmem:[#allocation3 + $0x30] sm:$0xff]
      %v1980 = vld [vmem:[#allocation3 + $0x38] sm:$0xff]
      %v1981 = vld [vmem:[#allocation3 + $0x40] sm:$0xff]
      %v1982 = vld [vmem:[#allocation3 + $0x48] sm:$0xff]
      %v1983 = vld [vmem:[#allocation3 + $0x50] sm:$0xff]
      %v1984 = vld [vmem:[#allocation3 + $0x58] sm:$0xff]
      %v1985 = vld [vmem:[#allocation3 + $0x60] sm:$0xff]
      %v1986 = vld [vmem:[#allocation3 + $0x68] sm:$0xff]
      %v1987 = vld [vmem:[#allocation3 + $0x70] sm:$0xff]
      %v1988 = vld [vmem:[#allocation3 + $0x78] sm:$0xff]
      %v1989 = vld [vmem:[#allocation3 + $0x80] sm:$0xff]
      %v1990 = vld [vmem:[#allocation3 + $0x88] sm:$0xff]
      %v1991 = vld [vmem:[#allocation3 + $0x90] sm:$0xff]
      %v1992 = vld [vmem:[#allocation3 + $0x98] sm:$0xff]
      %v1993 = vld [vmem:[#allocation3 + $0xa0] sm:$0xff]
      %v1994 = vld [vmem:[#allocation3 + $0xa8] sm:$0xff]
      %v1995 = vld [vmem:[#allocation3 + $0xb0] sm:$0xff]
      %v1996 = vld [vmem:[#allocation3 + $0xb8] sm:$0xff]
      %v1997 = vld [vmem:[#allocation3 + $0xc0] sm:$0xff]
      %v1998 = vld [vmem:[#allocation3 + $0xc8] sm:$0xff]
      %v1999 = vld [vmem:[#allocation3 + $0xd0] sm:$0xff]
      %v2000 = vld [vmem:[#allocation3 + $0xd8] sm:$0xff]
      %v2001 = vld [vmem:[#allocation3 + $0xe0] sm:$0xff]
      %v2002 = vld [vmem:[#allocation3 + $0xe8] sm:$0xff]
      %v2003 = vld [vmem:[#allocation3 + $0xf0] sm:$0xff]
      %v2004 = vld [vmem:[#allocation3 + $0xf8] sm:$0xff]
      %v2005 = vld [vmem:[%s1] sm:$0xff]
      %v2006 = vld [vmem:[%s1 + $0x8] sm:$0xff]
      %v2007 = vld [vmem:[%s1 + $0x10] sm:$0xff]
      %v2008 = vld [vmem:[%s1 + $0x18] sm:$0xff]
      %v2009 = vld [vmem:[%s1 + $0x20] sm:$0xff]
      %v2010 = vld [vmem:[%s1 + $0x28] sm:$0x1f]
      %v2011 = vld [vmem:[%s2] sm:$0x1]
      %v2013 = vlaneseq
      %v2014 = vshrl.u32 %v2013, 7
      %v2015 = vsub.s32 0, %v2014
      %v2016 = vrot.slane %v2011, %v2015
      %vm2018 = vcmask 367616
      %v2020 = vsel %vm2018, %v1973, 0
      %v2023 = vsel %vm2018, %v1974, 0
      %v2026 = vsel %vm2018, %v1975, 0
      %v2029 = vsel %vm2018, %v1976, 0
      %v2032 = vsel %vm2018, %v1977, 0
      %v2035 = vsel %vm2018, %v1978, 0
      %v2038 = vsel %vm2018, %v1979, 0
      %v2041 = vsel %vm2018, %v1980, 0
      %v2044 = vsel %vm2018, %v1981, 0
      %v2047 = vsel %vm2018, %v1982, 0
      %v2050 = vsel %vm2018, %v1983, 0
      %v2053 = vsel %vm2018, %v1984, 0
      %v2056 = vsel %vm2018, %v1985, 0
      %v2059 = vsel %vm2018, %v1986, 0
      %v2062 = vsel %vm2018, %v1987, 0
      %v2065 = vsel %vm2018, %v1988, 0
      %v2068 = vsel %vm2018, %v1989, 0
      %v2071 = vsel %vm2018, %v1990, 0
      %v2074 = vsel %vm2018, %v1991, 0
      %v2077 = vsel %vm2018, %v1992, 0
      %v2080 = vsel %vm2018, %v1993, 0
      %v2083 = vsel %vm2018, %v1994, 0
      %v2086 = vsel %vm2018, %v1995, 0
      %v2089 = vsel %vm2018, %v1996, 0
      %v2092 = vsel %vm2018, %v1997, 0
      %v2095 = vsel %vm2018, %v1998, 0
      %v2098 = vsel %vm2018, %v1999, 0
      %v2101 = vsel %vm2018, %v2000, 0
      %v2104 = vsel %vm2018, %v2001, 0
      %v2107 = vsel %vm2018, %v2002, 0
      %v2110 = vsel %vm2018, %v2003, 0
      %v2113 = vsel %vm2018, %v2004, 0
      %vm2115 = vcmask 1044480
      %v2117 = vsel %vm2115, %v2010, 0
      %2119 = vmatprep.subr.mxu0 0.0
      %2120 = vmatpush1.msra.mxu0 0.0
      %2121 = vmatprep.subr.mxu0 0.0
      %2122 = vmatpush1.msra.mxu0 0.0
      %2123 = vmatprep.subr.mxu0 0.0
      %2124 = vmatpush1.msra.mxu0 0.0
      %2125 = vmatprep.subr.mxu0 0.0
      %2126 = vmatpush1.msra.mxu0 0.0
      %2127 = vmatprep.subr.mxu0 0.0
      %2128 = vmatpush1.msra.mxu0 0.0
      %2129 = vmatprep.subr.mxu0 0.0
      %2130 = vmatpush1.msra.mxu0 0.0
      %2131 = vmatprep.subr.mxu0 0.0
      %2132 = vmatpush1.msra.mxu0 0.0
      %2133 = vmatprep.subr.mxu0 0.0
      %2134 = vmatpush1.msra.mxu0 0.0
      %2135 = vmatprep.subr.mxu0 0.0
      %2136 = vmatpush1.msra.mxu0 0.0
      %2137 = vmatprep.subr.mxu0 0.0
      %2138 = vmatpush1.msra.mxu0 0.0
      %2139 = vmatprep.subr.mxu0 0.0
      %2140 = vmatpush1.msra.mxu0 %v2117
      %2141 = vmatprep.subr.mxu0 0.0
      %2142 = vmatpush1.msra.mxu0 %v2009
      %2143 = vmatprep.subr.mxu0 0.0
      %2144 = vmatpush1.msra.mxu0 %v2008
      %2145 = vmatprep.subr.mxu0 0.0
      %2146 = vmatpush1.msra.mxu0 %v2007
      %2147 = vmatprep.subr.mxu0 0.0
      %2148 = vmatpush1.msra.mxu0 %v2006
      %2149 = vmatprep.subr.mxu0 0.0
      %2150 = vmatpush1.msra.mxu0 %v2005
      %2151 = vmatprep.subr.mxu0 0.0
      %2152 = vmatpush2.msra.mxu0 0.0
      %2153 = vmatprep.subr.mxu0 0.0
      %2154 = vmatpush2.msra.mxu0 0.0
      %2155 = vmatprep.subr.mxu0 0.0
      %2156 = vmatpush2.msra.mxu0 0.0
      %2157 = vmatprep.subr.mxu0 0.0
      %2158 = vmatpush2.msra.mxu0 0.0
      %2159 = vmatprep.subr.mxu0 0.0
      %2160 = vmatpush2.msra.mxu0 0.0
      %2161 = vmatprep.subr.mxu0 0.0
      %2162 = vmatpush2.msra.mxu0 0.0
      %2163 = vmatprep.subr.mxu0 0.0
      %2164 = vmatpush2.msra.mxu0 0.0
      %2165 = vmatprep.subr.mxu0 0.0
      %2166 = vmatpush2.msra.mxu0 0.0
      %2167 = vmatprep.subr.mxu0 0.0
      %2168 = vmatpush2.msra.mxu0 0.0
      %2169 = vmatprep.subr.mxu0 0.0
      %2170 = vmatpush2.msra.mxu0 0.0
      %2171 = vmatprep.subr.mxu0 0.0
      %2172 = vmatpush2.msra.mxu0 0.0
      %2173 = vmatprep.subr.mxu0 0.0
      %2174 = vmatpush2.msra.mxu0 0.0
      %2175 = vmatprep.subr.mxu0 0.0
      %2176 = vmatpush2.msra.mxu0 0.0
      %2177 = vmatprep.subr.mxu0 0.0
      %2178 = vmatpush2.msra.mxu0 0.0
      %2179 = vmatprep.subr.mxu0 0.0
      %2180 = vmatpush2.msra.mxu0 0.0
      %2181 = vmatprep.subr.mxu0 0.0
      %2182 = vmatpush2.msra.mxu0 0.0
      %2183 = vmatprep.mubr.f32.mxu0 0.0
      %2184 = vmatmul.mubr.f32.gmra.mxu0 %v2020
      %v2185 = vpop.f32.mrf.mxu0
      %v2186 = vadd.f32 %v2016, %v2185
      %v2187 = vpop.f32.mrf.mxu0
      %2188 = vmatprep.mubr.f32.mxu0 0.0
      %2189 = vmatmul.mubr.f32.gmra.mxu0 %v2023
      %v2190 = vpop.f32.mrf.mxu0
      %v2191 = vadd.f32 %v2016, %v2190
      %v2192 = vpop.f32.mrf.mxu0
      %2193 = vmatprep.mubr.f32.mxu0 0.0
      %2194 = vmatmul.mubr.f32.gmra.mxu0 %v2026
      %v2195 = vpop.f32.mrf.mxu0
      %v2196 = vadd.f32 %v2016, %v2195
      %v2197 = vpop.f32.mrf.mxu0
      %2198 = vmatprep.mubr.f32.mxu0 0.0
      %2199 = vmatmul.mubr.f32.gmra.mxu0 %v2029
      %v2200 = vpop.f32.mrf.mxu0
      %v2201 = vadd.f32 %v2016, %v2200
      %v2202 = vpop.f32.mrf.mxu0
      %2203 = vmatprep.mubr.f32.mxu0 0.0
      %2204 = vmatmul.mubr.f32.gmra.mxu0 %v2032
      %v2205 = vpop.f32.mrf.mxu0
      %v2206 = vadd.f32 %v2016, %v2205
      %v2207 = vpop.f32.mrf.mxu0
      %2208 = vmatprep.mubr.f32.mxu0 0.0
      %2209 = vmatmul.mubr.f32.gmra.mxu0 %v2035
      %v2210 = vpop.f32.mrf.mxu0
      %v2211 = vadd.f32 %v2016, %v2210
      %v2212 = vpop.f32.mrf.mxu0
      %2213 = vmatprep.mubr.f32.mxu0 0.0
      %2214 = vmatmul.mubr.f32.gmra.mxu0 %v2038
      %v2215 = vpop.f32.mrf.mxu0
      %v2216 = vadd.f32 %v2016, %v2215
      %v2217 = vpop.f32.mrf.mxu0
      %2218 = vmatprep.mubr.f32.mxu0 0.0
      %2219 = vmatmul.mubr.f32.gmra.mxu0 %v2041
      %v2220 = vpop.f32.mrf.mxu0
      %v2221 = vadd.f32 %v2016, %v2220
      %v2222 = vpop.f32.mrf.mxu0
      %2223 = vmatprep.mubr.f32.mxu0 0.0
      %2224 = vmatmul.mubr.f32.gmra.mxu0 %v2044
      %v2225 = vpop.f32.mrf.mxu0
      %v2226 = vadd.f32 %v2016, %v2225
      %v2227 = vpop.f32.mrf.mxu0
      %2228 = vmatprep.mubr.f32.mxu0 0.0
      %2229 = vmatmul.mubr.f32.gmra.mxu0 %v2047
      %v2230 = vpop.f32.mrf.mxu0
      %v2231 = vadd.f32 %v2016, %v2230
      %v2232 = vpop.f32.mrf.mxu0
      %2233 = vmatprep.mubr.f32.mxu0 0.0
      %2234 = vmatmul.mubr.f32.gmra.mxu0 %v2050
      %v2235 = vpop.f32.mrf.mxu0
      %v2236 = vadd.f32 %v2016, %v2235
      %v2237 = vpop.f32.mrf.mxu0
      %2238 = vmatprep.mubr.f32.mxu0 0.0
      %2239 = vmatmul.mubr.f32.gmra.mxu0 %v2053
      %v2240 = vpop.f32.mrf.mxu0
      %v2241 = vadd.f32 %v2016, %v2240
      %v2242 = vpop.f32.mrf.mxu0
      %2243 = vmatprep.mubr.f32.mxu0 0.0
      %2244 = vmatmul.mubr.f32.gmra.mxu0 %v2056
      %v2245 = vpop.f32.mrf.mxu0
      %v2246 = vadd.f32 %v2016, %v2245
      %v2247 = vpop.f32.mrf.mxu0
      %2248 = vmatprep.mubr.f32.mxu0 0.0
      %2249 = vmatmul.mubr.f32.gmra.mxu0 %v2059
      %v2250 = vpop.f32.mrf.mxu0
      %v2251 = vadd.f32 %v2016, %v2250
      %v2252 = vpop.f32.mrf.mxu0
      %2253 = vmatprep.mubr.f32.mxu0 0.0
      %2254 = vmatmul.mubr.f32.gmra.mxu0 %v2062
      %v2255 = vpop.f32.mrf.mxu0
      %v2256 = vadd.f32 %v2016, %v2255
      %v2257 = vpop.f32.mrf.mxu0
      %2258 = vmatprep.mubr.f32.mxu0 0.0
      %2259 = vmatmul.mubr.f32.gmra.mxu0 %v2065
      %v2260 = vpop.f32.mrf.mxu0
      %v2261 = vadd.f32 %v2016, %v2260
      %v2262 = vpop.f32.mrf.mxu0
      %2263 = vmatprep.mubr.f32.mxu0 0.0
      %2264 = vmatmul.mubr.f32.gmra.mxu0 %v2068
      %v2265 = vpop.f32.mrf.mxu0
      %v2266 = vadd.f32 %v2016, %v2265
      %v2267 = vpop.f32.mrf.mxu0
      %2268 = vmatprep.mubr.f32.mxu0 0.0
      %2269 = vmatmul.mubr.f32.gmra.mxu0 %v2071
      %v2270 = vpop.f32.mrf.mxu0
      %v2271 = vadd.f32 %v2016, %v2270
      %v2272 = vpop.f32.mrf.mxu0
      %2273 = vmatprep.mubr.f32.mxu0 0.0
      %2274 = vmatmul.mubr.f32.gmra.mxu0 %v2074
      %v2275 = vpop.f32.mrf.mxu0
      %v2276 = vadd.f32 %v2016, %v2275
      %v2277 = vpop.f32.mrf.mxu0
      %2278 = vmatprep.mubr.f32.mxu0 0.0
      %2279 = vmatmul.mubr.f32.gmra.mxu0 %v2077
      %v2280 = vpop.f32.mrf.mxu0
      %v2281 = vadd.f32 %v2016, %v2280
      %v2282 = vpop.f32.mrf.mxu0
      %2283 = vmatprep.mubr.f32.mxu0 0.0
      %2284 = vmatmul.mubr.f32.gmra.mxu0 %v2080
      %v2285 = vpop.f32.mrf.mxu0
      %v2286 = vadd.f32 %v2016, %v2285
      %v2287 = vpop.f32.mrf.mxu0
      %2288 = vmatprep.mubr.f32.mxu0 0.0
      %2289 = vmatmul.mubr.f32.gmra.mxu0 %v2083
      %v2290 = vpop.f32.mrf.mxu0
      %v2291 = vadd.f32 %v2016, %v2290
      %v2292 = vpop.f32.mrf.mxu0
      %2293 = vmatprep.mubr.f32.mxu0 0.0
      %2294 = vmatmul.mubr.f32.gmra.mxu0 %v2086
      %v2295 = vpop.f32.mrf.mxu0
      %v2296 = vadd.f32 %v2016, %v2295
      %v2297 = vpop.f32.mrf.mxu0
      %2298 = vmatprep.mubr.f32.mxu0 0.0
      %2299 = vmatmul.mubr.f32.gmra.mxu0 %v2089
      %v2300 = vpop.f32.mrf.mxu0
      %v2301 = vadd.f32 %v2016, %v2300
      %v2302 = vpop.f32.mrf.mxu0
      %2303 = vmatprep.mubr.f32.mxu0 0.0
      %2304 = vmatmul.mubr.f32.gmra.mxu0 %v2092
      %v2305 = vpop.f32.mrf.mxu0
      %v2306 = vadd.f32 %v2016, %v2305
      %v2307 = vpop.f32.mrf.mxu0
      %2308 = vmatprep.mubr.f32.mxu0 0.0
      %2309 = vmatmul.mubr.f32.gmra.mxu0 %v2095
      %v2310 = vpop.f32.mrf.mxu0
      %v2311 = vadd.f32 %v2016, %v2310
      %v2312 = vpop.f32.mrf.mxu0
      %2313 = vmatprep.mubr.f32.mxu0 0.0
      %2314 = vmatmul.mubr.f32.gmra.mxu0 %v2098
      %v2315 = vpop.f32.mrf.mxu0
      %v2316 = vadd.f32 %v2016, %v2315
      %v2317 = vpop.f32.mrf.mxu0
      %2318 = vmatprep.mubr.f32.mxu0 0.0
      %2319 = vmatmul.mubr.f32.gmra.mxu0 %v2101
      %v2320 = vpop.f32.mrf.mxu0
      %v2321 = vadd.f32 %v2016, %v2320
      %v2322 = vpop.f32.mrf.mxu0
      %2323 = vmatprep.mubr.f32.mxu0 0.0
      %2324 = vmatmul.mubr.f32.gmra.mxu0 %v2104
      %v2325 = vpop.f32.mrf.mxu0
      %v2326 = vadd.f32 %v2016, %v2325
      %v2327 = vpop.f32.mrf.mxu0
      %2328 = vmatprep.mubr.f32.mxu0 0.0
      %2329 = vmatmul.mubr.f32.gmra.mxu0 %v2107
      %v2330 = vpop.f32.mrf.mxu0
      %v2331 = vadd.f32 %v2016, %v2330
      %v2332 = vpop.f32.mrf.mxu0
      %2333 = vmatprep.mubr.f32.mxu0 0.0
      %2334 = vmatmul.mubr.f32.gmra.mxu0 %v2110
      %v2335 = vpop.f32.mrf.mxu0
      %v2336 = vadd.f32 %v2016, %v2335
      %v2337 = vpop.f32.mrf.mxu0
      %2338 = vmatprep.mubr.f32.mxu0 0.0
      %2339 = vmatmul.mubr.f32.gmra.mxu0 %v2113
      %v2340 = vpop.f32.mrf.mxu0
      %v2341 = vadd.f32 %v2016, %v2340
      %v2342 = vpop.f32.mrf.mxu0
      %2343 = vdwg.mxu0
      %v2344 = vmax.f32 %v2186, 0.0
      %v2345 = vmax.f32 %v2191, 0.0
      %v2346 = vmax.f32 %v2196, 0.0
      %v2347 = vmax.f32 %v2201, 0.0
      %v2348 = vmax.f32 %v2206, 0.0
      %v2349 = vmax.f32 %v2211, 0.0
      %v2350 = vmax.f32 %v2216, 0.0
      %v2351 = vmax.f32 %v2221, 0.0
      %v2352 = vmax.f32 %v2226, 0.0
      %v2353 = vmax.f32 %v2231, 0.0
      %v2354 = vmax.f32 %v2236, 0.0
      %v2355 = vmax.f32 %v2241, 0.0
      %v2356 = vmax.f32 %v2246, 0.0
      %v2357 = vmax.f32 %v2251, 0.0
      %v2358 = vmax.f32 %v2256, 0.0
      %v2359 = vmax.f32 %v2261, 0.0
      %v2360 = vmax.f32 %v2266, 0.0
      %v2361 = vmax.f32 %v2271, 0.0
      %v2362 = vmax.f32 %v2276, 0.0
      %v2363 = vmax.f32 %v2281, 0.0
      %v2364 = vmax.f32 %v2286, 0.0
      %v2365 = vmax.f32 %v2291, 0.0
      %v2366 = vmax.f32 %v2296, 0.0
      %v2367 = vmax.f32 %v2301, 0.0
      %v2368 = vmax.f32 %v2306, 0.0
      %v2369 = vmax.f32 %v2311, 0.0
      %v2370 = vmax.f32 %v2316, 0.0
      %v2371 = vmax.f32 %v2321, 0.0
      %v2372 = vmax.f32 %v2326, 0.0
      %v2373 = vmax.f32 %v2331, 0.0
      %v2374 = vmax.f32 %v2336, 0.0
      %v2375 = vmax.f32 %v2341, 0.0
      %2376 = vst [vmem:[%s204] sm:$0xff] %v2344
      %2377 = vst [vmem:[%s204 + $0x8] sm:$0xff] %v2345
      %2378 = vst [vmem:[%s204 + $0x10] sm:$0xff] %v2346
      %2379 = vst [vmem:[%s204 + $0x18] sm:$0xff] %v2347
      %2380 = vst [vmem:[%s204 + $0x20] sm:$0xff] %v2348
      %2381 = vst [vmem:[%s204 + $0x28] sm:$0xff] %v2349
      %2382 = vst [vmem:[%s204 + $0x30] sm:$0xff] %v2350
      %2383 = vst [vmem:[%s204 + $0x38] sm:$0xff] %v2351
      %2384 = vst [vmem:[%s204 + $0x40] sm:$0xff] %v2352
      %2385 = vst [vmem:[%s204 + $0x48] sm:$0xff] %v2353
      %2386 = vst [vmem:[%s204 + $0x50] sm:$0xff] %v2354
      %2387 = vst [vmem:[%s204 + $0x58] sm:$0xff] %v2355
      %2388 = vst [vmem:[%s204 + $0x60] sm:$0xff] %v2356
      %2389 = vst [vmem:[%s204 + $0x68] sm:$0xff] %v2357
      %2390 = vst [vmem:[%s204 + $0x70] sm:$0xff] %v2358
      %2391 = vst [vmem:[%s204 + $0x78] sm:$0xff] %v2359
      %2392 = vst [vmem:[%s204 + $0x80] sm:$0xff] %v2360
      %2393 = vst [vmem:[%s204 + $0x88] sm:$0xff] %v2361
      %2394 = vst [vmem:[%s204 + $0x90] sm:$0xff] %v2362
      %2395 = vst [vmem:[%s204 + $0x98] sm:$0xff] %v2363
      %2396 = vst [vmem:[%s204 + $0xa0] sm:$0xff] %v2364
      %2397 = vst [vmem:[%s204 + $0xa8] sm:$0xff] %v2365
      %2398 = vst [vmem:[%s204 + $0xb0] sm:$0xff] %v2366
      %2399 = vst [vmem:[%s204 + $0xb8] sm:$0xff] %v2367
      %2400 = vst [vmem:[%s204 + $0xc0] sm:$0xff] %v2368
      %2401 = vst [vmem:[%s204 + $0xc8] sm:$0xff] %v2369
      %2402 = vst [vmem:[%s204 + $0xd0] sm:$0xff] %v2370
      %2403 = vst [vmem:[%s204 + $0xd8] sm:$0xff] %v2371
      %2404 = vst [vmem:[%s204 + $0xe0] sm:$0xff] %v2372
      %2405 = vst [vmem:[%s204 + $0xe8] sm:$0xff] %v2373
      %2406 = vst [vmem:[%s204 + $0xf0] sm:$0xff] %v2374
      %2407 = vst [vmem:[%s204 + $0xf8] sm:$0xff] %v2375
      %v2408 = vadd.f32 %v2344, %v2345
      %v2409 = vadd.f32 %v2408, %v2346
      %v2410 = vadd.f32 %v2409, %v2347
      %v2411 = vadd.f32 %v2410, %v2348
      %v2412 = vadd.f32 %v2411, %v2349
      %v2413 = vadd.f32 %v2412, %v2350
      %v2414 = vadd.f32 %v2413, %v2351
      %v2415 = vadd.f32 %v2414, %v2352
      %v2416 = vadd.f32 %v2415, %v2353
      %v2417 = vadd.f32 %v2416, %v2354
      %v2418 = vadd.f32 %v2417, %v2355
      %v2419 = vadd.f32 %v2418, %v2356
      %v2420 = vadd.f32 %v2419, %v2357
      %v2421 = vadd.f32 %v2420, %v2358
      %v2422 = vadd.f32 %v2421, %v2359
      %v2423 = vadd.f32 %v2422, %v2360
      %v2424 = vadd.f32 %v2423, %v2361
      %v2425 = vadd.f32 %v2424, %v2362
      %v2426 = vadd.f32 %v2425, %v2363
      %v2427 = vadd.f32 %v2426, %v2364
      %v2428 = vadd.f32 %v2427, %v2365
      %v2429 = vadd.f32 %v2428, %v2366
      %v2430 = vadd.f32 %v2429, %v2367
      %v2431 = vadd.f32 %v2430, %v2368
      %v2432 = vadd.f32 %v2431, %v2369
      %v2433 = vadd.f32 %v2432, %v2370
      %v2434 = vadd.f32 %v2433, %v2371
      %v2435 = vadd.f32 %v2434, %v2372
      %v2436 = vadd.f32 %v2435, %v2373
      %v2437 = vadd.f32 %v2436, %v2374
      %v2438 = vadd.f32 %v2437, %v2375
      %v2439 = vrot.slane %v2438, 4
      %v2440 = vadd.f32 %v2438, %v2439
      %v2441 = vrot.slane %v2440, 2
      %v2442 = vadd.f32 %v2440, %v2441
      %v2443 = vrot.slane %v2442, 1
      %v2444 = vadd.f32 %v2442, %v2443
      %v2445 = vmul.f32 %v2344, %v2344
      %v2446 = vmul.f32 %v2345, %v2345
      %v2447 = vmul.f32 %v2346, %v2346
      %v2448 = vmul.f32 %v2347, %v2347
      %v2449 = vmul.f32 %v2348, %v2348
      %v2450 = vmul.f32 %v2349, %v2349
      %v2451 = vmul.f32 %v2350, %v2350
      %v2452 = vmul.f32 %v2351, %v2351
      %v2453 = vmul.f32 %v2352, %v2352
      %v2454 = vmul.f32 %v2353, %v2353
      %v2455 = vmul.f32 %v2354, %v2354
      %v2456 = vmul.f32 %v2355, %v2355
      %v2457 = vmul.f32 %v2356, %v2356
      %v2458 = vmul.f32 %v2357, %v2357
      %v2459 = vmul.f32 %v2358, %v2358
      %v2460 = vmul.f32 %v2359, %v2359
      %v2461 = vmul.f32 %v2360, %v2360
      %v2462 = vmul.f32 %v2361, %v2361
      %v2463 = vmul.f32 %v2362, %v2362
      %v2464 = vmul.f32 %v2363, %v2363
      %v2465 = vmul.f32 %v2364, %v2364
      %v2466 = vmul.f32 %v2365, %v2365
      %v2467 = vmul.f32 %v2366, %v2366
      %v2468 = vmul.f32 %v2367, %v2367
      %v2469 = vmul.f32 %v2368, %v2368
      %v2470 = vmul.f32 %v2369, %v2369
      %v2471 = vmul.f32 %v2370, %v2370
      %v2472 = vmul.f32 %v2371, %v2371
      %v2473 = vmul.f32 %v2372, %v2372
      %v2474 = vmul.f32 %v2373, %v2373
      %v2475 = vmul.f32 %v2374, %v2374
      %v2476 = vmul.f32 %v2375, %v2375
      %v2477 = vadd.f32 %v2445, %v2446
      %v2478 = vadd.f32 %v2477, %v2447
      %v2479 = vadd.f32 %v2478, %v2448
      %v2480 = vadd.f32 %v2479, %v2449
      %v2481 = vadd.f32 %v2480, %v2450
      %v2482 = vadd.f32 %v2481, %v2451
      %v2483 = vadd.f32 %v2482, %v2452
      %v2484 = vadd.f32 %v2483, %v2453
      %v2485 = vadd.f32 %v2484, %v2454
      %v2486 = vadd.f32 %v2485, %v2455
      %v2487 = vadd.f32 %v2486, %v2456
      %v2488 = vadd.f32 %v2487, %v2457
      %v2489 = vadd.f32 %v2488, %v2458
      %v2490 = vadd.f32 %v2489, %v2459
      %v2491 = vadd.f32 %v2490, %v2460
      %v2492 = vadd.f32 %v2491, %v2461
      %v2493 = vadd.f32 %v2492, %v2462
      %v2494 = vadd.f32 %v2493, %v2463
      %v2495 = vadd.f32 %v2494, %v2464
      %v2496 = vadd.f32 %v2495, %v2465
      %v2497 = vadd.f32 %v2496, %v2466
      %v2498 = vadd.f32 %v2497, %v2467
      %v2499 = vadd.f32 %v2498, %v2468
      %v2500 = vadd.f32 %v2499, %v2469
      %v2501 = vadd.f32 %v2500, %v2470
      %v2502 = vadd.f32 %v2501, %v2471
      %v2503 = vadd.f32 %v2502, %v2472
      %v2504 = vadd.f32 %v2503, %v2473
      %v2505 = vadd.f32 %v2504, %v2474
      %v2506 = vadd.f32 %v2505, %v2475
      %v2507 = vadd.f32 %v2506, %v2476
      %v2508 = vrot.slane %v2507, 4
      %v2509 = vadd.f32 %v2507, %v2508
      %v2510 = vrot.slane %v2509, 2
      %v2511 = vadd.f32 %v2509, %v2510
      %v2512 = vrot.slane %v2511, 1
      %v2513 = vadd.f32 %v2511, %v2512
      %vm2514 = vcmask 1040384
      %v2515 = vsel %vm2514, %v2444, %v2513
      %2516 = vst [vmem:[%s208] sm:$0x3] %v2515
      %p2517 = scmp.lt.s32.totalorder %s16, 1
      %s2518 = scalar_select %p2517, %s16, 1
      %s2519 = smul.addr %s2518, 32
      %s2520 = smul.addr %s2519, 8
      %s2521 = scalar_lea.vmem %s3, %s2520
      %p2522 = scmp.lt.s32.totalorder %s16, 1
      %s2523 = scalar_select %p2522, %s16, 1
      %s2524 = smul.addr %s2523, 2
      %s2525 = scalar_lea.vmem %s4, %s2524
      // Predicated region
      $region33: #{unet_block_up_forward.3} parent=31 // pred_check
        %p2526 = pneg %p102
      $region34: #{unet_block_up_forward.3} parent=31 // pred_check_branch
        %2528 = sbr.rel (%p2526) target = $region36
      $region35: #{unet_block_up_forward.3} parent=31 // pred_region
        _
      $region36: #{unet_block_up_forward.3} parent=31 // pred_fallthru
        _
      // Predicated region
      $region37: #{unet_block_up_forward.3} parent=31 // pred_check
        %p2529 = pneg %p128
      $region38: #{unet_block_up_forward.3} parent=31 // pred_check_branch
        %2531 = sbr.rel (%p2529) target = $region40
      $region39: #{unet_block_up_forward.3} parent=31 // pred_region
        _
      $region40: #{unet_block_up_forward.3} parent=31 // pred_fallthru
        _
    $region32: #{unet_block_up_forward.3} parent=5 // pred_fallthru
      _
    %p2532 = scmp.le.s32.totalorder 2, %s11
    // Predicated region
    $region41: #{unet_block_up_forward.3} parent=5 // pred_check
      %p2533 = pneg %p2532
    $region42: #{unet_block_up_forward.3} parent=5 // pred_check_branch
      %2535 = sbr.rel (%p2533) target = $region44
    $region43: #{unet_block_up_forward.3} parent=5 // pred_region
      %s2536 = ssub.s32 %s11, 2
      // Predicated region
      $region45: #{unet_block_up_forward.3} parent=43 // pred_check
        %p2537 = pneg %p108
      $region46: #{unet_block_up_forward.3} parent=43 // pred_check_branch
        %2539 = sbr.rel (%p2537) target = $region48
      $region47: #{unet_block_up_forward.3} parent=43 // pred_region
        %p2540 = scmp.lt.s32.totalorder %s17, 1
        %s2541 = scalar_select %p2540, %s17, 1
        %s2542 = smul.addr %s2541, 32
        %s2543 = smul.addr %s2542, 8
        %s2544 = scalar_lea.vmem %s3, %s2543
      $region48: #{unet_block_up_forward.3} parent=43 // pred_fallthru
        _
      // Predicated region
      $region49: #{unet_block_up_forward.3} parent=43 // pred_check
        %p2545 = pneg %p134
      $region50: #{unet_block_up_forward.3} parent=43 // pred_check_branch
        %2547 = sbr.rel (%p2545) target = $region52
      $region51: #{unet_block_up_forward.3} parent=43 // pred_region
        %p2548 = scmp.lt.s32.totalorder %s17, 1
        %s2549 = scalar_select %p2548, %s17, 1
        %s2550 = smul.addr %s2549, 2
        %s2551 = scalar_lea.vmem %s4, %s2550
      $region52: #{unet_block_up_forward.3} parent=43 // pred_fallthru
        _
    $region44: #{unet_block_up_forward.3} parent=5 // pred_fallthru
      _
  $region6: #{unet_block_up_forward.3} parent=0 // loop_footer
    %s15 = sadd.s32 1, %s11
  $region7: #{unet_block_up_forward.3} parent=0 // loop_footer_branch
    %10 = sbr.rel target = $region3
  $region8: #{unet_block_up_forward.3} parent=0 // loop_exit
    _

</llo_original>
